<compile_context>
chip_gen: v7x
topology: tpu7x:2x2x1
jax: 0.10.0
libtpu: 0.0.40
codegen_flags: <defaults>
</compile_context>

<pallas_src>
import functools

import jax
import jax.numpy as jnp
from jax import lax
from jax.experimental import pallas as pl
from jax.experimental.pallas import tpu as pltpu

_BN_EPS = 1e-5
_XP_RESIDENT_BUDGET = 8 * 1024 * 1024    # bf16 xp kept fully VMEM-resident below this
_MIN_VMEM_LIMIT = 32 * 1024 * 1024
_MAX_VMEM_LIMIT = 64 * 1024 * 1024       # v7x has 64 MiB/TC (v5e/v6e have 128)


def _round_up(x, m):
    return ((x + m - 1) // m) * m


def _vmem_limit(working_set_bytes):
    """Per-call VMEM limit: ~2x the estimated working set, clamped v7x-safe."""
    want = int(2 * working_set_bytes) + (4 << 20)
    return int(min(max(want, _MIN_VMEM_LIMIT), _MAX_VMEM_LIMIT))


def _choose_tiles(n_pad):
    """Row tile tm and contraction tile tk (both divide the padded N)."""
    tm_cands = [t for t in (512, 256, 128) if n_pad % t == 0]
    # Keep >=2 row tiles when possible so the "parallel" axis can split across
    # v7x's two TensorCores.
    tm = next((t for t in tm_cands if n_pad // t >= 2), tm_cands[-1])
    tk_cands = [t for t in (2048, 1024, 512, 256, 128) if n_pad % t == 0]
    tk = tk_cands[0]
    return tm, tk


# --------------------------------------------------------------------------
# Kernel 1: layer-0 projection  xp = x @ W1   (row-tiled), emits f32 + bf16.
# --------------------------------------------------------------------------
def gin_project_kernel(x_ref, w1_ref, xp_ref, xpb_ref):
    xp = jnp.dot(x_ref[...], w1_ref[...], preferred_element_type=jnp.float32)
    xp_ref[...] = xp
    xpb_ref[...] = xp.astype(jnp.bfloat16)


def gin_project(x, w1, tm):
    n_pad, f_pad = x.shape
    dim_pad = w1.shape[1]
    working = (2 * tm * f_pad * 4 + f_pad * dim_pad * 4
               + 2 * tm * dim_pad * (4 + 2))
    return pl.pallas_call(
        gin_project_kernel,
        out_shape=(jax.ShapeDtypeStruct((n_pad, dim_pad), jnp.float32),
                   jax.ShapeDtypeStruct((n_pad, dim_pad), jnp.bfloat16)),
        grid_spec=pltpu.PrefetchScalarGridSpec(
            num_scalar_prefetch=0,
            grid=(n_pad // tm,),
            in_specs=[pl.BlockSpec((tm, f_pad), lambda i: (i, 0)),
                      pl.BlockSpec((f_pad, dim_pad), lambda i: (0, 0))],
            out_specs=(pl.BlockSpec((tm, dim_pad), lambda i: (i, 0)),
                       pl.BlockSpec((tm, dim_pad), lambda i: (i, 0))),
        ),
        compiler_params=pltpu.CompilerParams(
            dimension_semantics=("parallel",),
            vmem_limit_bytes=_vmem_limit(working)),
    )(x, w1)


# --------------------------------------------------------------------------
# Kernel 2: aggregation + MLP second layer + partial BatchNorm statistics
#   acc = A @ xp  (bf16 x bf16 -> f32 MXU, accumulated over k-tiles)
#   h1  = relu(acc + xp_dst + b1)       (== relu((x + A@x) @ W1 + b1))
#   y   = relu(h1 @ W2 + b2)
#   partial stats: per row-tile sum / sumsq of y (padded node rows masked)
# --------------------------------------------------------------------------
def gin_agg_kernel(adj_ref, xp_src_ref, xp_dst_ref, b1_ref, w2_ref, b2_ref,
                   y_ref, psum_ref, psq_ref, acc_ref,
                   *, n_real, tm, tk, xp_resident):
    # Hoisted: pl.program_id / pl.num_programs must NOT be called inside a
    # pl.when body (no lowering rule for the primitive inside cond branches
    # on the interpret path).
    i = pl.program_id(0)
    k = pl.program_id(1)
    nk = pl.num_programs(1)

    @pl.when(k == 0)
    def _():
        acc_ref[...] = jnp.zeros_like(acc_ref)

    if xp_resident:
        # xp is DMA'd to VMEM once (constant index_map); slice the k-th stripe.
        xp_src = xp_src_ref[pl.ds(k * tk, tk), :]
    else:
        xp_src = xp_src_ref[...]
    # Native-rate bf16 x bf16 -> f32 MXU accumulate (no in-kernel upcast).
    acc_ref[...] += jnp.dot(adj_ref[...], xp_src,
                            preferred_element_type=jnp.float32)

    @pl.when(k == nk - 1)
    def _():
        h1 = jnp.maximum(acc_ref[...] + xp_dst_ref[...] + b1_ref[...], 0.0)
        h2 = jnp.dot(h1, w2_ref[...],
                     preferred_element_type=jnp.float32) + b2_ref[...]
        y = jnp.maximum(h2, 0.0)

        # Zero padded node rows so they do not pollute the BN statistics.
        row_ids = i * tm + lax.broadcasted_iota(jnp.int32, y.shape, 0)
        y = jnp.where(row_ids < n_real, y, 0.0)
        y_ref[...] = y

        psum_ref[...] = jnp.zeros_like(psum_ref)
        psq_ref[...] = jnp.zeros_like(psq_ref)
        psum_ref[0:1, :] = jnp.sum(y, axis=0, keepdims=True)
        psq_ref[0:1, :] = jnp.sum(y * y, axis=0, keepdims=True)


def gin_agg(adj_bf16, xp_bf16, xp_f32, b1, w2, b2, n_real, tm, tk):
    n_pad, dim_pad = xp_f32.shape
    ni, nk = n_pad // tm, n_pad // tk

    xp_resident = (n_pad * dim_pad * 2) <= _XP_RESIDENT_BUDGET
    if xp_resident:
        xp_src_spec = pl.BlockSpec((n_pad, dim_pad), lambda i, k: (0, 0))
        xp_src_bytes = n_pad * dim_pad * 2
    else:
        xp_src_spec = pl.BlockSpec((tk, dim_pad), lambda i, k: (k, 0))
        xp_src_bytes = 2 * tk * dim_pad * 2

    working = (2 * tm * tk * 2 + xp_src_bytes
               + 2 * tm * dim_pad * 4           # xp_dst
               + 2 * tm * dim_pad * 4           # y out
               + tm * dim_pad * 4               # acc scratch
               + dim_pad * dim_pad * 4          # W2 (resident)
               + 4 * 8 * dim_pad * 4 + 2 * dim_pad * 4)

    kernel = functools.partial(gin_agg_kernel, n_real=n_real, tm=tm, tk=tk,
                               xp_resident=xp_resident)
    return pl.pallas_call(
        kernel,
        out_shape=(jax.ShapeDtypeStruct((n_pad, dim_pad), jnp.float32),
                   jax.ShapeDtypeStruct((ni * 8, dim_pad), jnp.float32),
                   jax.ShapeDtypeStruct((ni * 8, dim_pad), jnp.float32)),
        grid_spec=pltpu.PrefetchScalarGridSpec(
            num_scalar_prefetch=0,
            grid=(ni, nk),
            in_specs=[
                # TODO(synk): sweep pipeline_mode=pl.Buffered(3) on this
                # adjacency stream on real workloads (dominant DMA).
                pl.BlockSpec((tm, tk), lambda i, k: (i, k)),
                xp_src_spec,
                pl.BlockSpec((tm, dim_pad), lambda i, k: (i, 0)),
                pl.BlockSpec((1, dim_pad), lambda i, k: (0, 0)),
                pl.BlockSpec((dim_pad, dim_pad), lambda i, k: (0, 0)),
                pl.BlockSpec((1, dim_pad), lambda i, k: (0, 0)),
            ],
            out_specs=(pl.BlockSpec((tm, dim_pad), lambda i, k: (i, 0)),
                       pl.BlockSpec((8, dim_pad), lambda i, k: (i, 0)),
                       pl.BlockSpec((8, dim_pad), lambda i, k: (i, 0))),
            scratch_shapes=[pltpu.VMEM((tm, dim_pad), jnp.float32)]),
        compiler_params=pltpu.CompilerParams(
            dimension_semantics=("parallel", "arbitrary"),
            vmem_limit_bytes=_vmem_limit(working)),
    )(adj_bf16, xp_bf16, xp_f32, b1, w2, b2)


# --------------------------------------------------------------------------
# Kernel 3: BatchNorm apply (second pass), optionally fused with the NEXT
# layer's projection xp_next = h @ W1_next (f32 + bf16 outputs).
# --------------------------------------------------------------------------
def _bn_stats(psum_ref, psq_ref, gamma_ref, inv_n):
    mean = jnp.sum(psum_ref[...], axis=0, keepdims=True) * inv_n
    ex2 = jnp.sum(psq_ref[...], axis=0, keepdims=True) * inv_n
    var = ex2 - mean * mean            # biased variance (torch training-mode BN)
    scale = lax.rsqrt(var + _BN_EPS) * gamma_ref[...]
    return mean, scale


def bn_apply_kernel(y_ref, psum_ref, psq_ref, gamma_ref, beta_ref, h_ref,
                    *, inv_n):
    mean, scale = _bn_stats(psum_ref, psq_ref, gamma_ref, inv_n)
    h_ref[...] = (y_ref[...] - mean) * scale + beta_ref[...]


def bn_apply_project_kernel(y_ref, psum_ref, psq_ref, gamma_ref, beta_ref,
                            w1n_ref, h_ref, xp_ref, xpb_ref, *, inv_n):
    mean, scale = _bn_stats(psum_ref, psq_ref, gamma_ref, inv_n)
    h = (y_ref[...] - mean) * scale + beta_ref[...]
    h_ref[...] = h
    # Fused next-layer projection: saves one HBM round trip of h + one call.
    xp = jnp.dot(h, w1n_ref[...], preferred_element_type=jnp.float32)
    xp_ref[...] = xp
    xpb_ref[...] = xp.astype(jnp.bfloat16)


def bn_apply(y, psum, psq, gamma, beta, n_real, tm, w1_next=None):
    n_pad, dim_pad = y.shape
    ni = n_pad // tm
    rows = psum.shape[0]
    inv_n = 1.0 / float(n_real)

    in_specs = [pl.BlockSpec((tm, dim_pad), lambda i: (i, 0)),
                pl.BlockSpec((rows, dim_pad), lambda i: (0, 0)),
                pl.BlockSpec((rows, dim_pad), lambda i: (0, 0)),
                pl.BlockSpec((1, dim_pad), lambda i: (0, 0)),
                pl.BlockSpec((1, dim_pad), lambda i: (0, 0))]
    args = [y, psum, psq, gamma, beta]
    working = (4 * tm * dim_pad * 4 + 2 * rows * dim_pad * 4
               + 4 * dim_pad * 4)

    if w1_next is None:
        kernel = functools.partial(bn_apply_kernel, inv_n=inv_n)
        out_shape = jax.ShapeDtypeStruct((n_pad, dim_pad), jnp.float32)
        out_specs = pl.BlockSpec((tm, dim_pad), lambda i: (i, 0))
    else:
        kernel = functools.partial(bn_apply_project_kernel, inv_n=inv_n)
        in_specs.append(pl.BlockSpec((dim_pad, dim_pad), lambda i: (0, 0)))
        args.append(w1_next)
        out_shape = (jax.ShapeDtypeStruct((n_pad, dim_pad), jnp.float32),
                     jax.ShapeDtypeStruct((n_pad, dim_pad), jnp.float32),
                     jax.ShapeDtypeStruct((n_pad, dim_pad), jnp.bfloat16))
        out_specs = (pl.BlockSpec((tm, dim_pad), lambda i: (i, 0)),
                     pl.BlockSpec((tm, dim_pad), lambda i: (i, 0)),
                     pl.BlockSpec((tm, dim_pad), lambda i: (i, 0)))
        working += dim_pad * dim_pad * 4 + 2 * tm * dim_pad * (4 + 2)

    return pl.pallas_call(
        kernel,
        out_shape=out_shape,
        grid_spec=pltpu.PrefetchScalarGridSpec(
            num_scalar_prefetch=0, grid=(ni,),
            in_specs=in_specs, out_specs=out_specs),
        compiler_params=pltpu.CompilerParams(
            dimension_semantics=("parallel",),
            vmem_limit_bytes=_vmem_limit(working)),
    )(*args)


# --------------------------------------------------------------------------
# Kernel 4: readout head (no jnp.concatenate)
#   pooled[:, l*dim:(l+1)*dim] += P_tile @ xs_l_tile   accumulated over nodes
#   z      = relu(pooled @ W_lin + b_lin)
#   logits = z @ W_fin + b_fin ; out = log_softmax over the real classes
# --------------------------------------------------------------------------
def gin_head_kernel(pool_ref, *refs, num_layers, num_classes, dim_pad):
    xs_refs = refs[:num_layers]
    wl_ref, bl_ref, wf_ref, bf_ref, out_ref, acc_ref = refs[num_layers:]

    k = pl.program_id(0)     # hoisted out of pl.when bodies (interpret-safe)
    nk = pl.num_programs(0)

    @pl.when(k == 0)
    def _():
        acc_ref[...] = jnp.zeros_like(acc_ref)

    p = pool_ref[...]
    for l in range(num_layers):
        acc_ref[:, l * dim_pad:(l + 1) * dim_pad] += jnp.dot(
            p, xs_refs[l][...], preferred_element_type=jnp.float32)

    @pl.when(k == nk - 1)
    def _():
        z = jnp.dot(acc_ref[...], wl_ref[...],
                    preferred_element_type=jnp.float32) + bl_ref[...]
        z = jnp.maximum(z, 0.0)
        logits = jnp.dot(z, wf_ref[...],
                         preferred_element_type=jnp.float32) + bf_ref[...]
        # Padded class lanes must not contribute to the softmax sum.
        col = lax.broadcasted_iota(jnp.int32, logits.shape, 1)
        logits = jnp.where(col < num_classes, logits, -1e30)
        m = jnp.max(logits, axis=-1, keepdims=True)
        s = logits - m
        lse = jnp.log(jnp.sum(jnp.exp(s), axis=-1, keepdims=True))
        out_ref[...] = s - lse


def gin_head(pool, xs, w_lin, b_lin, w_fin, b_fin, num_classes, th):
    g_pad, n_pad = pool.shape
    num_layers = len(xs)
    dim_pad = xs[0].shape[1]
    ldim = num_layers * dim_pad
    c_pad = w_fin.shape[1]
    nk = n_pad // th

    kernel = functools.partial(gin_head_kernel, num_layers=num_layers,
                               num_classes=num_classes, dim_pad=dim_pad)
    in_specs = ([pl.BlockSpec((g_pad, th), lambda k: (0, k))]
                + [pl.BlockSpec((th, dim_pad), lambda k: (k, 0))
                   for _ in range(num_layers)]
                + [pl.BlockSpec((ldim, dim_pad), lambda k: (0, 0)),
                   pl.BlockSpec((1, dim_pad), lambda k: (0, 0)),
                   pl.BlockSpec((dim_pad, c_pad), lambda k: (0, 0)),
                   pl.BlockSpec((1, c_pad), lambda k: (0, 0))])
    working = (2 * g_pad * th * 4 + 2 * num_layers * th * dim_pad * 4
               + ldim * dim_pad * 4 + dim_pad * c_pad * 4
               + g_pad * ldim * 4 + 2 * g_pad * c_pad * 4
               + dim_pad * 4 + c_pad * 4)
    return pl.pallas_call(
        kernel,
        out_shape=jax.ShapeDtypeStruct((g_pad, c_pad), jnp.float32),
        grid_spec=pltpu.PrefetchScalarGridSpec(
            num_scalar_prefetch=0, grid=(nk,),
            in_specs=in_specs,
            out_specs=pl.BlockSpec((g_pad, c_pad), lambda k: (0, 0)),
            scratch_shapes=[pltpu.VMEM((g_pad, ldim), jnp.float32)]),
        compiler_params=pltpu.CompilerParams(
            dimension_semantics=("arbitrary",),
            vmem_limit_bytes=_vmem_limit(working)),
    )(pool, *xs, w_lin, b_lin, w_fin, b_fin)


# --------------------------------------------------------------------------
# Parameter padding (layout plumbing only; padded lanes are zero / identity).
# --------------------------------------------------------------------------
def _pad_params(params, num_features, dim, f_pad, dim_pad, num_classes, c_pad):
    layers = []
    for i, layer in enumerate(params["layers"]):
        in_dim = layer["w1"].shape[0]
        in_pad = f_pad if i == 0 else dim_pad
        w1p = jnp.zeros((in_pad, dim_pad), jnp.float32).at[:in_dim, :dim].set(layer["w1"])
        w2p = jnp.zeros((dim_pad, dim_pad), jnp.float32).at[:dim, :dim].set(layer["w2"])
        b1p = jnp.zeros((1, dim_pad), jnp.float32).at[:, :dim].set(layer["b1"])
        b2p = jnp.zeros((1, dim_pad), jnp.float32).at[:, :dim].set(layer["b2"])
        gp = jnp.ones((1, dim_pad), jnp.float32).at[:, :dim].set(layer["gamma"])
        bp = jnp.zeros((1, dim_pad), jnp.float32).at[:, :dim].set(layer["beta"])
        layers.append((w1p, b1p, w2p, b2p, gp, bp))

    L = len(params["layers"])
    wl = params["w_lin"].reshape(L, dim, dim)
    wlp = (jnp.zeros((L, dim_pad, dim_pad), jnp.float32)
           .at[:, :dim, :dim].set(wl)).reshape(L * dim_pad, dim_pad)
    blp = jnp.zeros((1, dim_pad), jnp.float32).at[:, :dim].set(params["b_lin"])
    wfp = (jnp.zeros((dim_pad, c_pad), jnp.float32)
           .at[:dim, :num_classes].set(params["w_fin"]))
    bfp = jnp.zeros((1, c_pad), jnp.float32).at[:, :num_classes].set(params["b_fin"])
    return layers, wlp, blp, wfp, bfp


# --------------------------------------------------------------------------
# Full forward (glue in plain JAX, hot path in the Pallas kernels above)
# --------------------------------------------------------------------------
@functools.partial(jax.jit, static_argnames=("num_graphs",))
def gin_forward(params, x, edge_index, batch, num_graphs):
    n, f = x.shape
    dim = params["layers"][0]["w1"].shape[1]
    num_classes = params["w_fin"].shape[1]
    num_layers = len(params["layers"])

    f_pad = _round_up(f, 128)
    dim_pad = _round_up(dim, 128)
    c_pad = _round_up(num_classes, 128)
    g_pad = _round_up(num_graphs, 8)
    n_pad = _round_up(n, 128)
    tm, tk = _choose_tiles(n_pad)

    # Dense adjacency A[dst, src] += 1 (GINConv sums x_j over in-edges),
    # stored bf16 (edge multiplicities are small integers -> exact) so the
    # dominant NxN stream is half the bytes and a native-rate MXU operand.
    # TODO(synk): evaluate an fp8 (e4m3) adjacency on v7x.
    src, dst = edge_index[0], edge_index[1]
    adj = jnp.zeros((n_pad, n_pad), jnp.float32).at[dst, src].add(1.0)
    adj = adj.astype(jnp.bfloat16)

    # Pooling matrix P[g, n] = 1 iff node n belongs to graph g (zero-padded).
    pool = (batch[None, :] == jnp.arange(num_graphs)[:, None]).astype(jnp.float32)
    pool = jnp.zeros((g_pad, n_pad), jnp.float32).at[:num_graphs, :n].set(pool)

    layers_p, wlp, blp, wfp, bfp = _pad_params(params, f, dim, f_pad, dim_pad,
                                               num_classes, c_pad)

    h0 = jnp.zeros((n_pad, f_pad), jnp.float32).at[:n, :f].set(x)
    xp_f32, xp_bf16 = gin_project(h0, layers_p[0][0], tm)     # layer-0 x @ W1

    xs = []
    for l in range(num_layers):
        _, b1p, w2p, b2p, gp, bp = layers_p[l]
        y, psum, psq = gin_agg(adj, xp_bf16, xp_f32, b1p, w2p, b2p, n, tm, tk)
        if l + 1 < num_layers:
            w1_next = layers_p[l + 1][0]
            h, xp_f32, xp_bf16 = bn_apply(y, psum, psq, gp, bp, n, tm, w1_next)
        else:
            h = bn_apply(y, psum, psq, gp, bp, n, tm)
        xs.append(h)

    out_pad = gin_head(pool, xs, wlp, blp, wfp, bfp, num_classes, tm)
    return out_pad[:num_graphs, :num_classes]


# --------------------------------------------------------------------------
# Pure-JAX reference (faithful to the torch module). With quantize_agg=True it
# mirrors the kernel's bf16 operands on the A @ (x@W1) matmul so the check can
# stay tight without relying on bf16-vs-f32 rounding being negligible.
# --------------------------------------------------------------------------
def gin_reference(params, x, edge_index, batch, num_graphs, quantize_agg=False):
    n = x.shape[0]
    src, dst = edge_index[0], edge_index[1]
    adj = jnp.zeros((n, n), jnp.float32).at[dst, src].add(1.0)
    if quantize_agg:
        adj = adj.astype(jnp.bfloat16).astype(jnp.float32)
    pool = (batch[None, :] == jnp.arange(num_graphs)[:, None]).astype(jnp.float32)

    hp = jax.lax.Precision.HIGHEST
    xs = []
    h = x
    for layer in params["layers"]:
        xp = jnp.dot(h, layer["w1"], precision=hp)
        xp_src = xp.astype(jnp.bfloat16).astype(jnp.float32) if quantize_agg else xp
        agg = jnp.dot(adj, xp_src, precision=hp)
        t = jnp.maximum(agg + xp + layer["b1"], 0.0)
        t = jnp.dot(t, layer["w2"], precision=hp) + layer["b2"]
        t = jnp.maximum(t, 0.0)
        mean = t.mean(0, keepdims=True)
        var = ((t - mean) ** 2).mean(0, keepdims=True)
        h = (t - mean) / jnp.sqrt(var + _BN_EPS) * layer["gamma"] + layer["beta"]
        xs.append(h)

    pooled = jnp.concatenate([jnp.dot(pool, xi, precision=hp) for xi in xs], axis=1)
    z = jnp.maximum(jnp.dot(pooled, params["w_lin"], precision=hp) + params["b_lin"], 0.0)
    logits = jnp.dot(z, params["w_fin"], precision=hp) + params["b_fin"]
    return jax.nn.log_softmax(logits, axis=-1)


def init_params(key, num_features, num_classes, dim, num_gc_layers):
    params = {"layers": []}
    for i in range(num_gc_layers):
        in_dim = num_features if i == 0 else dim
        key, k1, k2 = jax.random.split(key, 3)
        params["layers"].append({
            "w1": 0.1 * jax.random.normal(k1, (in_dim, dim), jnp.float32),
            "b1": jnp.zeros((1, dim), jnp.float32),
            "w2": 0.1 * jax.random.normal(k2, (dim, dim), jnp.float32),
            "b2": jnp.zeros((1, dim), jnp.float32),
            "gamma": jnp.ones((1, dim), jnp.float32),
            "beta": jnp.zeros((1, dim), jnp.float32),
        })
    key, k3, k4 = jax.random.split(key, 3)
    params["w_lin"] = 0.1 * jax.random.normal(k3, (dim * num_gc_layers, dim), jnp.float32)
    params["b_lin"] = jnp.zeros((1, dim), jnp.float32)
    params["w_fin"] = 0.1 * jax.random.normal(k4, (dim, num_classes), jnp.float32)
    params["b_fin"] = jnp.zeros((1, num_classes), jnp.float32)
    return params


if __name__ == "__main__":
    num_features = 8
    num_classes = 4
    dim = 32
    num_gc_layers = 3
    num_nodes = 16
    num_graphs = 2
    num_edges = 40

    root = jax.random.PRNGKey(0)
    kp, kx, ke = jax.random.split(root, 3)

    params = init_params(kp, num_features, num_classes, dim, num_gc_layers)
    x = jax.random.normal(kx, (num_nodes, num_features), jnp.float32)
    edge_index = jax.random.randint(ke, (2, num_edges), 0, num_nodes, jnp.int32)
    batch = jnp.concatenate([
        jnp.zeros((num_nodes // 2,), jnp.int32),
        jnp.ones((num_nodes - num_nodes // 2,), jnp.int32),
    ])

    out = gin_forward(params, x, edge_index, batch, num_graphs)
    out = jax.block_until_ready(out)
    assert out.shape == (num_graphs, num_classes)

    # Correctness: compare against the reference that mirrors the kernel's
    # bf16 aggregation operands (adjacency counts exact; x@W1 rounded to bf16).
    ref_q = gin_reference(params, x, edge_index, batch, num_graphs,
                          quantize_agg=True)
    assert jnp.allclose(out, ref_q, atol=5e-2, rtol=5e-2), (out, ref_q)

    print("KERNEL_OK")
</pallas_src>

<mosaic_0001>
module attributes {stable_mosaic.version = 11 : i64} {
  func.func @gin_project_kernel(%arg0: i32, %arg1: memref<128x128xf32, #tpu.memory_space<vmem>>, %arg2: memref<128x128xf32, #tpu.memory_space<vmem>>, %arg3: memref<128x128xf32, #tpu.memory_space<vmem>>, %arg4: memref<128x128xbf16, #tpu.memory_space<vmem>>) attributes {dimension_semantics = [#tpu.dimension_semantics<parallel>], iteration_bounds = array<i64: 1>, scalar_prefetch = 0 : i64, scratch_operands = 0 : i64, tpu.core_type = #tpu.core_type<tc>, window_params = [{transform_indices = @transform_0, window_bounds = array<i64: 128, 128>}, {pipeline_mode = #tpu.pipeline_mode<synchronous>, transform_indices = @transform_1, window_bounds = array<i64: 128, 128>}, {transform_indices = @transform_2, window_bounds = array<i64: 128, 128>}, {transform_indices = @transform_3, window_bounds = array<i64: 128, 128>}]} {
    %c0 = arith.constant 0 : index
    %c0_0 = arith.constant 0 : index
    %0 = vector.load %arg1[%c0, %c0_0] : memref<128x128xf32, #tpu.memory_space<vmem>>, vector<128x128xf32>
    %c0_1 = arith.constant 0 : index
    %c0_2 = arith.constant 0 : index
    %1 = vector.load %arg2[%c0_1, %c0_2] : memref<128x128xf32, #tpu.memory_space<vmem>>, vector<128x128xf32>
    %cst = arith.constant dense<0.000000e+00> : vector<128x128xf32>
    %2 = tpu.matmul %0, %1, %cst {dimension_numbers = #tpu.dot_dimension_numbers<[1], [0], [0], [1], [0, 0, 1, 1], [], []>} : vector<128x128xf32>, vector<128x128xf32>, vector<128x128xf32> -> vector<128x128xf32>
    %c0_3 = arith.constant 0 : index
    %c0_4 = arith.constant 0 : index
    %3 = vector.load %arg3[%c0_3, %c0_4] : memref<128x128xf32, #tpu.memory_space<vmem>>, vector<128x128xf32>
    tpu.vector_store %arg3[%c0_3, %c0_4], %2 {strides = array<i32>} : memref<128x128xf32, #tpu.memory_space<vmem>>, vector<128x128xf32>,
    %4 = arith.truncf %2 : vector<128x128xf32> to vector<128x128xbf16>
    %c0_5 = arith.constant 0 : index
    %c0_6 = arith.constant 0 : index
    %5 = vector.load %arg4[%c0_5, %c0_6] : memref<128x128xbf16, #tpu.memory_space<vmem>>, vector<128x128xbf16>
    tpu.vector_store %arg4[%c0_5, %c0_6], %4 {strides = array<i32>} : memref<128x128xbf16, #tpu.memory_space<vmem>>, vector<128x128xbf16>,
    return
  }
  func.func @transform_0(%arg0: i32) -> (i32, i32) {
    %c0_i32 = arith.constant 0 : i32
    %c0_i32_0 = arith.constant 0 : i32
    return %arg0, %c0_i32 : i32, i32
  }
  func.func @transform_1(%arg0: i32) -> (i32, i32) {
    %c0_i32 = arith.constant 0 : i32
    %c0_i32_0 = arith.constant 0 : i32
    %c0_i32_1 = arith.constant 0 : i32
    return %c0_i32, %c0_i32_0 : i32, i32
  }
  func.func @transform_2(%arg0: i32) -> (i32, i32) {
    %c0_i32 = arith.constant 0 : i32
    %c0_i32_0 = arith.constant 0 : i32
    return %arg0, %c0_i32 : i32, i32
  }
  func.func @transform_3(%arg0: i32) -> (i32, i32) {
    %c0_i32 = arith.constant 0 : i32
    %c0_i32_0 = arith.constant 0 : i32
    return %arg0, %c0_i32 : i32, i32
  }
}

module attributes {stable_mosaic.version = 11 : i64} {
  func.func @gin_agg_kernel(%arg0: i32, %arg1: i32, %arg2: memref<128x128xbf16, #tpu.memory_space<vmem>>, %arg3: memref<128x128xbf16, #tpu.memory_space<vmem>>, %arg4: memref<128x128xf32, #tpu.memory_space<vmem>>, %arg5: memref<1x128xf32, #tpu.memory_space<vmem>>, %arg6: memref<128x128xf32, #tpu.memory_space<vmem>>, %arg7: memref<1x128xf32, #tpu.memory_space<vmem>>, %arg8: memref<128x128xf32, #tpu.memory_space<vmem>>, %arg9: memref<8x128xf32, #tpu.memory_space<vmem>>, %arg10: memref<8x128xf32, #tpu.memory_space<vmem>>, %arg11: memref<128x128xf32, #tpu.memory_space<vmem>>) attributes {dimension_semantics = [#tpu.dimension_semantics<parallel>, #tpu.dimension_semantics<arbitrary>], iteration_bounds = array<i64: 1, 1>, scalar_prefetch = 0 : i64, scratch_operands = 1 : i64, tpu.core_type = #tpu.core_type<tc>, window_params = [{transform_indices = @transform_0, window_bounds = array<i64: 128, 128>}, {pipeline_mode = #tpu.pipeline_mode<synchronous>, transform_indices = @transform_1, window_bounds = array<i64: 128, 128>}, {transform_indices = @transform_2, window_bounds = array<i64: 128, 128>}, {pipeline_mode = #tpu.pipeline_mode<synchronous>, transform_indices = @transform_3, window_bounds = array<i64: 1, 128>}, {pipeline_mode = #tpu.pipeline_mode<synchronous>, transform_indices = @transform_4, window_bounds = array<i64: 128, 128>}, {pipeline_mode = #tpu.pipeline_mode<synchronous>, transform_indices = @transform_5, window_bounds = array<i64: 1, 128>}, {transform_indices = @transform_6, window_bounds = array<i64: 128, 128>}, {transform_indices = @transform_7, window_bounds = array<i64: 8, 128>}, {transform_indices = @transform_8, window_bounds = array<i64: 8, 128>}]} {
    %c0_i32 = arith.constant 0 : i32
    %0 = arith.cmpi eq, %arg1, %c0_i32 : i32
    %1 = arith.extui %0 : i1 to i32
    %c0_i32_0 = arith.constant 0 : i32
    %2 = arith.cmpi ne, %1, %c0_i32_0 : i32
    scf.if %2 {
      %cst_9 = arith.constant 0.000000e+00 : f32
      %14 = vector.broadcast %cst_9 : f32 to vector<128x128xf32>
      %c0_10 = arith.constant 0 : index
      %c0_11 = arith.constant 0 : index
      %15 = vector.load %arg11[%c0_10, %c0_11] : memref<128x128xf32, #tpu.memory_space<vmem>>, vector<128x128xf32>
      tpu.vector_store %arg11[%c0_10, %c0_11], %14 {strides = array<i32>} : memref<128x128xf32, #tpu.memory_space<vmem>>, vector<128x128xf32>,
    } else {
    }
    %c128_i32 = arith.constant 128 : i32
    %3 = arith.muli %arg1, %c128_i32 : i32
    %4 = arith.index_cast %3 : i32 to index
    %c0 = arith.constant 0 : index
    %5 = vector.load %arg3[%4, %c0] : memref<128x128xbf16, #tpu.memory_space<vmem>>, vector<128x128xbf16>
    %c0_1 = arith.constant 0 : index
    %c0_2 = arith.constant 0 : index
    %6 = vector.load %arg11[%c0_1, %c0_2] : memref<128x128xf32, #tpu.memory_space<vmem>>, vector<128x128xf32>
    %c0_3 = arith.constant 0 : index
    %c0_4 = arith.constant 0 : index
    %7 = vector.load %arg2[%c0_3, %c0_4] : memref<128x128xbf16, #tpu.memory_space<vmem>>, vector<128x128xbf16>
    %cst = arith.constant dense<0.000000e+00> : vector<128x128xf32>
    %8 = tpu.matmul %7, %5, %cst {dimension_numbers = #tpu.dot_dimension_numbers<[1], [0], [0], [1], [0, 0, 1, 1], [], []>} : vector<128x128xbf16>, vector<128x128xbf16>, vector<128x128xf32> -> vector<128x128xf32>
    %9 = arith.addf %6, %8 : vector<128x128xf32>
    %c0_5 = arith.constant 0 : index
    %c0_6 = arith.constant 0 : index
    %10 = vector.load %arg11[%c0_5, %c0_6] : memref<128x128xf32, #tpu.memory_space<vmem>>, vector<128x128xf32>
    tpu.vector_store %arg11[%c0_5, %c0_6], %9 {strides = array<i32>} : memref<128x128xf32, #tpu.memory_space<vmem>>, vector<128x128xf32>,
    %c0_i32_7 = arith.constant 0 : i32
    %11 = arith.cmpi eq, %arg1, %c0_i32_7 : i32
    %12 = arith.extui %11 : i1 to i32
    %c0_i32_8 = arith.constant 0 : i32
    %13 = arith.cmpi ne, %12, %c0_i32_8 : i32
    scf.if %13 {
      %c0_9 = arith.constant 0 : index
      %c0_10 = arith.constant 0 : index
      %14 = vector.load %arg11[%c0_9, %c0_10] : memref<128x128xf32, #tpu.memory_space<vmem>>, vector<128x128xf32>
      %c0_11 = arith.constant 0 : index
      %c0_12 = arith.constant 0 : index
      %15 = vector.load %arg4[%c0_11, %c0_12] : memref<128x128xf32, #tpu.memory_space<vmem>>, vector<128x128xf32>
      %16 = arith.addf %14, %15 : vector<128x128xf32>
      %c0_13 = arith.constant 0 : index
      %c0_14 = arith.constant 0 : index
      %17 = vector.load %arg5[%c0_13, %c0_14] : memref<1x128xf32, #tpu.memory_space<vmem>>, vector<1x128xf32>
      %18 = vector.broadcast %17 : vector<1x128xf32> to vector<128x128xf32>
      %19 = arith.addf %16, %18 : vector<128x128xf32>
      %cst_15 = arith.constant 0.000000e+00 : f32
      %20 = vector.broadcast %cst_15 : f32 to vector<128x128xf32>
      %21 = arith.maximumf %19, %20 : vector<128x128xf32>
      %c0_16 = arith.constant 0 : index
      %c0_17 = arith.constant 0 : index
      %22 = vector.load %arg6[%c0_16, %c0_17] : memref<128x128xf32, #tpu.memory_space<vmem>>, vector<128x128xf32>
      %cst_18 = arith.constant dense<0.000000e+00> : vector<128x128xf32>
      %23 = tpu.matmul %21, %22, %cst_18 {dimension_numbers = #tpu.dot_dimension_numbers<[1], [0], [0], [1], [0, 0, 1, 1], [], []>} : vector<128x128xf32>, vector<128x128xf32>, vector<128x128xf32> -> vector<128x128xf32>
      %c0_19 = arith.constant 0 : index
      %c0_20 = arith.constant 0 : index
      %24 = vector.load %arg7[%c0_19, %c0_20] : memref<1x128xf32, #tpu.memory_space<vmem>>, vector<1x128xf32>
      %25 = vector.broadcast %24 : vector<1x128xf32> to vector<128x128xf32>
      %26 = arith.addf %23, %25 : vector<128x128xf32>
      %cst_21 = arith.constant 0.000000e+00 : f32
      %27 = vector.broadcast %cst_21 : f32 to vector<128x128xf32>
      %28 = arith.maximumf %26, %27 : vector<128x128xf32>
      %c128_i32_22 = arith.constant 128 : i32
      %29 = arith.muli %arg0, %c128_i32_22 : i32
      %30 = tpu.iota {dimensions = array<i32: 0>} : vector<128x128xi32>
      %31 = vector.broadcast %29 : i32 to vector<128x128xi32>
      %32 = arith.addi %31, %30 : vector<128x128xi32>
      %c16_i32 = arith.constant 16 : i32
      %33 = vector.broadcast %c16_i32 : i32 to vector<128x128xi32>
      %34 = arith.cmpi slt, %32, %33 : vector<128x128xi32>
      %cst_23 = arith.constant 0.000000e+00 : f32
      %35 = vector.broadcast %cst_23 : f32 to vector<128x128xf32>
      %36 = arith.select %34, %28, %35 : vector<128x128xi1>, vector<128x128xf32>
      %c0_24 = arith.constant 0 : index
      %c0_25 = arith.constant 0 : index
      %37 = vector.load %arg8[%c0_24, %c0_25] : memref<128x128xf32, #tpu.memory_space<vmem>>, vector<128x128xf32>
      tpu.vector_store %arg8[%c0_24, %c0_25], %36 {strides = array<i32>} : memref<128x128xf32, #tpu.memory_space<vmem>>, vector<128x128xf32>,
      %cst_26 = arith.constant 0.000000e+00 : f32
      %38 = vector.broadcast %cst_26 : f32 to vector<8x128xf32>
      %c0_27 = arith.constant 0 : index
      %c0_28 = arith.constant 0 : index
      %39 = vector.load %arg9[%c0_27, %c0_28] : memref<8x128xf32, #tpu.memory_space<vmem>>, vector<8x128xf32>
      tpu.vector_store %arg9[%c0_27, %c0_28], %38 {strides = array<i32>} : memref<8x128xf32, #tpu.memory_space<vmem>>, vector<8x128xf32>,
      %cst_29 = arith.constant 0.000000e+00 : f32
      %40 = vector.broadcast %cst_29 : f32 to vector<8x128xf32>
      %c0_30 = arith.constant 0 : index
      %c0_31 = arith.constant 0 : index
      %41 = vector.load %arg10[%c0_30, %c0_31] : memref<8x128xf32, #tpu.memory_space<vmem>>, vector<8x128xf32>
      tpu.vector_store %arg10[%c0_30, %c0_31], %40 {strides = array<i32>} : memref<8x128xf32, #tpu.memory_space<vmem>>, vector<8x128xf32>,
      %cst_32 = arith.constant dense<0.000000e+00> : vector<128xf32>
      %42 = vector.multi_reduction <add>, %36, %cst_32 [0] : vector<128x128xf32> to vector<128xf32>
      %43 = vector.shape_cast %42 : vector<128xf32> to vector<1x128xf32>
      %c0_33 = arith.constant 0 : index
      %c0_34 = arith.constant 0 : index
      %44 = vector.load %arg9[%c0_33, %c0_34] : memref<8x128xf32, #tpu.memory_space<vmem>>, vector<1x128xf32>
      tpu.vector_store %arg9[%c0_33, %c0_34], %43 {strides = array<i32>} : memref<8x128xf32, #tpu.memory_space<vmem>>, vector<1x128xf32>,
      %45 = arith.mulf %36, %36 : vector<128x128xf32>
      %cst_35 = arith.constant dense<0.000000e+00> : vector<128xf32>
      %46 = vector.multi_reduction <add>, %45, %cst_35 [0] : vector<128x128xf32> to vector<128xf32>
      %47 = vector.shape_cast %46 : vector<128xf32> to vector<1x128xf32>
      %c0_36 = arith.constant 0 : index
      %c0_37 = arith.constant 0 : index
      %48 = vector.load %arg10[%c0_36, %c0_37] : memref<8x128xf32, #tpu.memory_space<vmem>>, vector<1x128xf32>
      tpu.vector_store %arg10[%c0_36, %c0_37], %47 {strides = array<i32>} : memref<8x128xf32, #tpu.memory_space<vmem>>, vector<1x128xf32>,
    } else {
    }
    return
  }
  func.func @transform_0(%arg0: i32, %arg1: i32) -> (i32, i32) {
    %c0_i32 = arith.constant 0 : i32
    return %arg0, %arg1 : i32, i32
  }
  func.func @transform_1(%arg0: i32, %arg1: i32) -> (i32, i32) {
    %c0_i32 = arith.constant 0 : i32
    %c0_i32_0 = arith.constant 0 : i32
    %c0_i32_1 = arith.constant 0 : i32
    return %c0_i32, %c0_i32_0 : i32, i32
  }
  func.func @transform_2(%arg0: i32, %arg1: i32) -> (i32, i32) {
    %c0_i32 = arith.constant 0 : i32
    %c0_i32_0 = arith.constant 0 : i32
    return %arg0, %c0_i32 : i32, i32
  }
  func.func @transform_3(%arg0: i32, %arg1: i32) -> (i32, i32) {
    %c0_i32 = arith.constant 0 : i32
    %c0_i32_0 = arith.constant 0 : i32
    %c0_i32_1 = arith.constant 0 : i32
    return %c0_i32, %c0_i32_0 : i32, i32
  }
  func.func @transform_4(%arg0: i32, %arg1: i32) -> (i32, i32) {
    %c0_i32 = arith.constant 0 : i32
    %c0_i32_0 = arith.constant 0 : i32
    %c0_i32_1 = arith.constant 0 : i32
    return %c0_i32, %c0_i32_0 : i32, i32
  }
  func.func @transform_5(%arg0: i32, %arg1: i32) -> (i32, i32) {
    %c0_i32 = arith.constant 0 : i32
    %c0_i32_0 = arith.constant 0 : i32
    %c0_i32_1 = arith.constant 0 : i32
    return %c0_i32, %c0_i32_0 : i32, i32
  }
  func.func @transform_6(%arg0: i32, %arg1: i32) -> (i32, i32) {
    %c0_i32 = arith.constant 0 : i32
    %c0_i32_0 = arith.constant 0 : i32
    return %arg0, %c0_i32 : i32, i32
  }
  func.func @transform_7(%arg0: i32, %arg1: i32) -> (i32, i32) {
    %c0_i32 = arith.constant 0 : i32
    %c0_i32_0 = arith.constant 0 : i32
    return %arg0, %c0_i32 : i32, i32
  }
  func.func @transform_8(%arg0: i32, %arg1: i32) -> (i32, i32) {
    %c0_i32 = arith.constant 0 : i32
    %c0_i32_0 = arith.constant 0 : i32
    return %arg0, %c0_i32 : i32, i32
  }
}

module attributes {stable_mosaic.version = 11 : i64} {
  func.func @bn_apply_project_kernel(%arg0: i32, %arg1: memref<128x128xf32, #tpu.memory_space<vmem>>, %arg2: memref<8x128xf32, #tpu.memory_space<vmem>>, %arg3: memref<8x128xf32, #tpu.memory_space<vmem>>, %arg4: memref<1x128xf32, #tpu.memory_space<vmem>>, %arg5: memref<1x128xf32, #tpu.memory_space<vmem>>, %arg6: memref<128x128xf32, #tpu.memory_space<vmem>>, %arg7: memref<128x128xf32, #tpu.memory_space<vmem>>, %arg8: memref<128x128xf32, #tpu.memory_space<vmem>>, %arg9: memref<128x128xbf16, #tpu.memory_space<vmem>>) attributes {dimension_semantics = [#tpu.dimension_semantics<parallel>], iteration_bounds = array<i64: 1>, scalar_prefetch = 0 : i64, scratch_operands = 0 : i64, tpu.core_type = #tpu.core_type<tc>, window_params = [{transform_indices = @transform_0, window_bounds = array<i64: 128, 128>}, {pipeline_mode = #tpu.pipeline_mode<synchronous>, transform_indices = @transform_1, window_bounds = array<i64: 8, 128>}, {pipeline_mode = #tpu.pipeline_mode<synchronous>, transform_indices = @transform_2, window_bounds = array<i64: 8, 128>}, {pipeline_mode = #tpu.pipeline_mode<synchronous>, transform_indices = @transform_3, window_bounds = array<i64: 1, 128>}, {pipeline_mode = #tpu.pipeline_mode<synchronous>, transform_indices = @transform_4, window_bounds = array<i64: 1, 128>}, {pipeline_mode = #tpu.pipeline_mode<synchronous>, transform_indices = @transform_5, window_bounds = array<i64: 128, 128>}, {transform_indices = @transform_6, window_bounds = array<i64: 128, 128>}, {transform_indices = @transform_7, window_bounds = array<i64: 128, 128>}, {transform_indices = @transform_8, window_bounds = array<i64: 128, 128>}]} {
    %c0 = arith.constant 0 : index
    %c0_0 = arith.constant 0 : index
    %0 = vector.load %arg2[%c0, %c0_0] : memref<8x128xf32, #tpu.memory_space<vmem>>, vector<8x128xf32>
    %cst = arith.constant dense<0.000000e+00> : vector<128xf32>
    %1 = vector.multi_reduction <add>, %0, %cst [0] : vector<8x128xf32> to vector<128xf32>
    %2 = vector.shape_cast %1 : vector<128xf32> to vector<1x128xf32>
    %cst_1 = arith.constant 6.250000e-02 : f32
    %3 = vector.broadcast %cst_1 : f32 to vector<1x128xf32>
    %4 = arith.mulf %2, %3 : vector<1x128xf32>
    %c0_2 = arith.constant 0 : index
    %c0_3 = arith.constant 0 : index
    %5 = vector.load %arg3[%c0_2, %c0_3] : memref<8x128xf32, #tpu.memory_space<vmem>>, vector<8x128xf32>
    %cst_4 = arith.constant dense<0.000000e+00> : vector<128xf32>
    %6 = vector.multi_reduction <add>, %5, %cst_4 [0] : vector<8x128xf32> to vector<128xf32>
    %7 = vector.shape_cast %6 : vector<128xf32> to vector<1x128xf32>
    %cst_5 = arith.constant 6.250000e-02 : f32
    %8 = vector.broadcast %cst_5 : f32 to vector<1x128xf32>
    %9 = arith.mulf %7, %8 : vector<1x128xf32>
    %10 = arith.mulf %4, %4 : vector<1x128xf32>
    %11 = arith.subf %9, %10 : vector<1x128xf32>
    %cst_6 = arith.constant 9.99999974E-6 : f32
    %12 = vector.broadcast %cst_6 : f32 to vector<1x128xf32>
    %13 = arith.addf %11, %12 : vector<1x128xf32>
    %14 = math.rsqrt %13 : vector<1x128xf32>
    %c0_7 = arith.constant 0 : index
    %c0_8 = arith.constant 0 : index
    %15 = vector.load %arg4[%c0_7, %c0_8] : memref<1x128xf32, #tpu.memory_space<vmem>>, vector<1x128xf32>
    %16 = arith.mulf %14, %15 : vector<1x128xf32>
    %c0_9 = arith.constant 0 : index
    %c0_10 = arith.constant 0 : index
    %17 = vector.load %arg1[%c0_9, %c0_10] : memref<128x128xf32, #tpu.memory_space<vmem>>, vector<128x128xf32>
    %18 = vector.broadcast %4 : vector<1x128xf32> to vector<128x128xf32>
    %19 = arith.subf %17, %18 : vector<128x128xf32>
    %20 = vector.broadcast %16 : vector<1x128xf32> to vector<128x128xf32>
    %21 = arith.mulf %19, %20 : vector<128x128xf32>
    %c0_11 = arith.constant 0 : index
    %c0_12 = arith.constant 0 : index
    %22 = vector.load %arg5[%c0_11, %c0_12] : memref<1x128xf32, #tpu.memory_space<vmem>>, vector<1x128xf32>
    %23 = vector.broadcast %22 : vector<1x128xf32> to vector<128x128xf32>
    %24 = arith.addf %21, %23 : vector<128x128xf32>
    %c0_13 = arith.constant 0 : index
    %c0_14 = arith.constant 0 : index
    %25 = vector.load %arg7[%c0_13, %c0_14] : memref<128x128xf32, #tpu.memory_space<vmem>>, vector<128x128xf32>
    tpu.vector_store %arg7[%c0_13, %c0_14], %24 {strides = array<i32>} : memref<128x128xf32, #tpu.memory_space<vmem>>, vector<128x128xf32>,
    %c0_15 = arith.constant 0 : index
    %c0_16 = arith.constant 0 : index
    %26 = vector.load %arg6[%c0_15, %c0_16] : memref<128x128xf32, #tpu.memory_space<vmem>>, vector<128x128xf32>
    %cst_17 = arith.constant dense<0.000000e+00> : vector<128x128xf32>
    %27 = tpu.matmul %24, %26, %cst_17 {dimension_numbers = #tpu.dot_dimension_numbers<[1], [0], [0], [1], [0, 0, 1, 1], [], []>} : vector<128x128xf32>, vector<128x128xf32>, vector<128x128xf32> -> vector<128x128xf32>
    %c0_18 = arith.constant 0 : index
    %c0_19 = arith.constant 0 : index
    %28 = vector.load %arg8[%c0_18, %c0_19] : memref<128x128xf32, #tpu.memory_space<vmem>>, vector<128x128xf32>
    tpu.vector_store %arg8[%c0_18, %c0_19], %27 {strides = array<i32>} : memref<128x128xf32, #tpu.memory_space<vmem>>, vector<128x128xf32>,
    %29 = arith.truncf %27 : vector<128x128xf32> to vector<128x128xbf16>
    %c0_20 = arith.constant 0 : index
    %c0_21 = arith.constant 0 : index
    %30 = vector.load %arg9[%c0_20, %c0_21] : memref<128x128xbf16, #tpu.memory_space<vmem>>, vector<128x128xbf16>
    tpu.vector_store %arg9[%c0_20, %c0_21], %29 {strides = array<i32>} : memref<128x128xbf16, #tpu.memory_space<vmem>>, vector<128x128xbf16>,
    return
  }
  func.func @transform_0(%arg0: i32) -> (i32, i32) {
    %c0_i32 = arith.constant 0 : i32
    %c0_i32_0 = arith.constant 0 : i32
    return %arg0, %c0_i32 : i32, i32
  }
  func.func @transform_1(%arg0: i32) -> (i32, i32) {
    %c0_i32 = arith.constant 0 : i32
    %c0_i32_0 = arith.constant 0 : i32
    %c0_i32_1 = arith.constant 0 : i32
    return %c0_i32, %c0_i32_0 : i32, i32
  }
  func.func @transform_2(%arg0: i32) -> (i32, i32) {
    %c0_i32 = arith.constant 0 : i32
    %c0_i32_0 = arith.constant 0 : i32
    %c0_i32_1 = arith.constant 0 : i32
    return %c0_i32, %c0_i32_0 : i32, i32
  }
  func.func @transform_3(%arg0: i32) -> (i32, i32) {
    %c0_i32 = arith.constant 0 : i32
    %c0_i32_0 = arith.constant 0 : i32
    %c0_i32_1 = arith.constant 0 : i32
    return %c0_i32, %c0_i32_0 : i32, i32
  }
  func.func @transform_4(%arg0: i32) -> (i32, i32) {
    %c0_i32 = arith.constant 0 : i32
    %c0_i32_0 = arith.constant 0 : i32
    %c0_i32_1 = arith.constant 0 : i32
    return %c0_i32, %c0_i32_0 : i32, i32
  }
  func.func @transform_5(%arg0: i32) -> (i32, i32) {
    %c0_i32 = arith.constant 0 : i32
    %c0_i32_0 = arith.constant 0 : i32
    %c0_i32_1 = arith.constant 0 : i32
    return %c0_i32, %c0_i32_0 : i32, i32
  }
  func.func @transform_6(%arg0: i32) -> (i32, i32) {
    %c0_i32 = arith.constant 0 : i32
    %c0_i32_0 = arith.constant 0 : i32
    return %arg0, %c0_i32 : i32, i32
  }
  func.func @transform_7(%arg0: i32) -> (i32, i32) {
    %c0_i32 = arith.constant 0 : i32
    %c0_i32_0 = arith.constant 0 : i32
    return %arg0, %c0_i32 : i32, i32
  }
  func.func @transform_8(%arg0: i32) -> (i32, i32) {
    %c0_i32 = arith.constant 0 : i32
    %c0_i32_0 = arith.constant 0 : i32
    return %arg0, %c0_i32 : i32, i32
  }
}

module attributes {stable_mosaic.version = 11 : i64} {
  func.func @bn_apply_kernel(%arg0: i32, %arg1: memref<128x128xf32, #tpu.memory_space<vmem>>, %arg2: memref<8x128xf32, #tpu.memory_space<vmem>>, %arg3: memref<8x128xf32, #tpu.memory_space<vmem>>, %arg4: memref<1x128xf32, #tpu.memory_space<vmem>>, %arg5: memref<1x128xf32, #tpu.memory_space<vmem>>, %arg6: memref<128x128xf32, #tpu.memory_space<vmem>>) attributes {dimension_semantics = [#tpu.dimension_semantics<parallel>], iteration_bounds = array<i64: 1>, scalar_prefetch = 0 : i64, scratch_operands = 0 : i64, tpu.core_type = #tpu.core_type<tc>, window_params = [{transform_indices = @transform_0, window_bounds = array<i64: 128, 128>}, {pipeline_mode = #tpu.pipeline_mode<synchronous>, transform_indices = @transform_1, window_bounds = array<i64: 8, 128>}, {pipeline_mode = #tpu.pipeline_mode<synchronous>, transform_indices = @transform_2, window_bounds = array<i64: 8, 128>}, {pipeline_mode = #tpu.pipeline_mode<synchronous>, transform_indices = @transform_3, window_bounds = array<i64: 1, 128>}, {pipeline_mode = #tpu.pipeline_mode<synchronous>, transform_indices = @transform_4, window_bounds = array<i64: 1, 128>}, {transform_indices = @transform_5, window_bounds = array<i64: 128, 128>}]} {
    %c0 = arith.constant 0 : index
    %c0_0 = arith.constant 0 : index
    %0 = vector.load %arg2[%c0, %c0_0] : memref<8x128xf32, #tpu.memory_space<vmem>>, vector<8x128xf32>
    %cst = arith.constant dense<0.000000e+00> : vector<128xf32>
    %1 = vector.multi_reduction <add>, %0, %cst [0] : vector<8x128xf32> to vector<128xf32>
    %2 = vector.shape_cast %1 : vector<128xf32> to vector<1x128xf32>
    %cst_1 = arith.constant 6.250000e-02 : f32
    %3 = vector.broadcast %cst_1 : f32 to vector<1x128xf32>
    %4 = arith.mulf %2, %3 : vector<1x128xf32>
    %c0_2 = arith.constant 0 : index
    %c0_3 = arith.constant 0 : index
    %5 = vector.load %arg3[%c0_2, %c0_3] : memref<8x128xf32, #tpu.memory_space<vmem>>, vector<8x128xf32>
    %cst_4 = arith.constant dense<0.000000e+00> : vector<128xf32>
    %6 = vector.multi_reduction <add>, %5, %cst_4 [0] : vector<8x128xf32> to vector<128xf32>
    %7 = vector.shape_cast %6 : vector<128xf32> to vector<1x128xf32>
    %cst_5 = arith.constant 6.250000e-02 : f32
    %8 = vector.broadcast %cst_5 : f32 to vector<1x128xf32>
    %9 = arith.mulf %7, %8 : vector<1x128xf32>
    %10 = arith.mulf %4, %4 : vector<1x128xf32>
    %11 = arith.subf %9, %10 : vector<1x128xf32>
    %cst_6 = arith.constant 9.99999974E-6 : f32
    %12 = vector.broadcast %cst_6 : f32 to vector<1x128xf32>
    %13 = arith.addf %11, %12 : vector<1x128xf32>
    %14 = math.rsqrt %13 : vector<1x128xf32>
    %c0_7 = arith.constant 0 : index
    %c0_8 = arith.constant 0 : index
    %15 = vector.load %arg4[%c0_7, %c0_8] : memref<1x128xf32, #tpu.memory_space<vmem>>, vector<1x128xf32>
    %16 = arith.mulf %14, %15 : vector<1x128xf32>
    %c0_9 = arith.constant 0 : index
    %c0_10 = arith.constant 0 : index
    %17 = vector.load %arg1[%c0_9, %c0_10] : memref<128x128xf32, #tpu.memory_space<vmem>>, vector<128x128xf32>
    %18 = vector.broadcast %4 : vector<1x128xf32> to vector<128x128xf32>
    %19 = arith.subf %17, %18 : vector<128x128xf32>
    %20 = vector.broadcast %16 : vector<1x128xf32> to vector<128x128xf32>
    %21 = arith.mulf %19, %20 : vector<128x128xf32>
    %c0_11 = arith.constant 0 : index
    %c0_12 = arith.constant 0 : index
    %22 = vector.load %arg5[%c0_11, %c0_12] : memref<1x128xf32, #tpu.memory_space<vmem>>, vector<1x128xf32>
    %23 = vector.broadcast %22 : vector<1x128xf32> to vector<128x128xf32>
    %24 = arith.addf %21, %23 : vector<128x128xf32>
    %c0_13 = arith.constant 0 : index
    %c0_14 = arith.constant 0 : index
    %25 = vector.load %arg6[%c0_13, %c0_14] : memref<128x128xf32, #tpu.memory_space<vmem>>, vector<128x128xf32>
    tpu.vector_store %arg6[%c0_13, %c0_14], %24 {strides = array<i32>} : memref<128x128xf32, #tpu.memory_space<vmem>>, vector<128x128xf32>,
    return
  }
  func.func @transform_0(%arg0: i32) -> (i32, i32) {
    %c0_i32 = arith.constant 0 : i32
    %c0_i32_0 = arith.constant 0 : i32
    return %arg0, %c0_i32 : i32, i32
  }
  func.func @transform_1(%arg0: i32) -> (i32, i32) {
    %c0_i32 = arith.constant 0 : i32
    %c0_i32_0 = arith.constant 0 : i32
    %c0_i32_1 = arith.constant 0 : i32
    return %c0_i32, %c0_i32_0 : i32, i32
  }
  func.func @transform_2(%arg0: i32) -> (i32, i32) {
    %c0_i32 = arith.constant 0 : i32
    %c0_i32_0 = arith.constant 0 : i32
    %c0_i32_1 = arith.constant 0 : i32
    return %c0_i32, %c0_i32_0 : i32, i32
  }
  func.func @transform_3(%arg0: i32) -> (i32, i32) {
    %c0_i32 = arith.constant 0 : i32
    %c0_i32_0 = arith.constant 0 : i32
    %c0_i32_1 = arith.constant 0 : i32
    return %c0_i32, %c0_i32_0 : i32, i32
  }
  func.func @transform_4(%arg0: i32) -> (i32, i32) {
    %c0_i32 = arith.constant 0 : i32
    %c0_i32_0 = arith.constant 0 : i32
    %c0_i32_1 = arith.constant 0 : i32
    return %c0_i32, %c0_i32_0 : i32, i32
  }
  func.func @transform_5(%arg0: i32) -> (i32, i32) {
    %c0_i32 = arith.constant 0 : i32
    %c0_i32_0 = arith.constant 0 : i32
    return %arg0, %c0_i32 : i32, i32
  }
}

module attributes {stable_mosaic.version = 11 : i64} {
  func.func @gin_head_kernel(%arg0: i32, %arg1: memref<8x128xf32, #tpu.memory_space<vmem>>, %arg2: memref<128x128xf32, #tpu.memory_space<vmem>>, %arg3: memref<128x128xf32, #tpu.memory_space<vmem>>, %arg4: memref<128x128xf32, #tpu.memory_space<vmem>>, %arg5: memref<384x128xf32, #tpu.memory_space<vmem>>, %arg6: memref<1x128xf32, #tpu.memory_space<vmem>>, %arg7: memref<128x128xf32, #tpu.memory_space<vmem>>, %arg8: memref<1x128xf32, #tpu.memory_space<vmem>>, %arg9: memref<8x128xf32, #tpu.memory_space<vmem>>, %arg10: memref<8x384xf32, #tpu.memory_space<vmem>>) attributes {dimension_semantics = [#tpu.dimension_semantics<arbitrary>], iteration_bounds = array<i64: 1>, scalar_prefetch = 0 : i64, scratch_operands = 1 : i64, tpu.core_type = #tpu.core_type<tc>, window_params = [{transform_indices = @transform_0, window_bounds = array<i64: 8, 128>}, {transform_indices = @transform_1, window_bounds = array<i64: 128, 128>}, {transform_indices = @transform_2, window_bounds = array<i64: 128, 128>}, {transform_indices = @transform_3, window_bounds = array<i64: 128, 128>}, {pipeline_mode = #tpu.pipeline_mode<synchronous>, transform_indices = @transform_4, window_bounds = array<i64: 384, 128>}, {pipeline_mode = #tpu.pipeline_mode<synchronous>, transform_indices = @transform_5, window_bounds = array<i64: 1, 128>}, {pipeline_mode = #tpu.pipeline_mode<synchronous>, transform_indices = @transform_6, window_bounds = array<i64: 128, 128>}, {pipeline_mode = #tpu.pipeline_mode<synchronous>, transform_indices = @transform_7, window_bounds = array<i64: 1, 128>}, {pipeline_mode = #tpu.pipeline_mode<synchronous>, transform_indices = @transform_8, window_bounds = array<i64: 8, 128>}]} {
    %c0_i32 = arith.constant 0 : i32
    %0 = arith.cmpi eq, %arg0, %c0_i32 : i32
    %1 = arith.extui %0 : i1 to i32
    %c0_i32_0 = arith.constant 0 : i32
    %2 = arith.cmpi ne, %1, %c0_i32_0 : i32
    scf.if %2 {
      %cst_22 = arith.constant 0.000000e+00 : f32
      %22 = vector.broadcast %cst_22 : f32 to vector<8x384xf32>
      %c0_23 = arith.constant 0 : index
      %c0_24 = arith.constant 0 : index
      %23 = vector.load %arg10[%c0_23, %c0_24] : memref<8x384xf32, #tpu.memory_space<vmem>>, vector<8x384xf32>
      tpu.vector_store %arg10[%c0_23, %c0_24], %22 {strides = array<i32>} : memref<8x384xf32, #tpu.memory_space<vmem>>, vector<8x384xf32>,
    } else {
    }
    %c0 = arith.constant 0 : index
    %c0_1 = arith.constant 0 : index
    %3 = vector.load %arg1[%c0, %c0_1] : memref<8x128xf32, #tpu.memory_space<vmem>>, vector<8x128xf32>
    %c0_2 = arith.constant 0 : index
    %c0_3 = arith.constant 0 : index
    %4 = vector.load %arg10[%c0_2, %c0_3] : memref<8x384xf32, #tpu.memory_space<vmem>>, vector<8x128xf32>
    %c0_4 = arith.constant 0 : index
    %c0_5 = arith.constant 0 : index
    %5 = vector.load %arg2[%c0_4, %c0_5] : memref<128x128xf32, #tpu.memory_space<vmem>>, vector<128x128xf32>
    %cst = arith.constant dense<0.000000e+00> : vector<8x128xf32>
    %6 = tpu.matmul %3, %5, %cst {dimension_numbers = #tpu.dot_dimension_numbers<[1], [0], [0], [1], [0, 0, 1, 1], [], []>} : vector<8x128xf32>, vector<128x128xf32>, vector<8x128xf32> -> vector<8x128xf32>
    %7 = arith.addf %4, %6 : vector<8x128xf32>
    %c0_6 = arith.constant 0 : index
    %c0_7 = arith.constant 0 : index
    %8 = vector.load %arg10[%c0_6, %c0_7] : memref<8x384xf32, #tpu.memory_space<vmem>>, vector<8x128xf32>
    tpu.vector_store %arg10[%c0_6, %c0_7], %7 {strides = array<i32>} : memref<8x384xf32, #tpu.memory_space<vmem>>, vector<8x128xf32>,
    %c0_8 = arith.constant 0 : index
    %c128 = arith.constant 128 : index
    %9 = vector.load %arg10[%c0_8, %c128] : memref<8x384xf32, #tpu.memory_space<vmem>>, vector<8x128xf32>
    %c0_9 = arith.constant 0 : index
    %c0_10 = arith.constant 0 : index
    %10 = vector.load %arg3[%c0_9, %c0_10] : memref<128x128xf32, #tpu.memory_space<vmem>>, vector<128x128xf32>
    %cst_11 = arith.constant dense<0.000000e+00> : vector<8x128xf32>
    %11 = tpu.matmul %3, %10, %cst_11 {dimension_numbers = #tpu.dot_dimension_numbers<[1], [0], [0], [1], [0, 0, 1, 1], [], []>} : vector<8x128xf32>, vector<128x128xf32>, vector<8x128xf32> -> vector<8x128xf32>
    %12 = arith.addf %9, %11 : vector<8x128xf32>
    %c0_12 = arith.constant 0 : index
    %c128_13 = arith.constant 128 : index
    %13 = vector.load %arg10[%c0_12, %c128_13] : memref<8x384xf32, #tpu.memory_space<vmem>>, vector<8x128xf32>
    tpu.vector_store %arg10[%c0_12, %c128_13], %12 {strides = array<i32>} : memref<8x384xf32, #tpu.memory_space<vmem>>, vector<8x128xf32>,
    %c0_14 = arith.constant 0 : index
    %c256 = arith.constant 256 : index
    %14 = vector.load %arg10[%c0_14, %c256] : memref<8x384xf32, #tpu.memory_space<vmem>>, vector<8x128xf32>
    %c0_15 = arith.constant 0 : index
    %c0_16 = arith.constant 0 : index
    %15 = vector.load %arg4[%c0_15, %c0_16] : memref<128x128xf32, #tpu.memory_space<vmem>>, vector<128x128xf32>
    %cst_17 = arith.constant dense<0.000000e+00> : vector<8x128xf32>
    %16 = tpu.matmul %3, %15, %cst_17 {dimension_numbers = #tpu.dot_dimension_numbers<[1], [0], [0], [1], [0, 0, 1, 1], [], []>} : vector<8x128xf32>, vector<128x128xf32>, vector<8x128xf32> -> vector<8x128xf32>
    %17 = arith.addf %14, %16 : vector<8x128xf32>
    %c0_18 = arith.constant 0 : index
    %c256_19 = arith.constant 256 : index
    %18 = vector.load %arg10[%c0_18, %c256_19] : memref<8x384xf32, #tpu.memory_space<vmem>>, vector<8x128xf32>
    tpu.vector_store %arg10[%c0_18, %c256_19], %17 {strides = array<i32>} : memref<8x384xf32, #tpu.memory_space<vmem>>, vector<8x128xf32>,
    %c0_i32_20 = arith.constant 0 : i32
    %19 = arith.cmpi eq, %arg0, %c0_i32_20 : i32
    %20 = arith.extui %19 : i1 to i32
    %c0_i32_21 = arith.constant 0 : i32
    %21 = arith.cmpi ne, %20, %c0_i32_21 : i32
    scf.if %21 {
      %c0_22 = arith.constant 0 : index
      %c0_23 = arith.constant 0 : index
      %22 = vector.load %arg10[%c0_22, %c0_23] : memref<8x384xf32, #tpu.memory_space<vmem>>, vector<8x384xf32>
      %c0_24 = arith.constant 0 : index
      %c0_25 = arith.constant 0 : index
      %23 = vector.load %arg5[%c0_24, %c0_25] : memref<384x128xf32, #tpu.memory_space<vmem>>, vector<384x128xf32>
      %cst_26 = arith.constant dense<0.000000e+00> : vector<8x128xf32>
      %24 = tpu.matmul %22, %23, %cst_26 {dimension_numbers = #tpu.dot_dimension_numbers<[1], [0], [0], [1], [0, 0, 1, 1], [], []>} : vector<8x384xf32>, vector<384x128xf32>, vector<8x128xf32> -> vector<8x128xf32>
      %c0_27 = arith.constant 0 : index
      %c0_28 = arith.constant 0 : index
      %25 = vector.load %arg6[%c0_27, %c0_28] : memref<1x128xf32, #tpu.memory_space<vmem>>, vector<1x128xf32>
      %26 = vector.broadcast %25 : vector<1x128xf32> to vector<8x128xf32>
      %27 = arith.addf %24, %26 : vector<8x128xf32>
      %cst_29 = arith.constant 0.000000e+00 : f32
      %28 = vector.broadcast %cst_29 : f32 to vector<8x128xf32>
      %29 = arith.maximumf %27, %28 : vector<8x128xf32>
      %c0_30 = arith.constant 0 : index
      %c0_31 = arith.constant 0 : index
      %30 = vector.load %arg7[%c0_30, %c0_31] : memref<128x128xf32, #tpu.memory_space<vmem>>, vector<128x128xf32>
      %cst_32 = arith.constant dense<0.000000e+00> : vector<8x128xf32>
      %31 = tpu.matmul %29, %30, %cst_32 {dimension_numbers = #tpu.dot_dimension_numbers<[1], [0], [0], [1], [0, 0, 1, 1], [], []>} : vector<8x128xf32>, vector<128x128xf32>, vector<8x128xf32> -> vector<8x128xf32>
      %c0_33 = arith.constant 0 : index
      %c0_34 = arith.constant 0 : index
      %32 = vector.load %arg8[%c0_33, %c0_34] : memref<1x128xf32, #tpu.memory_space<vmem>>, vector<1x128xf32>
      %33 = vector.broadcast %32 : vector<1x128xf32> to vector<8x128xf32>
      %34 = arith.addf %31, %33 : vector<8x128xf32>
      %35 = tpu.iota {dimensions = array<i32: 1>} : vector<8x128xi32>
      %c4_i32 = arith.constant 4 : i32
      %36 = vector.broadcast %c4_i32 : i32 to vector<8x128xi32>
      %37 = arith.cmpi slt, %35, %36 : vector<8x128xi32>
      %cst_35 = arith.constant -1.000000e+30 : f32
      %38 = vector.broadcast %cst_35 : f32 to vector<8x128xf32>
      %39 = arith.select %37, %34, %38 : vector<8x128xi1>, vector<8x128xf32>
      %cst_36 = arith.constant dense<0xFF800000> : vector<8xf32>
      %40 = vector.multi_reduction <maximumf>, %39, %cst_36 [1] : vector<8x128xf32> to vector<8xf32>
      %41 = vector.shape_cast %40 : vector<8xf32> to vector<8x1xf32>
      %42 = vector.broadcast %41 : vector<8x1xf32> to vector<8x128xf32>
      %43 = arith.subf %39, %42 : vector<8x128xf32>
      %44 = math.exp %43 : vector<8x128xf32>
      %cst_37 = arith.constant dense<0.000000e+00> : vector<8xf32>
      %45 = vector.multi_reduction <add>, %44, %cst_37 [1] : vector<8x128xf32> to vector<8xf32>
      %46 = vector.shape_cast %45 : vector<8xf32> to vector<8x1xf32>
      %47 = math.log %46 : vector<8x1xf32>
      %48 = vector.broadcast %47 : vector<8x1xf32> to vector<8x128xf32>
      %49 = arith.subf %43, %48 : vector<8x128xf32>
      %c0_38 = arith.constant 0 : index
      %c0_39 = arith.constant 0 : index
      %50 = vector.load %arg9[%c0_38, %c0_39] : memref<8x128xf32, #tpu.memory_space<vmem>>, vector<8x128xf32>
      tpu.vector_store %arg9[%c0_38, %c0_39], %49 {strides = array<i32>} : memref<8x128xf32, #tpu.memory_space<vmem>>, vector<8x128xf32>,
    } else {
    }
    return
  }
  func.func @transform_0(%arg0: i32) -> (i32, i32) {
    %c0_i32 = arith.constant 0 : i32
    %c0_i32_0 = arith.constant 0 : i32
    return %c0_i32, %arg0 : i32, i32
  }
  func.func @transform_1(%arg0: i32) -> (i32, i32) {
    %c0_i32 = arith.constant 0 : i32
    %c0_i32_0 = arith.constant 0 : i32
    return %arg0, %c0_i32 : i32, i32
  }
  func.func @transform_2(%arg0: i32) -> (i32, i32) {
    %c0_i32 = arith.constant 0 : i32
    %c0_i32_0 = arith.constant 0 : i32
    return %arg0, %c0_i32 : i32, i32
  }
  func.func @transform_3(%arg0: i32) -> (i32, i32) {
    %c0_i32 = arith.constant 0 : i32
    %c0_i32_0 = arith.constant 0 : i32
    return %arg0, %c0_i32 : i32, i32
  }
  func.func @transform_4(%arg0: i32) -> (i32, i32) {
    %c0_i32 = arith.constant 0 : i32
    %c0_i32_0 = arith.constant 0 : i32
    %c0_i32_1 = arith.constant 0 : i32
    return %c0_i32, %c0_i32_0 : i32, i32
  }
  func.func @transform_5(%arg0: i32) -> (i32, i32) {
    %c0_i32 = arith.constant 0 : i32
    %c0_i32_0 = arith.constant 0 : i32
    %c0_i32_1 = arith.constant 0 : i32
    return %c0_i32, %c0_i32_0 : i32, i32
  }
  func.func @transform_6(%arg0: i32) -> (i32, i32) {
    %c0_i32 = arith.constant 0 : i32
    %c0_i32_0 = arith.constant 0 : i32
    %c0_i32_1 = arith.constant 0 : i32
    return %c0_i32, %c0_i32_0 : i32, i32
  }
  func.func @transform_7(%arg0: i32) -> (i32, i32) {
    %c0_i32 = arith.constant 0 : i32
    %c0_i32_0 = arith.constant 0 : i32
    %c0_i32_1 = arith.constant 0 : i32
    return %c0_i32, %c0_i32_0 : i32, i32
  }
  func.func @transform_8(%arg0: i32) -> (i32, i32) {
    %c0_i32 = arith.constant 0 : i32
    %c0_i32_0 = arith.constant 0 : i32
    %c0_i32_1 = arith.constant 0 : i32
    return %c0_i32, %c0_i32_0 : i32, i32
  }
}

</mosaic_0001>

<llo_original>
// kernel: gin_forward.10
$region0: #{gin_forward.10}
  #allocation0 [shape = 'u32[]', space=smem, size = 0x4, offset = 0x4, fixed_abs, tag = 'smem constant byte address 0x4 - core index']
  #allocation1 [shape = 'u32[144,128]{1,0:T(1,128)}', space=vmem, size = 0x12000, scoped, tag = 'internal scratch']
  %s0 = inlined_call_operand.vmem [shape: f32[128,128], index: 0, kind: input, shape index: {}]
  %s1 = inlined_call_operand.vmem [shape: f32[8,128], index: 1, kind: input, shape index: {}]
  %s2 = inlined_call_operand.vmem [shape: f32[8,128], index: 2, kind: input, shape index: {}]
  %s3 = inlined_call_operand.vmem [shape: f32[1,128], index: 3, kind: input, shape index: {}]
  %s4 = inlined_call_operand.vmem [shape: f32[1,128], index: 4, kind: input, shape index: {}]
  %s5 = inlined_call_operand.vmem [shape: f32[128,128], index: 5, kind: input, shape index: {}]
  %s6 = inlined_call_operand.vmem [shape: f32[128,128], index: 6, kind: output, shape index: {0}]
  %s7 = inlined_call_operand.vmem [shape: f32[128,128], index: 7, kind: output, shape index: {1}]
  %s8 = inlined_call_operand.vmem [shape: bf16[128,128], index: 8, kind: output, shape index: {2}]
  %9 = xla_tuple %s6, %s7, %s8
  %s10 = sld [smem:[#allocation0]]
  $region50: #{gin_forward.10} parent=0
    _
  %s12 = ssub.s32 1, %s10
  %s13 = scalar_select 0, %s12, %s10
  // Predicated region
  $region2: #{gin_forward.10} parent=0 // pred_check
    _
  $region3: #{gin_forward.10} parent=0 // pred_check_branch
    %15 = sbr.rel (0) target = $region5
  $region4: #{gin_forward.10} parent=0 // pred_region
    _
  $region5: #{gin_forward.10} parent=0 // pred_fallthru
    _
  // Predicated region
  $region6: #{gin_forward.10} parent=0 // pred_check
    _
  $region7: #{gin_forward.10} parent=0 // pred_check_branch
    %17 = sbr.rel (0) target = $region9
  $region8: #{gin_forward.10} parent=0 // pred_region
    _
  $region9: #{gin_forward.10} parent=0 // pred_fallthru
    _
  // Predicated region
  $region10: #{gin_forward.10} parent=0 // pred_check
    _
  $region11: #{gin_forward.10} parent=0 // pred_check_branch
    %19 = sbr.rel (0) target = $region13
  $region12: #{gin_forward.10} parent=0 // pred_region
    _
  $region13: #{gin_forward.10} parent=0 // pred_fallthru
    _
  // Predicated region
  $region14: #{gin_forward.10} parent=0 // pred_check
    _
  $region15: #{gin_forward.10} parent=0 // pred_check_branch
    %21 = sbr.rel (0) target = $region17
  $region16: #{gin_forward.10} parent=0 // pred_region
    _
  $region17: #{gin_forward.10} parent=0 // pred_fallthru
    _
  // Predicated region
  $region18: #{gin_forward.10} parent=0 // pred_check
    _
  $region19: #{gin_forward.10} parent=0 // pred_check_branch
    %23 = sbr.rel (0) target = $region21
  $region20: #{gin_forward.10} parent=0 // pred_region
    _
  $region21: #{gin_forward.10} parent=0 // pred_fallthru
    _
  // Predicated region
  $region22: #{gin_forward.10} parent=0 // pred_check
    _
  $region23: #{gin_forward.10} parent=0 // pred_check_branch
    %25 = sbr.rel (0) target = $region25
  $region24: #{gin_forward.10} parent=0 // pred_region
    _
  $region25: #{gin_forward.10} parent=0 // pred_fallthru
    _
  %v26 = vld [vmem:[%s1] sm:$0xff]
  %v27 = vrot.slane %v26, 4
  %v28 = vadd.f32 %v26, %v27
  %v29 = vrot.slane %v28, 2
  %v30 = vadd.f32 %v28, %v29
  %v31 = vrot.slane %v30, 1
  %v32 = vadd.f32 %v30, %v31
  %v33 = vmul.f32 %v32, 0.0625
  %v34 = vld [vmem:[%s2] sm:$0xff]
  %v35 = vrot.slane %v34, 4
  %v36 = vadd.f32 %v34, %v35
  %v37 = vrot.slane %v36, 2
  %v38 = vadd.f32 %v36, %v37
  %v39 = vrot.slane %v38, 1
  %v40 = vadd.f32 %v38, %v39
  %v41 = vmul.f32 %v40, 0.0625
  %v42 = vmul.f32 %v33, %v33
  %v43 = vsub.f32 %v41, %v42
  %v44 = vadd.f32 %v43, 1e-05
  %v45 = vrsqrt.pop %v44
  %v46 = vld [vmem:[%s3] sm:$0x1]
  %v47 = vmul.f32 %v45, %v46
  %v48 = vld [vmem:[%s0] sm:$0xff]
  %v49 = vld [vmem:[%s0 + $0x8] sm:$0xff]
  %v50 = vld [vmem:[%s0 + $0x10] sm:$0xff]
  %v51 = vld [vmem:[%s0 + $0x18] sm:$0xff]
  %v52 = vld [vmem:[%s0 + $0x20] sm:$0xff]
  %v53 = vld [vmem:[%s0 + $0x28] sm:$0xff]
  %v54 = vld [vmem:[%s0 + $0x30] sm:$0xff]
  %v55 = vld [vmem:[%s0 + $0x38] sm:$0xff]
  %v56 = vld [vmem:[%s0 + $0x40] sm:$0xff]
  %v57 = vld [vmem:[%s0 + $0x48] sm:$0xff]
  %v58 = vld [vmem:[%s0 + $0x50] sm:$0xff]
  %v59 = vld [vmem:[%s0 + $0x58] sm:$0xff]
  %v60 = vld [vmem:[%s0 + $0x60] sm:$0xff]
  %v61 = vld [vmem:[%s0 + $0x68] sm:$0xff]
  %v62 = vld [vmem:[%s0 + $0x70] sm:$0xff]
  %v63 = vld [vmem:[%s0 + $0x78] sm:$0xff]
  %v64 = vsub.f32 %v48, %v33
  %v65 = vsub.f32 %v49, %v33
  %v66 = vsub.f32 %v50, %v33
  %v67 = vsub.f32 %v51, %v33
  %v68 = vsub.f32 %v52, %v33
  %v69 = vsub.f32 %v53, %v33
  %v70 = vsub.f32 %v54, %v33
  %v71 = vsub.f32 %v55, %v33
  %v72 = vsub.f32 %v56, %v33
  %v73 = vsub.f32 %v57, %v33
  %v74 = vsub.f32 %v58, %v33
  %v75 = vsub.f32 %v59, %v33
  %v76 = vsub.f32 %v60, %v33
  %v77 = vsub.f32 %v61, %v33
  %v78 = vsub.f32 %v62, %v33
  %v79 = vsub.f32 %v63, %v33
  %v80 = vlaneseq
  %v81 = vshrl.u32 %v80, 7
  %v82 = vsub.s32 0, %v81
  %v83 = vrot.slane %v47, %v82
  %v84 = vmul.f32 %v64, %v83
  %v85 = vmul.f32 %v65, %v83
  %v86 = vmul.f32 %v66, %v83
  %v87 = vmul.f32 %v67, %v83
  %v88 = vmul.f32 %v68, %v83
  %v89 = vmul.f32 %v69, %v83
  %v90 = vmul.f32 %v70, %v83
  %v91 = vmul.f32 %v71, %v83
  %v92 = vmul.f32 %v72, %v83
  %v93 = vmul.f32 %v73, %v83
  %v94 = vmul.f32 %v74, %v83
  %v95 = vmul.f32 %v75, %v83
  %v96 = vmul.f32 %v76, %v83
  %v97 = vmul.f32 %v77, %v83
  %v98 = vmul.f32 %v78, %v83
  %v99 = vmul.f32 %v79, %v83
  %v100 = vld [vmem:[%s4] sm:$0x1]
  %v102 = vlaneseq
  %v103 = vshrl.u32 %v102, 7
  %v104 = vsub.s32 0, %v103
  %v105 = vrot.slane %v100, %v104
  %v107 = vadd.f32 %v84, %v105
  %v108 = vadd.f32 %v85, %v105
  %v109 = vadd.f32 %v86, %v105
  %v110 = vadd.f32 %v87, %v105
  %v111 = vadd.f32 %v88, %v105
  %v112 = vadd.f32 %v89, %v105
  %v113 = vadd.f32 %v90, %v105
  %v114 = vadd.f32 %v91, %v105
  %v115 = vadd.f32 %v92, %v105
  %v116 = vadd.f32 %v93, %v105
  %v117 = vadd.f32 %v94, %v105
  %v118 = vadd.f32 %v95, %v105
  %v119 = vadd.f32 %v96, %v105
  %v120 = vadd.f32 %v97, %v105
  %v121 = vadd.f32 %v98, %v105
  %v122 = vadd.f32 %v99, %v105
  %123 = vst [vmem:[%s6] sm:$0xff] %v107
  %124 = vst [vmem:[%s6 + $0x8] sm:$0xff] %v108
  %125 = vst [vmem:[%s6 + $0x10] sm:$0xff] %v109
  %126 = vst [vmem:[%s6 + $0x18] sm:$0xff] %v110
  %127 = vst [vmem:[%s6 + $0x20] sm:$0xff] %v111
  %128 = vst [vmem:[%s6 + $0x28] sm:$0xff] %v112
  %129 = vst [vmem:[%s6 + $0x30] sm:$0xff] %v113
  %130 = vst [vmem:[%s6 + $0x38] sm:$0xff] %v114
  %131 = vst [vmem:[%s6 + $0x40] sm:$0xff] %v115
  %132 = vst [vmem:[%s6 + $0x48] sm:$0xff] %v116
  %133 = vst [vmem:[%s6 + $0x50] sm:$0xff] %v117
  %134 = vst [vmem:[%s6 + $0x58] sm:$0xff] %v118
  %135 = vst [vmem:[%s6 + $0x60] sm:$0xff] %v119
  %136 = vst [vmem:[%s6 + $0x68] sm:$0xff] %v120
  %137 = vst [vmem:[%s6 + $0x70] sm:$0xff] %v121
  %138 = vst [vmem:[%s6 + $0x78] sm:$0xff] %v122
  %v139 = vld [vmem:[%s5] sm:$0xff]
  %v140 = vld [vmem:[%s5 + $0x8] sm:$0xff]
  %v141 = vld [vmem:[%s5 + $0x10] sm:$0xff]
  %v142 = vld [vmem:[%s5 + $0x18] sm:$0xff]
  %v143 = vld [vmem:[%s5 + $0x20] sm:$0xff]
  %v144 = vld [vmem:[%s5 + $0x28] sm:$0xff]
  %v145 = vld [vmem:[%s5 + $0x30] sm:$0xff]
  %v146 = vld [vmem:[%s5 + $0x38] sm:$0xff]
  %v147 = vld [vmem:[%s5 + $0x40] sm:$0xff]
  %v148 = vld [vmem:[%s5 + $0x48] sm:$0xff]
  %v149 = vld [vmem:[%s5 + $0x50] sm:$0xff]
  %v150 = vld [vmem:[%s5 + $0x58] sm:$0xff]
  %v151 = vld [vmem:[%s5 + $0x60] sm:$0xff]
  %v152 = vld [vmem:[%s5 + $0x68] sm:$0xff]
  %v153 = vld [vmem:[%s5 + $0x70] sm:$0xff]
  %v154 = vld [vmem:[%s5 + $0x78] sm:$0xff]
  %155 = vmatprep.subr.mxu0 0.0
  %156 = vmatpush1.msra.mxu0 %v139
  %157 = vmatprep.subr.mxu0 0.0
  %158 = vmatpush1.msra.mxu0 %v140
  %159 = vmatprep.subr.mxu0 0.0
  %160 = vmatpush1.msra.mxu0 %v141
  %161 = vmatprep.subr.mxu0 0.0
  %162 = vmatpush1.msra.mxu0 %v142
  %163 = vmatprep.subr.mxu0 0.0
  %164 = vmatpush1.msra.mxu0 %v143
  %165 = vmatprep.subr.mxu0 0.0
  %166 = vmatpush1.msra.mxu0 %v144
  %167 = vmatprep.subr.mxu0 0.0
  %168 = vmatpush1.msra.mxu0 %v145
  %169 = vmatprep.subr.mxu0 0.0
  %170 = vmatpush1.msra.mxu0 %v146
  %171 = vmatprep.subr.mxu0 0.0
  %172 = vmatpush1.msra.mxu0 %v147
  %173 = vmatprep.subr.mxu0 0.0
  %174 = vmatpush1.msra.mxu0 %v148
  %175 = vmatprep.subr.mxu0 0.0
  %176 = vmatpush1.msra.mxu0 %v149
  %177 = vmatprep.subr.mxu0 0.0
  %178 = vmatpush1.msra.mxu0 %v150
  %179 = vmatprep.subr.mxu0 0.0
  %180 = vmatpush1.msra.mxu0 %v151
  %181 = vmatprep.subr.mxu0 0.0
  %182 = vmatpush1.msra.mxu0 %v152
  %183 = vmatprep.subr.mxu0 0.0
  %184 = vmatpush1.msra.mxu0 %v153
  %185 = vmatprep.subr.mxu0 0.0
  %186 = vmatpush1.msra.mxu0 %v154
  %187 = vmatprep.subr.mxu0 0.0
  %188 = vmatpush1.msra.mxu0 0.0
  %189 = vmatprep.subr.mxu0 0.0
  %190 = vmatpush1.msra.mxu0 0.0
  %191 = vmatprep.subr.mxu0 0.0
  %192 = vmatpush1.msra.mxu0 0.0
  %193 = vmatprep.subr.mxu0 0.0
  %194 = vmatpush1.msra.mxu0 0.0
  %195 = vmatprep.subr.mxu0 0.0
  %196 = vmatpush1.msra.mxu0 0.0
  %197 = vmatprep.subr.mxu0 0.0
  %198 = vmatpush1.msra.mxu0 0.0
  %199 = vmatprep.subr.mxu0 0.0
  %200 = vmatpush1.msra.mxu0 0.0
  %201 = vmatprep.subr.mxu0 0.0
  %202 = vmatpush1.msra.mxu0 0.0
  %203 = vmatprep.subr.mxu0 0.0
  %204 = vmatpush1.msra.mxu0 0.0
  %205 = vmatprep.subr.mxu0 0.0
  %206 = vmatpush1.msra.mxu0 0.0
  %207 = vmatprep.subr.mxu0 0.0
  %208 = vmatpush1.msra.mxu0 0.0
  %209 = vmatprep.subr.mxu0 0.0
  %210 = vmatpush1.msra.mxu0 0.0
  %211 = vmatprep.subr.mxu0 0.0
  %212 = vmatpush1.msra.mxu0 0.0
  %213 = vmatprep.subr.mxu0 0.0
  %214 = vmatpush1.msra.mxu0 0.0
  %215 = vmatprep.subr.mxu0 0.0
  %216 = vmatpush1.msra.mxu0 0.0
  %217 = vmatprep.subr.mxu0 0.0
  %218 = vmatpush1.msra.mxu0 0.0
  %219 = vmatprep.mubr.f32.mxu0 0.0
  %220 = vmatmul.mubr.f32.gmra.mrb[0].mxu0 %v107
  %v221 = vpop.f32.mrb[0].mxu0
  %v222 = vadd.f32 0.0, %v221
  %v223 = vpop.f32.mrb[0].mxu0
  %224 = vmatprep.mubr.f32.mxu0 0.0
  %225 = vmatmul.mubr.f32.gmra.mrb[0].mxu0 %v108
  %v226 = vpop.f32.mrb[0].mxu0
  %v227 = vadd.f32 0.0, %v226
  %v228 = vpop.f32.mrb[0].mxu0
  %229 = vmatprep.mubr.f32.mxu0 0.0
  %230 = vmatmul.mubr.f32.gmra.mrb[0].mxu0 %v109
  %v231 = vpop.f32.mrb[0].mxu0
  %v232 = vadd.f32 0.0, %v231
  %v233 = vpop.f32.mrb[0].mxu0
  %234 = vmatprep.mubr.f32.mxu0 0.0
  %235 = vmatmul.mubr.f32.gmra.mrb[0].mxu0 %v110
  %v236 = vpop.f32.mrb[0].mxu0
  %v237 = vadd.f32 0.0, %v236
  %v238 = vpop.f32.mrb[0].mxu0
  %239 = vmatprep.mubr.f32.mxu0 0.0
  %240 = vmatmul.mubr.f32.gmra.mrb[0].mxu0 %v111
  %v241 = vpop.f32.mrb[0].mxu0
  %v242 = vadd.f32 0.0, %v241
  %v243 = vpop.f32.mrb[0].mxu0
  %244 = vmatprep.mubr.f32.mxu0 0.0
  %245 = vmatmul.mubr.f32.gmra.mrb[0].mxu0 %v112
  %v246 = vpop.f32.mrb[0].mxu0
  %v247 = vadd.f32 0.0, %v246
  %v248 = vpop.f32.mrb[0].mxu0
  %249 = vmatprep.mubr.f32.mxu0 0.0
  %250 = vmatmul.mubr.f32.gmra.mrb[0].mxu0 %v113
  %v251 = vpop.f32.mrb[0].mxu0
  %v252 = vadd.f32 0.0, %v251
  %v253 = vpop.f32.mrb[0].mxu0
  %254 = vmatprep.mubr.f32.mxu0 0.0
  %255 = vmatmul.mubr.f32.gmra.mrb[0].mxu0 %v114
  %v256 = vpop.f32.mrb[0].mxu0
  %v257 = vadd.f32 0.0, %v256
  %v258 = vpop.f32.mrb[0].mxu0
  %259 = vmatprep.mubr.f32.mxu0 0.0
  %260 = vmatmul.mubr.f32.gmra.mrb[0].mxu0 %v115
  %v261 = vpop.f32.mrb[0].mxu0
  %v262 = vadd.f32 0.0, %v261
  %v263 = vpop.f32.mrb[0].mxu0
  %264 = vmatprep.mubr.f32.mxu0 0.0
  %265 = vmatmul.mubr.f32.gmra.mrb[0].mxu0 %v116
  %v266 = vpop.f32.mrb[0].mxu0
  %v267 = vadd.f32 0.0, %v266
  %v268 = vpop.f32.mrb[0].mxu0
  %269 = vmatprep.mubr.f32.mxu0 0.0
  %270 = vmatmul.mubr.f32.gmra.mrb[0].mxu0 %v117
  %v271 = vpop.f32.mrb[0].mxu0
  %v272 = vadd.f32 0.0, %v271
  %v273 = vpop.f32.mrb[0].mxu0
  %274 = vmatprep.mubr.f32.mxu0 0.0
  %275 = vmatmul.mubr.f32.gmra.mrb[0].mxu0 %v118
  %v276 = vpop.f32.mrb[0].mxu0
  %v277 = vadd.f32 0.0, %v276
  %v278 = vpop.f32.mrb[0].mxu0
  %279 = vmatprep.mubr.f32.mxu0 0.0
  %280 = vmatmul.mubr.f32.gmra.mrb[0].mxu0 %v119
  %v281 = vpop.f32.mrb[0].mxu0
  %v282 = vadd.f32 0.0, %v281
  %v283 = vpop.f32.mrb[0].mxu0
  %284 = vmatprep.mubr.f32.mxu0 0.0
  %285 = vmatmul.mubr.f32.gmra.mrb[0].mxu0 %v120
  %v286 = vpop.f32.mrb[0].mxu0
  %v287 = vadd.f32 0.0, %v286
  %v288 = vpop.f32.mrb[0].mxu0
  %289 = vmatprep.mubr.f32.mxu0 0.0
  %290 = vmatmul.mubr.f32.gmra.mrb[0].mxu0 %v121
  %v291 = vpop.f32.mrb[0].mxu0
  %v292 = vadd.f32 0.0, %v291
  %v293 = vpop.f32.mrb[0].mxu0
  %294 = vmatprep.mubr.f32.mxu0 0.0
  %295 = vmatmul.mubr.f32.gmra.mrb[0].mxu0 %v122
  %v296 = vpop.f32.mrb[0].mxu0
  %v297 = vadd.f32 0.0, %v296
  %v298 = vpop.f32.mrb[0].mxu0
  %299 = vdwg.mxu0
  %300 = vst [vmem:[%s7] sm:$0xff] %v222
  %301 = vst [vmem:[%s7 + $0x8] sm:$0xff] %v227
  %302 = vst [vmem:[%s7 + $0x10] sm:$0xff] %v232
  %303 = vst [vmem:[%s7 + $0x18] sm:$0xff] %v237
  %304 = vst [vmem:[%s7 + $0x20] sm:$0xff] %v242
  %305 = vst [vmem:[%s7 + $0x28] sm:$0xff] %v247
  %306 = vst [vmem:[%s7 + $0x30] sm:$0xff] %v252
  %307 = vst [vmem:[%s7 + $0x38] sm:$0xff] %v257
  %308 = vst [vmem:[%s7 + $0x40] sm:$0xff] %v262
  %309 = vst [vmem:[%s7 + $0x48] sm:$0xff] %v267
  %310 = vst [vmem:[%s7 + $0x50] sm:$0xff] %v272
  %311 = vst [vmem:[%s7 + $0x58] sm:$0xff] %v277
  %312 = vst [vmem:[%s7 + $0x60] sm:$0xff] %v282
  %313 = vst [vmem:[%s7 + $0x68] sm:$0xff] %v287
  %314 = vst [vmem:[%s7 + $0x70] sm:$0xff] %v292
  %315 = vst [vmem:[%s7 + $0x78] sm:$0xff] %v297
  %v316 = vpack.c.bf16 %v227, %v222
  %v317 = vpack.c.bf16 %v237, %v232
  %v318 = vpack.c.bf16 %v247, %v242
  %v319 = vpack.c.bf16 %v257, %v252
  %v320 = vpack.c.bf16 %v267, %v262
  %v321 = vpack.c.bf16 %v277, %v272
  %v322 = vpack.c.bf16 %v287, %v282
  %v323 = vpack.c.bf16 %v297, %v292
  %v332 = vunpack.c.l.b16 %v316
  %v333 = vunpack.c.h.b16 %v316
  %v334 = vunpack.c.l.b16 %v317
  %v335 = vunpack.c.h.b16 %v317
  %v336 = vunpack.c.l.b16 %v318
  %v337 = vunpack.c.h.b16 %v318
  %v338 = vunpack.c.l.b16 %v319
  %v339 = vunpack.c.h.b16 %v319
  %v340 = vunpack.c.l.b16 %v320
  %v341 = vunpack.c.h.b16 %v320
  %v342 = vunpack.c.l.b16 %v321
  %v343 = vunpack.c.h.b16 %v321
  %v344 = vunpack.c.l.b16 %v322
  %v345 = vunpack.c.h.b16 %v322
  %v346 = vunpack.c.l.b16 %v323
  %v347 = vunpack.c.h.b16 %v323
  %v348 = vpack.c.b16 %v332, %v332
  %v349 = vpack.c.b16 %v333, %v333
  %v350 = vpack.c.b16 %v334, %v334
  %v351 = vpack.c.b16 %v335, %v335
  %v352 = vpack.c.b16 %v336, %v336
  %v353 = vpack.c.b16 %v337, %v337
  %v354 = vpack.c.b16 %v338, %v338
  %v355 = vpack.c.b16 %v339, %v339
  %v356 = vpack.c.b16 %v340, %v340
  %v357 = vpack.c.b16 %v341, %v341
  %v358 = vpack.c.b16 %v342, %v342
  %v359 = vpack.c.b16 %v343, %v343
  %v360 = vpack.c.b16 %v344, %v344
  %v361 = vpack.c.b16 %v345, %v345
  %v362 = vpack.c.b16 %v346, %v346
  %v363 = vpack.c.b16 %v347, %v347
  %380 = vst [vmem:[%s8] sm:$0xf] %v348
  %381 = vst [vmem:[%s8 + $0x4] sm:$0xf] %v349
  %382 = vst [vmem:[%s8 + $0x8] sm:$0xf] %v350
  %383 = vst [vmem:[%s8 + $0xc] sm:$0xf] %v351
  %384 = vst [vmem:[%s8 + $0x10] sm:$0xf] %v352
  %385 = vst [vmem:[%s8 + $0x14] sm:$0xf] %v353
  %386 = vst [vmem:[%s8 + $0x18] sm:$0xf] %v354
  %387 = vst [vmem:[%s8 + $0x1c] sm:$0xf] %v355
  %388 = vst [vmem:[%s8 + $0x20] sm:$0xf] %v356
  %389 = vst [vmem:[%s8 + $0x24] sm:$0xf] %v357
  %390 = vst [vmem:[%s8 + $0x28] sm:$0xf] %v358
  %391 = vst [vmem:[%s8 + $0x2c] sm:$0xf] %v359
  %392 = vst [vmem:[%s8 + $0x30] sm:$0xf] %v360
  %393 = vst [vmem:[%s8 + $0x34] sm:$0xf] %v361
  %394 = vst [vmem:[%s8 + $0x38] sm:$0xf] %v362
  %395 = vst [vmem:[%s8 + $0x3c] sm:$0xf] %v363
  // Predicated region
  $region26: #{gin_forward.10} parent=0 // pred_check
    _
  $region27: #{gin_forward.10} parent=0 // pred_check_branch
    %397 = sbr.rel (0) target = $region29
  $region28: #{gin_forward.10} parent=0 // pred_region
    _
  $region29: #{gin_forward.10} parent=0 // pred_fallthru
    _
  // Predicated region
  $region30: #{gin_forward.10} parent=0 // pred_check
    _
  $region31: #{gin_forward.10} parent=0 // pred_check_branch
    %399 = sbr.rel (0) target = $region33
  $region32: #{gin_forward.10} parent=0 // pred_region
    _
  $region33: #{gin_forward.10} parent=0 // pred_fallthru
    _
  // Predicated region
  $region34: #{gin_forward.10} parent=0 // pred_check
    _
  $region35: #{gin_forward.10} parent=0 // pred_check_branch
    %401 = sbr.rel (0) target = $region37
  $region36: #{gin_forward.10} parent=0 // pred_region
    _
  $region37: #{gin_forward.10} parent=0 // pred_fallthru
    _
  // Predicated region
  $region38: #{gin_forward.10} parent=0 // pred_check
    _
  $region39: #{gin_forward.10} parent=0 // pred_check_branch
    %403 = sbr.rel (0) target = $region41
  $region40: #{gin_forward.10} parent=0 // pred_region
    _
  $region41: #{gin_forward.10} parent=0 // pred_fallthru
    _
  // Predicated region
  $region42: #{gin_forward.10} parent=0 // pred_check
    _
  $region43: #{gin_forward.10} parent=0 // pred_check_branch
    %405 = sbr.rel (0) target = $region45
  $region44: #{gin_forward.10} parent=0 // pred_region
    _
  $region45: #{gin_forward.10} parent=0 // pred_fallthru
    _
  // Predicated region
  $region46: #{gin_forward.10} parent=0 // pred_check
    _
  $region47: #{gin_forward.10} parent=0 // pred_check_branch
    %407 = sbr.rel (0) target = $region49
  $region48: #{gin_forward.10} parent=0 // pred_region
    _
  $region49: #{gin_forward.10} parent=0 // pred_fallthru
    _

// kernel: gin_forward.8
$region0: #{gin_forward.8}
  #allocation0 [shape = 'u32[]', space=smem, size = 0x4, offset = 0x4, fixed_abs, tag = 'smem constant byte address 0x4 - core index']
  #allocation1 [shape = 'u32[144,128]{1,0:T(1,128)}', space=vmem, size = 0x12000, scoped, tag = 'internal scratch']
  %s0 = inlined_call_operand.vmem [shape: f32[128,128], index: 0, kind: input, shape index: {}]
  %s1 = inlined_call_operand.vmem [shape: f32[128,128], index: 1, kind: input, shape index: {}]
  %s2 = inlined_call_operand.vmem [shape: f32[128,128], index: 2, kind: output, shape index: {0}]
  %s3 = inlined_call_operand.vmem [shape: bf16[128,128], index: 3, kind: output, shape index: {1}]
  %4 = xla_tuple %s2, %s3
  %s5 = sld [smem:[#allocation0]]
  $region26: #{gin_forward.8} parent=0
    _
  %s7 = ssub.s32 1, %s5
  %s8 = scalar_select 0, %s7, %s5
  // Predicated region
  $region2: #{gin_forward.8} parent=0 // pred_check
    _
  $region3: #{gin_forward.8} parent=0 // pred_check_branch
    %10 = sbr.rel (0) target = $region5
  $region4: #{gin_forward.8} parent=0 // pred_region
    _
  $region5: #{gin_forward.8} parent=0 // pred_fallthru
    _
  // Predicated region
  $region6: #{gin_forward.8} parent=0 // pred_check
    _
  $region7: #{gin_forward.8} parent=0 // pred_check_branch
    %12 = sbr.rel (0) target = $region9
  $region8: #{gin_forward.8} parent=0 // pred_region
    _
  $region9: #{gin_forward.8} parent=0 // pred_fallthru
    _
  %v13 = vld [vmem:[%s0] sm:$0xff]
  %v14 = vld [vmem:[%s0 + $0x8] sm:$0xff]
  %v15 = vld [vmem:[%s0 + $0x10] sm:$0xff]
  %v16 = vld [vmem:[%s0 + $0x18] sm:$0xff]
  %v17 = vld [vmem:[%s0 + $0x20] sm:$0xff]
  %v18 = vld [vmem:[%s0 + $0x28] sm:$0xff]
  %v19 = vld [vmem:[%s0 + $0x30] sm:$0xff]
  %v20 = vld [vmem:[%s0 + $0x38] sm:$0xff]
  %v21 = vld [vmem:[%s0 + $0x40] sm:$0xff]
  %v22 = vld [vmem:[%s0 + $0x48] sm:$0xff]
  %v23 = vld [vmem:[%s0 + $0x50] sm:$0xff]
  %v24 = vld [vmem:[%s0 + $0x58] sm:$0xff]
  %v25 = vld [vmem:[%s0 + $0x60] sm:$0xff]
  %v26 = vld [vmem:[%s0 + $0x68] sm:$0xff]
  %v27 = vld [vmem:[%s0 + $0x70] sm:$0xff]
  %v28 = vld [vmem:[%s0 + $0x78] sm:$0xff]
  %v29 = vld [vmem:[%s1] sm:$0xff]
  %v30 = vld [vmem:[%s1 + $0x8] sm:$0xff]
  %v31 = vld [vmem:[%s1 + $0x10] sm:$0xff]
  %v32 = vld [vmem:[%s1 + $0x18] sm:$0xff]
  %v33 = vld [vmem:[%s1 + $0x20] sm:$0xff]
  %v34 = vld [vmem:[%s1 + $0x28] sm:$0xff]
  %v35 = vld [vmem:[%s1 + $0x30] sm:$0xff]
  %v36 = vld [vmem:[%s1 + $0x38] sm:$0xff]
  %v37 = vld [vmem:[%s1 + $0x40] sm:$0xff]
  %v38 = vld [vmem:[%s1 + $0x48] sm:$0xff]
  %v39 = vld [vmem:[%s1 + $0x50] sm:$0xff]
  %v40 = vld [vmem:[%s1 + $0x58] sm:$0xff]
  %v41 = vld [vmem:[%s1 + $0x60] sm:$0xff]
  %v42 = vld [vmem:[%s1 + $0x68] sm:$0xff]
  %v43 = vld [vmem:[%s1 + $0x70] sm:$0xff]
  %v44 = vld [vmem:[%s1 + $0x78] sm:$0xff]
  %45 = vmatprep.subr.mxu0 0.0
  %46 = vmatpush1.msra.mxu0 %v29
  %47 = vmatprep.subr.mxu0 0.0
  %48 = vmatpush1.msra.mxu0 %v30
  %49 = vmatprep.subr.mxu0 0.0
  %50 = vmatpush1.msra.mxu0 %v31
  %51 = vmatprep.subr.mxu0 0.0
  %52 = vmatpush1.msra.mxu0 %v32
  %53 = vmatprep.subr.mxu0 0.0
  %54 = vmatpush1.msra.mxu0 %v33
  %55 = vmatprep.subr.mxu0 0.0
  %56 = vmatpush1.msra.mxu0 %v34
  %57 = vmatprep.subr.mxu0 0.0
  %58 = vmatpush1.msra.mxu0 %v35
  %59 = vmatprep.subr.mxu0 0.0
  %60 = vmatpush1.msra.mxu0 %v36
  %61 = vmatprep.subr.mxu0 0.0
  %62 = vmatpush1.msra.mxu0 %v37
  %63 = vmatprep.subr.mxu0 0.0
  %64 = vmatpush1.msra.mxu0 %v38
  %65 = vmatprep.subr.mxu0 0.0
  %66 = vmatpush1.msra.mxu0 %v39
  %67 = vmatprep.subr.mxu0 0.0
  %68 = vmatpush1.msra.mxu0 %v40
  %69 = vmatprep.subr.mxu0 0.0
  %70 = vmatpush1.msra.mxu0 %v41
  %71 = vmatprep.subr.mxu0 0.0
  %72 = vmatpush1.msra.mxu0 %v42
  %73 = vmatprep.subr.mxu0 0.0
  %74 = vmatpush1.msra.mxu0 %v43
  %75 = vmatprep.subr.mxu0 0.0
  %76 = vmatpush1.msra.mxu0 %v44
  %77 = vmatprep.subr.mxu0 0.0
  %78 = vmatpush1.msra.mxu0 0.0
  %79 = vmatprep.subr.mxu0 0.0
  %80 = vmatpush1.msra.mxu0 0.0
  %81 = vmatprep.subr.mxu0 0.0
  %82 = vmatpush1.msra.mxu0 0.0
  %83 = vmatprep.subr.mxu0 0.0
  %84 = vmatpush1.msra.mxu0 0.0
  %85 = vmatprep.subr.mxu0 0.0
  %86 = vmatpush1.msra.mxu0 0.0
  %87 = vmatprep.subr.mxu0 0.0
  %88 = vmatpush1.msra.mxu0 0.0
  %89 = vmatprep.subr.mxu0 0.0
  %90 = vmatpush1.msra.mxu0 0.0
  %91 = vmatprep.subr.mxu0 0.0
  %92 = vmatpush1.msra.mxu0 0.0
  %93 = vmatprep.subr.mxu0 0.0
  %94 = vmatpush1.msra.mxu0 0.0
  %95 = vmatprep.subr.mxu0 0.0
  %96 = vmatpush1.msra.mxu0 0.0
  %97 = vmatprep.subr.mxu0 0.0
  %98 = vmatpush1.msra.mxu0 0.0
  %99 = vmatprep.subr.mxu0 0.0
  %100 = vmatpush1.msra.mxu0 0.0
  %101 = vmatprep.subr.mxu0 0.0
  %102 = vmatpush1.msra.mxu0 0.0
  %103 = vmatprep.subr.mxu0 0.0
  %104 = vmatpush1.msra.mxu0 0.0
  %105 = vmatprep.subr.mxu0 0.0
  %106 = vmatpush1.msra.mxu0 0.0
  %107 = vmatprep.subr.mxu0 0.0
  %108 = vmatpush1.msra.mxu0 0.0
  %109 = vmatprep.mubr.f32.mxu0 0.0
  %110 = vmatmul.mubr.f32.gmra.mrb[0].mxu0 %v13
  %v111 = vpop.f32.mrb[0].mxu0
  %v112 = vadd.f32 0.0, %v111
  %v113 = vpop.f32.mrb[0].mxu0
  %114 = vmatprep.mubr.f32.mxu0 0.0
  %115 = vmatmul.mubr.f32.gmra.mrb[0].mxu0 %v14
  %v116 = vpop.f32.mrb[0].mxu0
  %v117 = vadd.f32 0.0, %v116
  %v118 = vpop.f32.mrb[0].mxu0
  %119 = vmatprep.mubr.f32.mxu0 0.0
  %120 = vmatmul.mubr.f32.gmra.mrb[0].mxu0 %v15
  %v121 = vpop.f32.mrb[0].mxu0
  %v122 = vadd.f32 0.0, %v121
  %v123 = vpop.f32.mrb[0].mxu0
  %124 = vmatprep.mubr.f32.mxu0 0.0
  %125 = vmatmul.mubr.f32.gmra.mrb[0].mxu0 %v16
  %v126 = vpop.f32.mrb[0].mxu0
  %v127 = vadd.f32 0.0, %v126
  %v128 = vpop.f32.mrb[0].mxu0
  %129 = vmatprep.mubr.f32.mxu0 0.0
  %130 = vmatmul.mubr.f32.gmra.mrb[0].mxu0 %v17
  %v131 = vpop.f32.mrb[0].mxu0
  %v132 = vadd.f32 0.0, %v131
  %v133 = vpop.f32.mrb[0].mxu0
  %134 = vmatprep.mubr.f32.mxu0 0.0
  %135 = vmatmul.mubr.f32.gmra.mrb[0].mxu0 %v18
  %v136 = vpop.f32.mrb[0].mxu0
  %v137 = vadd.f32 0.0, %v136
  %v138 = vpop.f32.mrb[0].mxu0
  %139 = vmatprep.mubr.f32.mxu0 0.0
  %140 = vmatmul.mubr.f32.gmra.mrb[0].mxu0 %v19
  %v141 = vpop.f32.mrb[0].mxu0
  %v142 = vadd.f32 0.0, %v141
  %v143 = vpop.f32.mrb[0].mxu0
  %144 = vmatprep.mubr.f32.mxu0 0.0
  %145 = vmatmul.mubr.f32.gmra.mrb[0].mxu0 %v20
  %v146 = vpop.f32.mrb[0].mxu0
  %v147 = vadd.f32 0.0, %v146
  %v148 = vpop.f32.mrb[0].mxu0
  %149 = vmatprep.mubr.f32.mxu0 0.0
  %150 = vmatmul.mubr.f32.gmra.mrb[0].mxu0 %v21
  %v151 = vpop.f32.mrb[0].mxu0
  %v152 = vadd.f32 0.0, %v151
  %v153 = vpop.f32.mrb[0].mxu0
  %154 = vmatprep.mubr.f32.mxu0 0.0
  %155 = vmatmul.mubr.f32.gmra.mrb[0].mxu0 %v22
  %v156 = vpop.f32.mrb[0].mxu0
  %v157 = vadd.f32 0.0, %v156
  %v158 = vpop.f32.mrb[0].mxu0
  %159 = vmatprep.mubr.f32.mxu0 0.0
  %160 = vmatmul.mubr.f32.gmra.mrb[0].mxu0 %v23
  %v161 = vpop.f32.mrb[0].mxu0
  %v162 = vadd.f32 0.0, %v161
  %v163 = vpop.f32.mrb[0].mxu0
  %164 = vmatprep.mubr.f32.mxu0 0.0
  %165 = vmatmul.mubr.f32.gmra.mrb[0].mxu0 %v24
  %v166 = vpop.f32.mrb[0].mxu0
  %v167 = vadd.f32 0.0, %v166
  %v168 = vpop.f32.mrb[0].mxu0
  %169 = vmatprep.mubr.f32.mxu0 0.0
  %170 = vmatmul.mubr.f32.gmra.mrb[0].mxu0 %v25
  %v171 = vpop.f32.mrb[0].mxu0
  %v172 = vadd.f32 0.0, %v171
  %v173 = vpop.f32.mrb[0].mxu0
  %174 = vmatprep.mubr.f32.mxu0 0.0
  %175 = vmatmul.mubr.f32.gmra.mrb[0].mxu0 %v26
  %v176 = vpop.f32.mrb[0].mxu0
  %v177 = vadd.f32 0.0, %v176
  %v178 = vpop.f32.mrb[0].mxu0
  %179 = vmatprep.mubr.f32.mxu0 0.0
  %180 = vmatmul.mubr.f32.gmra.mrb[0].mxu0 %v27
  %v181 = vpop.f32.mrb[0].mxu0
  %v182 = vadd.f32 0.0, %v181
  %v183 = vpop.f32.mrb[0].mxu0
  %184 = vmatprep.mubr.f32.mxu0 0.0
  %185 = vmatmul.mubr.f32.gmra.mrb[0].mxu0 %v28
  %v186 = vpop.f32.mrb[0].mxu0
  %v187 = vadd.f32 0.0, %v186
  %v188 = vpop.f32.mrb[0].mxu0
  %189 = vdwg.mxu0
  %190 = vst [vmem:[%s2] sm:$0xff] %v112
  %191 = vst [vmem:[%s2 + $0x8] sm:$0xff] %v117
  %192 = vst [vmem:[%s2 + $0x10] sm:$0xff] %v122
  %193 = vst [vmem:[%s2 + $0x18] sm:$0xff] %v127
  %194 = vst [vmem:[%s2 + $0x20] sm:$0xff] %v132
  %195 = vst [vmem:[%s2 + $0x28] sm:$0xff] %v137
  %196 = vst [vmem:[%s2 + $0x30] sm:$0xff] %v142
  %197 = vst [vmem:[%s2 + $0x38] sm:$0xff] %v147
  %198 = vst [vmem:[%s2 + $0x40] sm:$0xff] %v152
  %199 = vst [vmem:[%s2 + $0x48] sm:$0xff] %v157
  %200 = vst [vmem:[%s2 + $0x50] sm:$0xff] %v162
  %201 = vst [vmem:[%s2 + $0x58] sm:$0xff] %v167
  %202 = vst [vmem:[%s2 + $0x60] sm:$0xff] %v172
  %203 = vst [vmem:[%s2 + $0x68] sm:$0xff] %v177
  %204 = vst [vmem:[%s2 + $0x70] sm:$0xff] %v182
  %205 = vst [vmem:[%s2 + $0x78] sm:$0xff] %v187
  %v206 = vpack.c.bf16 %v117, %v112
  %v207 = vpack.c.bf16 %v127, %v122
  %v208 = vpack.c.bf16 %v137, %v132
  %v209 = vpack.c.bf16 %v147, %v142
  %v210 = vpack.c.bf16 %v157, %v152
  %v211 = vpack.c.bf16 %v167, %v162
  %v212 = vpack.c.bf16 %v177, %v172
  %v213 = vpack.c.bf16 %v187, %v182
  %v222 = vunpack.c.l.b16 %v206
  %v223 = vunpack.c.h.b16 %v206
  %v224 = vunpack.c.l.b16 %v207
  %v225 = vunpack.c.h.b16 %v207
  %v226 = vunpack.c.l.b16 %v208
  %v227 = vunpack.c.h.b16 %v208
  %v228 = vunpack.c.l.b16 %v209
  %v229 = vunpack.c.h.b16 %v209
  %v230 = vunpack.c.l.b16 %v210
  %v231 = vunpack.c.h.b16 %v210
  %v232 = vunpack.c.l.b16 %v211
  %v233 = vunpack.c.h.b16 %v211
  %v234 = vunpack.c.l.b16 %v212
  %v235 = vunpack.c.h.b16 %v212
  %v236 = vunpack.c.l.b16 %v213
  %v237 = vunpack.c.h.b16 %v213
  %v238 = vpack.c.b16 %v222, %v222
  %v239 = vpack.c.b16 %v223, %v223
  %v240 = vpack.c.b16 %v224, %v224
  %v241 = vpack.c.b16 %v225, %v225
  %v242 = vpack.c.b16 %v226, %v226
  %v243 = vpack.c.b16 %v227, %v227
  %v244 = vpack.c.b16 %v228, %v228
  %v245 = vpack.c.b16 %v229, %v229
  %v246 = vpack.c.b16 %v230, %v230
  %v247 = vpack.c.b16 %v231, %v231
  %v248 = vpack.c.b16 %v232, %v232
  %v249 = vpack.c.b16 %v233, %v233
  %v250 = vpack.c.b16 %v234, %v234
  %v251 = vpack.c.b16 %v235, %v235
  %v252 = vpack.c.b16 %v236, %v236
  %v253 = vpack.c.b16 %v237, %v237
  %270 = vst [vmem:[%s3] sm:$0xf] %v238
  %271 = vst [vmem:[%s3 + $0x4] sm:$0xf] %v239
  %272 = vst [vmem:[%s3 + $0x8] sm:$0xf] %v240
  %273 = vst [vmem:[%s3 + $0xc] sm:$0xf] %v241
  %274 = vst [vmem:[%s3 + $0x10] sm:$0xf] %v242
  %275 = vst [vmem:[%s3 + $0x14] sm:$0xf] %v243
  %276 = vst [vmem:[%s3 + $0x18] sm:$0xf] %v244
  %277 = vst [vmem:[%s3 + $0x1c] sm:$0xf] %v245
  %278 = vst [vmem:[%s3 + $0x20] sm:$0xf] %v246
  %279 = vst [vmem:[%s3 + $0x24] sm:$0xf] %v247
  %280 = vst [vmem:[%s3 + $0x28] sm:$0xf] %v248
  %281 = vst [vmem:[%s3 + $0x2c] sm:$0xf] %v249
  %282 = vst [vmem:[%s3 + $0x30] sm:$0xf] %v250
  %283 = vst [vmem:[%s3 + $0x34] sm:$0xf] %v251
  %284 = vst [vmem:[%s3 + $0x38] sm:$0xf] %v252
  %285 = vst [vmem:[%s3 + $0x3c] sm:$0xf] %v253
  // Predicated region
  $region10: #{gin_forward.8} parent=0 // pred_check
    _
  $region11: #{gin_forward.8} parent=0 // pred_check_branch
    %287 = sbr.rel (0) target = $region13
  $region12: #{gin_forward.8} parent=0 // pred_region
    _
  $region13: #{gin_forward.8} parent=0 // pred_fallthru
    _
  // Predicated region
  $region14: #{gin_forward.8} parent=0 // pred_check
    _
  $region15: #{gin_forward.8} parent=0 // pred_check_branch
    %289 = sbr.rel (0) target = $region17
  $region16: #{gin_forward.8} parent=0 // pred_region
    _
  $region17: #{gin_forward.8} parent=0 // pred_fallthru
    _
  // Predicated region
  $region18: #{gin_forward.8} parent=0 // pred_check
    _
  $region19: #{gin_forward.8} parent=0 // pred_check_branch
    %291 = sbr.rel (0) target = $region21
  $region20: #{gin_forward.8} parent=0 // pred_region
    _
  $region21: #{gin_forward.8} parent=0 // pred_fallthru
    _
  // Predicated region
  $region22: #{gin_forward.8} parent=0 // pred_check
    _
  $region23: #{gin_forward.8} parent=0 // pred_check_branch
    %293 = sbr.rel (0) target = $region25
  $region24: #{gin_forward.8} parent=0 // pred_region
    _
  $region25: #{gin_forward.8} parent=0 // pred_fallthru
    _

// kernel: gin_forward.9
$region0: #{gin_forward.9}
  #allocation0 [shape = 'u32[]', space=smem, size = 0x4, offset = 0x4, fixed_abs, tag = 'smem constant byte address 0x4 - core index']
  #allocation1 [shape = 'u32[144,128]{1,0:T(1,128)}', space=vmem, size = 0x12000, scoped, tag = 'internal scratch']
  #allocation2 [shape = 'f32[128,128]{1,0:T(8,128)}', space=vmem, size = 0x10000, scoped, tag = 'scratch operand']
  %s0 = inlined_call_operand.vmem [shape: bf16[128,128], index: 0, kind: input, shape index: {}]
  %s1 = inlined_call_operand.vmem [shape: bf16[128,128], index: 1, kind: input, shape index: {}]
  %s2 = inlined_call_operand.vmem [shape: f32[128,128], index: 2, kind: input, shape index: {}]
  %s3 = inlined_call_operand.vmem [shape: f32[1,128], index: 3, kind: input, shape index: {}]
  %s4 = inlined_call_operand.vmem [shape: f32[128,128], index: 4, kind: input, shape index: {}]
  %s5 = inlined_call_operand.vmem [shape: f32[1,128], index: 5, kind: input, shape index: {}]
  %s6 = inlined_call_operand.vmem [shape: f32[128,128], index: 6, kind: output, shape index: {0}]
  %s7 = inlined_call_operand.vmem [shape: f32[8,128], index: 7, kind: output, shape index: {1}]
  %s8 = inlined_call_operand.vmem [shape: f32[8,128], index: 8, kind: output, shape index: {2}]
  %9 = xla_tuple %s6, %s7, %s8
  %s10 = sld [smem:[#allocation0]]
  $region58: #{gin_forward.9} parent=0
    _
  %s12 = ssub.s32 1, %s10
  %s13 = scalar_select 0, %s12, %s10
  // Predicated region
  $region2: #{gin_forward.9} parent=0 // pred_check
    _
  $region3: #{gin_forward.9} parent=0 // pred_check_branch
    %15 = sbr.rel (0) target = $region5
  $region4: #{gin_forward.9} parent=0 // pred_region
    _
  $region5: #{gin_forward.9} parent=0 // pred_fallthru
    _
  // Predicated region
  $region6: #{gin_forward.9} parent=0 // pred_check
    _
  $region7: #{gin_forward.9} parent=0 // pred_check_branch
    %17 = sbr.rel (0) target = $region9
  $region8: #{gin_forward.9} parent=0 // pred_region
    _
  $region9: #{gin_forward.9} parent=0 // pred_fallthru
    _
  // Predicated region
  $region10: #{gin_forward.9} parent=0 // pred_check
    _
  $region11: #{gin_forward.9} parent=0 // pred_check_branch
    %19 = sbr.rel (0) target = $region13
  $region12: #{gin_forward.9} parent=0 // pred_region
    _
  $region13: #{gin_forward.9} parent=0 // pred_fallthru
    _
  // Predicated region
  $region14: #{gin_forward.9} parent=0 // pred_check
    _
  $region15: #{gin_forward.9} parent=0 // pred_check_branch
    %21 = sbr.rel (0) target = $region17
  $region16: #{gin_forward.9} parent=0 // pred_region
    _
  $region17: #{gin_forward.9} parent=0 // pred_fallthru
    _
  // Predicated region
  $region18: #{gin_forward.9} parent=0 // pred_check
    _
  $region19: #{gin_forward.9} parent=0 // pred_check_branch
    %23 = sbr.rel (0) target = $region21
  $region20: #{gin_forward.9} parent=0 // pred_region
    _
  $region21: #{gin_forward.9} parent=0 // pred_fallthru
    _
  // Predicated region
  $region22: #{gin_forward.9} parent=0 // pred_check
    _
  $region23: #{gin_forward.9} parent=0 // pred_check_branch
    %25 = sbr.rel (0) target = $region25
  $region24: #{gin_forward.9} parent=0 // pred_region
    _
  $region25: #{gin_forward.9} parent=0 // pred_fallthru
    _
  %p27 = scmp.eq.s32.totalorder 0, 0
  // Predicated region
  $region26: #{gin_forward.9} parent=0 // pred_check
    %p28 = pneg %p27
  $region27: #{gin_forward.9} parent=0 // pred_check_branch
    %30 = sbr.rel (%p28) target = $region29
  $region28: #{gin_forward.9} parent=0 // pred_region
    %31 = vst [vmem:[#allocation2] sm:$0xff] 0.0
    %32 = vst [vmem:[#allocation2 + $0x8] sm:$0xff] 0.0
    %33 = vst [vmem:[#allocation2 + $0x10] sm:$0xff] 0.0
    %34 = vst [vmem:[#allocation2 + $0x18] sm:$0xff] 0.0
    %35 = vst [vmem:[#allocation2 + $0x20] sm:$0xff] 0.0
    %36 = vst [vmem:[#allocation2 + $0x28] sm:$0xff] 0.0
    %37 = vst [vmem:[#allocation2 + $0x30] sm:$0xff] 0.0
    %38 = vst [vmem:[#allocation2 + $0x38] sm:$0xff] 0.0
    %39 = vst [vmem:[#allocation2 + $0x40] sm:$0xff] 0.0
    %40 = vst [vmem:[#allocation2 + $0x48] sm:$0xff] 0.0
    %41 = vst [vmem:[#allocation2 + $0x50] sm:$0xff] 0.0
    %42 = vst [vmem:[#allocation2 + $0x58] sm:$0xff] 0.0
    %43 = vst [vmem:[#allocation2 + $0x60] sm:$0xff] 0.0
    %44 = vst [vmem:[#allocation2 + $0x68] sm:$0xff] 0.0
    %45 = vst [vmem:[#allocation2 + $0x70] sm:$0xff] 0.0
    %46 = vst [vmem:[#allocation2 + $0x78] sm:$0xff] 0.0
  $region29: #{gin_forward.9} parent=0 // pred_fallthru
    _
  %s47 = smul.u32 0, 128
  %s48 = sshra.s32 %s47, 3
  %s49 = sand.u32 %s47, 7
  %s50 = smul.addr %s48, 4
  %s51 = scalar_lea.vmem %s1, %s50
  %v52 = vld [vmem:[%s51] sm:$0xf]
  %v53 = vld [vmem:[%s51 + $0x4] sm:$0xf]
  %v54 = vld [vmem:[%s51 + $0x8] sm:$0xf]
  %v55 = vld [vmem:[%s51 + $0xc] sm:$0xf]
  %v56 = vld [vmem:[%s51 + $0x10] sm:$0xf]
  %v57 = vld [vmem:[%s51 + $0x14] sm:$0xf]
  %v58 = vld [vmem:[%s51 + $0x18] sm:$0xf]
  %v59 = vld [vmem:[%s51 + $0x1c] sm:$0xf]
  %v60 = vld [vmem:[%s51 + $0x20] sm:$0xf]
  %v61 = vld [vmem:[%s51 + $0x24] sm:$0xf]
  %v62 = vld [vmem:[%s51 + $0x28] sm:$0xf]
  %v63 = vld [vmem:[%s51 + $0x2c] sm:$0xf]
  %v64 = vld [vmem:[%s51 + $0x30] sm:$0xf]
  %v65 = vld [vmem:[%s51 + $0x34] sm:$0xf]
  %v66 = vld [vmem:[%s51 + $0x38] sm:$0xf]
  %v67 = vld [vmem:[%s51 + $0x3c] sm:$0xf]
  %v68 = vld [vmem:[#allocation2] sm:$0xff]
  %v69 = vld [vmem:[#allocation2 + $0x8] sm:$0xff]
  %v70 = vld [vmem:[#allocation2 + $0x10] sm:$0xff]
  %v71 = vld [vmem:[#allocation2 + $0x18] sm:$0xff]
  %v72 = vld [vmem:[#allocation2 + $0x20] sm:$0xff]
  %v73 = vld [vmem:[#allocation2 + $0x28] sm:$0xff]
  %v74 = vld [vmem:[#allocation2 + $0x30] sm:$0xff]
  %v75 = vld [vmem:[#allocation2 + $0x38] sm:$0xff]
  %v76 = vld [vmem:[#allocation2 + $0x40] sm:$0xff]
  %v77 = vld [vmem:[#allocation2 + $0x48] sm:$0xff]
  %v78 = vld [vmem:[#allocation2 + $0x50] sm:$0xff]
  %v79 = vld [vmem:[#allocation2 + $0x58] sm:$0xff]
  %v80 = vld [vmem:[#allocation2 + $0x60] sm:$0xff]
  %v81 = vld [vmem:[#allocation2 + $0x68] sm:$0xff]
  %v82 = vld [vmem:[#allocation2 + $0x70] sm:$0xff]
  %v83 = vld [vmem:[#allocation2 + $0x78] sm:$0xff]
  %v84 = vld [vmem:[%s0] sm:$0xf]
  %v85 = vld [vmem:[%s0 + $0x4] sm:$0xf]
  %v86 = vld [vmem:[%s0 + $0x8] sm:$0xf]
  %v87 = vld [vmem:[%s0 + $0xc] sm:$0xf]
  %v88 = vld [vmem:[%s0 + $0x10] sm:$0xf]
  %v89 = vld [vmem:[%s0 + $0x14] sm:$0xf]
  %v90 = vld [vmem:[%s0 + $0x18] sm:$0xf]
  %v91 = vld [vmem:[%s0 + $0x1c] sm:$0xf]
  %v92 = vld [vmem:[%s0 + $0x20] sm:$0xf]
  %v93 = vld [vmem:[%s0 + $0x24] sm:$0xf]
  %v94 = vld [vmem:[%s0 + $0x28] sm:$0xf]
  %v95 = vld [vmem:[%s0 + $0x2c] sm:$0xf]
  %v96 = vld [vmem:[%s0 + $0x30] sm:$0xf]
  %v97 = vld [vmem:[%s0 + $0x34] sm:$0xf]
  %v98 = vld [vmem:[%s0 + $0x38] sm:$0xf]
  %v99 = vld [vmem:[%s0 + $0x3c] sm:$0xf]
  %v116 = vunpack.c.l.b16 %v84
  %v117 = vunpack.c.l.b16 %v85
  %v118 = vunpack.c.l.b16 %v86
  %v119 = vunpack.c.l.b16 %v87
  %v120 = vunpack.c.l.b16 %v88
  %v121 = vunpack.c.l.b16 %v89
  %v122 = vunpack.c.l.b16 %v90
  %v123 = vunpack.c.l.b16 %v91
  %v124 = vunpack.c.l.b16 %v92
  %v125 = vunpack.c.l.b16 %v93
  %v126 = vunpack.c.l.b16 %v94
  %v127 = vunpack.c.l.b16 %v95
  %v128 = vunpack.c.l.b16 %v96
  %v129 = vunpack.c.l.b16 %v97
  %v130 = vunpack.c.l.b16 %v98
  %v131 = vunpack.c.l.b16 %v99
  %v132 = vpack.c.b16 %v117, %v116
  %v133 = vpack.c.b16 %v119, %v118
  %v134 = vpack.c.b16 %v121, %v120
  %v135 = vpack.c.b16 %v123, %v122
  %v136 = vpack.c.b16 %v125, %v124
  %v137 = vpack.c.b16 %v127, %v126
  %v138 = vpack.c.b16 %v129, %v128
  %v139 = vpack.c.b16 %v131, %v130
  %v164 = vunpack.c.l.b16 %v52
  %v165 = vunpack.c.l.b16 %v53
  %v166 = vunpack.c.l.b16 %v54
  %v167 = vunpack.c.l.b16 %v55
  %v168 = vunpack.c.l.b16 %v56
  %v169 = vunpack.c.l.b16 %v57
  %v170 = vunpack.c.l.b16 %v58
  %v171 = vunpack.c.l.b16 %v59
  %v172 = vunpack.c.l.b16 %v60
  %v173 = vunpack.c.l.b16 %v61
  %v174 = vunpack.c.l.b16 %v62
  %v175 = vunpack.c.l.b16 %v63
  %v176 = vunpack.c.l.b16 %v64
  %v177 = vunpack.c.l.b16 %v65
  %v178 = vunpack.c.l.b16 %v66
  %v179 = vunpack.c.l.b16 %v67
  %v180 = vpack.c.b16 %v165, %v164
  %v181 = vpack.c.b16 %v167, %v166
  %v182 = vpack.c.b16 %v169, %v168
  %v183 = vpack.c.b16 %v171, %v170
  %v184 = vpack.c.b16 %v173, %v172
  %v185 = vpack.c.b16 %v175, %v174
  %v186 = vpack.c.b16 %v177, %v176
  %v187 = vpack.c.b16 %v179, %v178
  %196 = vmatprep.subr.bf16.mxu0 0
  %197 = vmatpush1.bf16.msra.mxu0 %v180
  %198 = vmatprep.subr.bf16.mxu0 0
  %199 = vmatpush1.bf16.msra.mxu0 %v181
  %200 = vmatprep.subr.bf16.mxu0 0
  %201 = vmatpush1.bf16.msra.mxu0 %v182
  %202 = vmatprep.subr.bf16.mxu0 0
  %203 = vmatpush1.bf16.msra.mxu0 %v183
  %204 = vmatprep.subr.bf16.mxu0 0
  %205 = vmatpush1.bf16.msra.mxu0 %v184
  %206 = vmatprep.subr.bf16.mxu0 0
  %207 = vmatpush1.bf16.msra.mxu0 %v185
  %208 = vmatprep.subr.bf16.mxu0 0
  %209 = vmatpush1.bf16.msra.mxu0 %v186
  %210 = vmatprep.subr.bf16.mxu0 0
  %211 = vmatpush1.bf16.msra.mxu0 %v187
  %212 = vmatprep.subr.bf16.mxu0 0
  %213 = vmatpush1.bf16.msra.mxu0 0
  %214 = vmatprep.subr.bf16.mxu0 0
  %215 = vmatpush1.bf16.msra.mxu0 0
  %216 = vmatprep.subr.bf16.mxu0 0
  %217 = vmatpush1.bf16.msra.mxu0 0
  %218 = vmatprep.subr.bf16.mxu0 0
  %219 = vmatpush1.bf16.msra.mxu0 0
  %220 = vmatprep.subr.bf16.mxu0 0
  %221 = vmatpush1.bf16.msra.mxu0 0
  %222 = vmatprep.subr.bf16.mxu0 0
  %223 = vmatpush1.bf16.msra.mxu0 0
  %224 = vmatprep.subr.bf16.mxu0 0
  %225 = vmatpush1.bf16.msra.mxu0 0
  %226 = vmatprep.subr.bf16.mxu0 0
  %227 = vmatpush1.bf16.msra.mxu0 0
  %228 = vmatprep.mubr.bf16.mxu0 0
  %229 = vmatmul.mubr.bf16.gmra.mrb[0].mxu0 %v132
  %v230 = vpop.f32.mrb[0].mxu0
  %v231 = vadd.f32 0.0, %v230
  %v232 = vpop.f32.mrb[0].mxu0
  %v233 = vpop.f32.mrb[0].mxu0
  %v234 = vadd.f32 0.0, %v233
  %v235 = vpop.f32.mrb[0].mxu0
  %236 = vmatprep.mubr.bf16.mxu0 0
  %237 = vmatmul.mubr.bf16.gmra.mrb[0].mxu0 %v133
  %v238 = vpop.f32.mrb[0].mxu0
  %v239 = vadd.f32 0.0, %v238
  %v240 = vpop.f32.mrb[0].mxu0
  %v241 = vpop.f32.mrb[0].mxu0
  %v242 = vadd.f32 0.0, %v241
  %v243 = vpop.f32.mrb[0].mxu0
  %244 = vmatprep.mubr.bf16.mxu0 0
  %245 = vmatmul.mubr.bf16.gmra.mrb[0].mxu0 %v134
  %v246 = vpop.f32.mrb[0].mxu0
  %v247 = vadd.f32 0.0, %v246
  %v248 = vpop.f32.mrb[0].mxu0
  %v249 = vpop.f32.mrb[0].mxu0
  %v250 = vadd.f32 0.0, %v249
  %v251 = vpop.f32.mrb[0].mxu0
  %252 = vmatprep.mubr.bf16.mxu0 0
  %253 = vmatmul.mubr.bf16.gmra.mrb[0].mxu0 %v135
  %v254 = vpop.f32.mrb[0].mxu0
  %v255 = vadd.f32 0.0, %v254
  %v256 = vpop.f32.mrb[0].mxu0
  %v257 = vpop.f32.mrb[0].mxu0
  %v258 = vadd.f32 0.0, %v257
  %v259 = vpop.f32.mrb[0].mxu0
  %260 = vmatprep.mubr.bf16.mxu0 0
  %261 = vmatmul.mubr.bf16.gmra.mrb[0].mxu0 %v136
  %v262 = vpop.f32.mrb[0].mxu0
  %v263 = vadd.f32 0.0, %v262
  %v264 = vpop.f32.mrb[0].mxu0
  %v265 = vpop.f32.mrb[0].mxu0
  %v266 = vadd.f32 0.0, %v265
  %v267 = vpop.f32.mrb[0].mxu0
  %268 = vmatprep.mubr.bf16.mxu0 0
  %269 = vmatmul.mubr.bf16.gmra.mrb[0].mxu0 %v137
  %v270 = vpop.f32.mrb[0].mxu0
  %v271 = vadd.f32 0.0, %v270
  %v272 = vpop.f32.mrb[0].mxu0
  %v273 = vpop.f32.mrb[0].mxu0
  %v274 = vadd.f32 0.0, %v273
  %v275 = vpop.f32.mrb[0].mxu0
  %276 = vmatprep.mubr.bf16.mxu0 0
  %277 = vmatmul.mubr.bf16.gmra.mrb[0].mxu0 %v138
  %v278 = vpop.f32.mrb[0].mxu0
  %v279 = vadd.f32 0.0, %v278
  %v280 = vpop.f32.mrb[0].mxu0
  %v281 = vpop.f32.mrb[0].mxu0
  %v282 = vadd.f32 0.0, %v281
  %v283 = vpop.f32.mrb[0].mxu0
  %284 = vmatprep.mubr.bf16.mxu0 0
  %285 = vmatmul.mubr.bf16.gmra.mrb[0].mxu0 %v139
  %v286 = vpop.f32.mrb[0].mxu0
  %v287 = vadd.f32 0.0, %v286
  %v288 = vpop.f32.mrb[0].mxu0
  %v289 = vpop.f32.mrb[0].mxu0
  %v290 = vadd.f32 0.0, %v289
  %v291 = vpop.f32.mrb[0].mxu0
  %292 = vdwg.mxu0
  %v293 = vadd.f32 %v68, %v231
  %v294 = vadd.f32 %v69, %v234
  %v295 = vadd.f32 %v70, %v239
  %v296 = vadd.f32 %v71, %v242
  %v297 = vadd.f32 %v72, %v247
  %v298 = vadd.f32 %v73, %v250
  %v299 = vadd.f32 %v74, %v255
  %v300 = vadd.f32 %v75, %v258
  %v301 = vadd.f32 %v76, %v263
  %v302 = vadd.f32 %v77, %v266
  %v303 = vadd.f32 %v78, %v271
  %v304 = vadd.f32 %v79, %v274
  %v305 = vadd.f32 %v80, %v279
  %v306 = vadd.f32 %v81, %v282
  %v307 = vadd.f32 %v82, %v287
  %v308 = vadd.f32 %v83, %v290
  %309 = vst [vmem:[#allocation2] sm:$0xff] %v293
  %310 = vst [vmem:[#allocation2 + $0x8] sm:$0xff] %v294
  %311 = vst [vmem:[#allocation2 + $0x10] sm:$0xff] %v295
  %312 = vst [vmem:[#allocation2 + $0x18] sm:$0xff] %v296
  %313 = vst [vmem:[#allocation2 + $0x20] sm:$0xff] %v297
  %314 = vst [vmem:[#allocation2 + $0x28] sm:$0xff] %v298
  %315 = vst [vmem:[#allocation2 + $0x30] sm:$0xff] %v299
  %316 = vst [vmem:[#allocation2 + $0x38] sm:$0xff] %v300
  %317 = vst [vmem:[#allocation2 + $0x40] sm:$0xff] %v301
  %318 = vst [vmem:[#allocation2 + $0x48] sm:$0xff] %v302
  %319 = vst [vmem:[#allocation2 + $0x50] sm:$0xff] %v303
  %320 = vst [vmem:[#allocation2 + $0x58] sm:$0xff] %v304
  %321 = vst [vmem:[#allocation2 + $0x60] sm:$0xff] %v305
  %322 = vst [vmem:[#allocation2 + $0x68] sm:$0xff] %v306
  %323 = vst [vmem:[#allocation2 + $0x70] sm:$0xff] %v307
  %324 = vst [vmem:[#allocation2 + $0x78] sm:$0xff] %v308
  // Predicated region
  $region30: #{gin_forward.9} parent=0 // pred_check
    %p325 = pneg %p27
  $region31: #{gin_forward.9} parent=0 // pred_check_branch
    %327 = sbr.rel (%p325) target = $region33
  $region32: #{gin_forward.9} parent=0 // pred_region
    %v328 = vld [vmem:[#allocation2] sm:$0xff]
    %v329 = vld [vmem:[#allocation2 + $0x8] sm:$0xff]
    %v330 = vld [vmem:[#allocation2 + $0x10] sm:$0xff]
    %v331 = vld [vmem:[#allocation2 + $0x18] sm:$0xff]
    %v332 = vld [vmem:[#allocation2 + $0x20] sm:$0xff]
    %v333 = vld [vmem:[#allocation2 + $0x28] sm:$0xff]
    %v334 = vld [vmem:[#allocation2 + $0x30] sm:$0xff]
    %v335 = vld [vmem:[#allocation2 + $0x38] sm:$0xff]
    %v336 = vld [vmem:[#allocation2 + $0x40] sm:$0xff]
    %v337 = vld [vmem:[#allocation2 + $0x48] sm:$0xff]
    %v338 = vld [vmem:[#allocation2 + $0x50] sm:$0xff]
    %v339 = vld [vmem:[#allocation2 + $0x58] sm:$0xff]
    %v340 = vld [vmem:[#allocation2 + $0x60] sm:$0xff]
    %v341 = vld [vmem:[#allocation2 + $0x68] sm:$0xff]
    %v342 = vld [vmem:[#allocation2 + $0x70] sm:$0xff]
    %v343 = vld [vmem:[#allocation2 + $0x78] sm:$0xff]
    %v344 = vld [vmem:[%s2] sm:$0xff]
    %v345 = vld [vmem:[%s2 + $0x8] sm:$0xff]
    %v346 = vld [vmem:[%s2 + $0x10] sm:$0xff]
    %v347 = vld [vmem:[%s2 + $0x18] sm:$0xff]
    %v348 = vld [vmem:[%s2 + $0x20] sm:$0xff]
    %v349 = vld [vmem:[%s2 + $0x28] sm:$0xff]
    %v350 = vld [vmem:[%s2 + $0x30] sm:$0xff]
    %v351 = vld [vmem:[%s2 + $0x38] sm:$0xff]
    %v352 = vld [vmem:[%s2 + $0x40] sm:$0xff]
    %v353 = vld [vmem:[%s2 + $0x48] sm:$0xff]
    %v354 = vld [vmem:[%s2 + $0x50] sm:$0xff]
    %v355 = vld [vmem:[%s2 + $0x58] sm:$0xff]
    %v356 = vld [vmem:[%s2 + $0x60] sm:$0xff]
    %v357 = vld [vmem:[%s2 + $0x68] sm:$0xff]
    %v358 = vld [vmem:[%s2 + $0x70] sm:$0xff]
    %v359 = vld [vmem:[%s2 + $0x78] sm:$0xff]
    %v360 = vadd.f32 %v328, %v344
    %v361 = vadd.f32 %v329, %v345
    %v362 = vadd.f32 %v330, %v346
    %v363 = vadd.f32 %v331, %v347
    %v364 = vadd.f32 %v332, %v348
    %v365 = vadd.f32 %v333, %v349
    %v366 = vadd.f32 %v334, %v350
    %v367 = vadd.f32 %v335, %v351
    %v368 = vadd.f32 %v336, %v352
    %v369 = vadd.f32 %v337, %v353
    %v370 = vadd.f32 %v338, %v354
    %v371 = vadd.f32 %v339, %v355
    %v372 = vadd.f32 %v340, %v356
    %v373 = vadd.f32 %v341, %v357
    %v374 = vadd.f32 %v342, %v358
    %v375 = vadd.f32 %v343, %v359
    %v376 = vld [vmem:[%s3] sm:$0x1]
    %v378 = vlaneseq
    %v379 = vshrl.u32 %v378, 7
    %v380 = vsub.s32 0, %v379
    %v381 = vrot.slane %v376, %v380
    %v383 = vadd.f32 %v360, %v381
    %v384 = vadd.f32 %v361, %v381
    %v385 = vadd.f32 %v362, %v381
    %v386 = vadd.f32 %v363, %v381
    %v387 = vadd.f32 %v364, %v381
    %v388 = vadd.f32 %v365, %v381
    %v389 = vadd.f32 %v366, %v381
    %v390 = vadd.f32 %v367, %v381
    %v391 = vadd.f32 %v368, %v381
    %v392 = vadd.f32 %v369, %v381
    %v393 = vadd.f32 %v370, %v381
    %v394 = vadd.f32 %v371, %v381
    %v395 = vadd.f32 %v372, %v381
    %v396 = vadd.f32 %v373, %v381
    %v397 = vadd.f32 %v374, %v381
    %v398 = vadd.f32 %v375, %v381
    %v399 = vmax.f32 %v383, 0.0
    %v400 = vmax.f32 %v384, 0.0
    %v401 = vmax.f32 %v385, 0.0
    %v402 = vmax.f32 %v386, 0.0
    %v403 = vmax.f32 %v387, 0.0
    %v404 = vmax.f32 %v388, 0.0
    %v405 = vmax.f32 %v389, 0.0
    %v406 = vmax.f32 %v390, 0.0
    %v407 = vmax.f32 %v391, 0.0
    %v408 = vmax.f32 %v392, 0.0
    %v409 = vmax.f32 %v393, 0.0
    %v410 = vmax.f32 %v394, 0.0
    %v411 = vmax.f32 %v395, 0.0
    %v412 = vmax.f32 %v396, 0.0
    %v413 = vmax.f32 %v397, 0.0
    %v414 = vmax.f32 %v398, 0.0
    %v415 = vld [vmem:[%s4] sm:$0xff]
    %v416 = vld [vmem:[%s4 + $0x8] sm:$0xff]
    %v417 = vld [vmem:[%s4 + $0x10] sm:$0xff]
    %v418 = vld [vmem:[%s4 + $0x18] sm:$0xff]
    %v419 = vld [vmem:[%s4 + $0x20] sm:$0xff]
    %v420 = vld [vmem:[%s4 + $0x28] sm:$0xff]
    %v421 = vld [vmem:[%s4 + $0x30] sm:$0xff]
    %v422 = vld [vmem:[%s4 + $0x38] sm:$0xff]
    %v423 = vld [vmem:[%s4 + $0x40] sm:$0xff]
    %v424 = vld [vmem:[%s4 + $0x48] sm:$0xff]
    %v425 = vld [vmem:[%s4 + $0x50] sm:$0xff]
    %v426 = vld [vmem:[%s4 + $0x58] sm:$0xff]
    %v427 = vld [vmem:[%s4 + $0x60] sm:$0xff]
    %v428 = vld [vmem:[%s4 + $0x68] sm:$0xff]
    %v429 = vld [vmem:[%s4 + $0x70] sm:$0xff]
    %v430 = vld [vmem:[%s4 + $0x78] sm:$0xff]
    %v431 = vld [vmem:[%s5] sm:$0x1]
    %v433 = vlaneseq
    %v434 = vshrl.u32 %v433, 7
    %v435 = vsub.s32 0, %v434
    %v436 = vrot.slane %v431, %v435
    %438 = vmatprep.subr.mxu0 0.0
    %439 = vmatpush1.msra.mxu0 %v415
    %440 = vmatprep.subr.mxu0 0.0
    %441 = vmatpush1.msra.mxu0 %v416
    %442 = vmatprep.subr.mxu0 0.0
    %443 = vmatpush1.msra.mxu0 %v417
    %444 = vmatprep.subr.mxu0 0.0
    %445 = vmatpush1.msra.mxu0 %v418
    %446 = vmatprep.subr.mxu0 0.0
    %447 = vmatpush1.msra.mxu0 %v419
    %448 = vmatprep.subr.mxu0 0.0
    %449 = vmatpush1.msra.mxu0 %v420
    %450 = vmatprep.subr.mxu0 0.0
    %451 = vmatpush1.msra.mxu0 %v421
    %452 = vmatprep.subr.mxu0 0.0
    %453 = vmatpush1.msra.mxu0 %v422
    %454 = vmatprep.subr.mxu0 0.0
    %455 = vmatpush1.msra.mxu0 %v423
    %456 = vmatprep.subr.mxu0 0.0
    %457 = vmatpush1.msra.mxu0 %v424
    %458 = vmatprep.subr.mxu0 0.0
    %459 = vmatpush1.msra.mxu0 %v425
    %460 = vmatprep.subr.mxu0 0.0
    %461 = vmatpush1.msra.mxu0 %v426
    %462 = vmatprep.subr.mxu0 0.0
    %463 = vmatpush1.msra.mxu0 %v427
    %464 = vmatprep.subr.mxu0 0.0
    %465 = vmatpush1.msra.mxu0 %v428
    %466 = vmatprep.subr.mxu0 0.0
    %467 = vmatpush1.msra.mxu0 %v429
    %468 = vmatprep.subr.mxu0 0.0
    %469 = vmatpush1.msra.mxu0 %v430
    %470 = vmatprep.subr.mxu0 0.0
    %471 = vmatpush1.msra.mxu0 0.0
    %472 = vmatprep.subr.mxu0 0.0
    %473 = vmatpush1.msra.mxu0 0.0
    %474 = vmatprep.subr.mxu0 0.0
    %475 = vmatpush1.msra.mxu0 0.0
    %476 = vmatprep.subr.mxu0 0.0
    %477 = vmatpush1.msra.mxu0 0.0
    %478 = vmatprep.subr.mxu0 0.0
    %479 = vmatpush1.msra.mxu0 0.0
    %480 = vmatprep.subr.mxu0 0.0
    %481 = vmatpush1.msra.mxu0 0.0
    %482 = vmatprep.subr.mxu0 0.0
    %483 = vmatpush1.msra.mxu0 0.0
    %484 = vmatprep.subr.mxu0 0.0
    %485 = vmatpush1.msra.mxu0 0.0
    %486 = vmatprep.subr.mxu0 0.0
    %487 = vmatpush1.msra.mxu0 0.0
    %488 = vmatprep.subr.mxu0 0.0
    %489 = vmatpush1.msra.mxu0 0.0
    %490 = vmatprep.subr.mxu0 0.0
    %491 = vmatpush1.msra.mxu0 0.0
    %492 = vmatprep.subr.mxu0 0.0
    %493 = vmatpush1.msra.mxu0 0.0
    %494 = vmatprep.subr.mxu0 0.0
    %495 = vmatpush1.msra.mxu0 0.0
    %496 = vmatprep.subr.mxu0 0.0
    %497 = vmatpush1.msra.mxu0 0.0
    %498 = vmatprep.subr.mxu0 0.0
    %499 = vmatpush1.msra.mxu0 0.0
    %500 = vmatprep.subr.mxu0 0.0
    %501 = vmatpush1.msra.mxu0 0.0
    %502 = vmatprep.mubr.f32.mxu0 0.0
    %503 = vmatmul.mubr.f32.gmra.mrb[0].mxu0 %v399
    %v504 = vpop.f32.mrb[0].mxu0
    %v505 = vadd.f32 %v436, %v504
    %v506 = vpop.f32.mrb[0].mxu0
    %507 = vmatprep.mubr.f32.mxu0 0.0
    %508 = vmatmul.mubr.f32.gmra.mrb[0].mxu0 %v400
    %v509 = vpop.f32.mrb[0].mxu0
    %v510 = vadd.f32 %v436, %v509
    %v511 = vpop.f32.mrb[0].mxu0
    %512 = vmatprep.mubr.f32.mxu0 0.0
    %513 = vmatmul.mubr.f32.gmra.mrb[0].mxu0 %v401
    %v514 = vpop.f32.mrb[0].mxu0
    %v515 = vadd.f32 %v436, %v514
    %v516 = vpop.f32.mrb[0].mxu0
    %517 = vmatprep.mubr.f32.mxu0 0.0
    %518 = vmatmul.mubr.f32.gmra.mrb[0].mxu0 %v402
    %v519 = vpop.f32.mrb[0].mxu0
    %v520 = vadd.f32 %v436, %v519
    %v521 = vpop.f32.mrb[0].mxu0
    %522 = vmatprep.mubr.f32.mxu0 0.0
    %523 = vmatmul.mubr.f32.gmra.mrb[0].mxu0 %v403
    %v524 = vpop.f32.mrb[0].mxu0
    %v525 = vadd.f32 %v436, %v524
    %v526 = vpop.f32.mrb[0].mxu0
    %527 = vmatprep.mubr.f32.mxu0 0.0
    %528 = vmatmul.mubr.f32.gmra.mrb[0].mxu0 %v404
    %v529 = vpop.f32.mrb[0].mxu0
    %v530 = vadd.f32 %v436, %v529
    %v531 = vpop.f32.mrb[0].mxu0
    %532 = vmatprep.mubr.f32.mxu0 0.0
    %533 = vmatmul.mubr.f32.gmra.mrb[0].mxu0 %v405
    %v534 = vpop.f32.mrb[0].mxu0
    %v535 = vadd.f32 %v436, %v534
    %v536 = vpop.f32.mrb[0].mxu0
    %537 = vmatprep.mubr.f32.mxu0 0.0
    %538 = vmatmul.mubr.f32.gmra.mrb[0].mxu0 %v406
    %v539 = vpop.f32.mrb[0].mxu0
    %v540 = vadd.f32 %v436, %v539
    %v541 = vpop.f32.mrb[0].mxu0
    %542 = vmatprep.mubr.f32.mxu0 0.0
    %543 = vmatmul.mubr.f32.gmra.mrb[0].mxu0 %v407
    %v544 = vpop.f32.mrb[0].mxu0
    %v545 = vadd.f32 %v436, %v544
    %v546 = vpop.f32.mrb[0].mxu0
    %547 = vmatprep.mubr.f32.mxu0 0.0
    %548 = vmatmul.mubr.f32.gmra.mrb[0].mxu0 %v408
    %v549 = vpop.f32.mrb[0].mxu0
    %v550 = vadd.f32 %v436, %v549
    %v551 = vpop.f32.mrb[0].mxu0
    %552 = vmatprep.mubr.f32.mxu0 0.0
    %553 = vmatmul.mubr.f32.gmra.mrb[0].mxu0 %v409
    %v554 = vpop.f32.mrb[0].mxu0
    %v555 = vadd.f32 %v436, %v554
    %v556 = vpop.f32.mrb[0].mxu0
    %557 = vmatprep.mubr.f32.mxu0 0.0
    %558 = vmatmul.mubr.f32.gmra.mrb[0].mxu0 %v410
    %v559 = vpop.f32.mrb[0].mxu0
    %v560 = vadd.f32 %v436, %v559
    %v561 = vpop.f32.mrb[0].mxu0
    %562 = vmatprep.mubr.f32.mxu0 0.0
    %563 = vmatmul.mubr.f32.gmra.mrb[0].mxu0 %v411
    %v564 = vpop.f32.mrb[0].mxu0
    %v565 = vadd.f32 %v436, %v564
    %v566 = vpop.f32.mrb[0].mxu0
    %567 = vmatprep.mubr.f32.mxu0 0.0
    %568 = vmatmul.mubr.f32.gmra.mrb[0].mxu0 %v412
    %v569 = vpop.f32.mrb[0].mxu0
    %v570 = vadd.f32 %v436, %v569
    %v571 = vpop.f32.mrb[0].mxu0
    %572 = vmatprep.mubr.f32.mxu0 0.0
    %573 = vmatmul.mubr.f32.gmra.mrb[0].mxu0 %v413
    %v574 = vpop.f32.mrb[0].mxu0
    %v575 = vadd.f32 %v436, %v574
    %v576 = vpop.f32.mrb[0].mxu0
    %577 = vmatprep.mubr.f32.mxu0 0.0
    %578 = vmatmul.mubr.f32.gmra.mrb[0].mxu0 %v414
    %v579 = vpop.f32.mrb[0].mxu0
    %v580 = vadd.f32 %v436, %v579
    %v581 = vpop.f32.mrb[0].mxu0
    %582 = vdwg.mxu0
    %v583 = vmax.f32 %v505, 0.0
    %v584 = vmax.f32 %v510, 0.0
    %v585 = vmax.f32 %v515, 0.0
    %v586 = vmax.f32 %v520, 0.0
    %v587 = vmax.f32 %v525, 0.0
    %v588 = vmax.f32 %v530, 0.0
    %v589 = vmax.f32 %v535, 0.0
    %v590 = vmax.f32 %v540, 0.0
    %v591 = vmax.f32 %v545, 0.0
    %v592 = vmax.f32 %v550, 0.0
    %v593 = vmax.f32 %v555, 0.0
    %v594 = vmax.f32 %v560, 0.0
    %v595 = vmax.f32 %v565, 0.0
    %v596 = vmax.f32 %v570, 0.0
    %v597 = vmax.f32 %v575, 0.0
    %v598 = vmax.f32 %v580, 0.0
    %s599 = smul.u32 0, 128
    %v600 = vlaneseq
    %v601 = vshrl.u32 %v600, 7
    %v602 = vadd.s32 %v601, 8
    %v603 = vadd.s32 %v601, 16
    %v604 = vadd.s32 %v601, 24
    %v605 = vadd.s32 %v601, 32
    %v606 = vadd.s32 %v601, 40
    %v607 = vadd.s32 %v601, 48
    %v608 = vadd.s32 %v601, 56
    %v609 = vadd.s32 %v601, 64
    %v610 = vadd.s32 %v601, 72
    %v611 = vadd.s32 %v601, 80
    %v612 = vadd.s32 %v601, 88
    %v613 = vadd.s32 %v601, 96
    %v614 = vadd.s32 %v601, 104
    %v615 = vadd.s32 %v601, 112
    %v616 = vadd.s32 %v601, 120
    %v617 = vstv %s599
    %v618 = vadd.s32 %v617, %v601
    %v619 = vadd.s32 %v617, %v602
    %v620 = vadd.s32 %v617, %v603
    %v621 = vadd.s32 %v617, %v604
    %v622 = vadd.s32 %v617, %v605
    %v623 = vadd.s32 %v617, %v606
    %v624 = vadd.s32 %v617, %v607
    %v625 = vadd.s32 %v617, %v608
    %v626 = vadd.s32 %v617, %v609
    %v627 = vadd.s32 %v617, %v610
    %v628 = vadd.s32 %v617, %v611
    %v629 = vadd.s32 %v617, %v612
    %v630 = vadd.s32 %v617, %v613
    %v631 = vadd.s32 %v617, %v614
    %v632 = vadd.s32 %v617, %v615
    %v633 = vadd.s32 %v617, %v616
    %vm634 = vcmp.lt.s32.totalorder %v618, 16
    %vm635 = vcmp.lt.s32.totalorder %v619, 16
    %vm636 = vcmp.lt.s32.totalorder %v620, 16
    %vm637 = vcmp.lt.s32.totalorder %v621, 16
    %vm638 = vcmp.lt.s32.totalorder %v622, 16
    %vm639 = vcmp.lt.s32.totalorder %v623, 16
    %vm640 = vcmp.lt.s32.totalorder %v624, 16
    %vm641 = vcmp.lt.s32.totalorder %v625, 16
    %vm642 = vcmp.lt.s32.totalorder %v626, 16
    %vm643 = vcmp.lt.s32.totalorder %v627, 16
    %vm644 = vcmp.lt.s32.totalorder %v628, 16
    %vm645 = vcmp.lt.s32.totalorder %v629, 16
    %vm646 = vcmp.lt.s32.totalorder %v630, 16
    %vm647 = vcmp.lt.s32.totalorder %v631, 16
    %vm648 = vcmp.lt.s32.totalorder %v632, 16
    %vm649 = vcmp.lt.s32.totalorder %v633, 16
    %v650 = vsel %vm634, %v583, 0.0
    %v651 = vsel %vm635, %v584, 0.0
    %v652 = vsel %vm636, %v585, 0.0
    %v653 = vsel %vm637, %v586, 0.0
    %v654 = vsel %vm638, %v587, 0.0
    %v655 = vsel %vm639, %v588, 0.0
    %v656 = vsel %vm640, %v589, 0.0
    %v657 = vsel %vm641, %v590, 0.0
    %v658 = vsel %vm642, %v591, 0.0
    %v659 = vsel %vm643, %v592, 0.0
    %v660 = vsel %vm644, %v593, 0.0
    %v661 = vsel %vm645, %v594, 0.0
    %v662 = vsel %vm646, %v595, 0.0
    %v663 = vsel %vm647, %v596, 0.0
    %v664 = vsel %vm648, %v597, 0.0
    %v665 = vsel %vm649, %v598, 0.0
    %666 = vst [vmem:[%s6] sm:$0xff] %v650
    %667 = vst [vmem:[%s6 + $0x8] sm:$0xff] %v651
    %668 = vst [vmem:[%s6 + $0x10] sm:$0xff] %v652
    %669 = vst [vmem:[%s6 + $0x18] sm:$0xff] %v653
    %670 = vst [vmem:[%s6 + $0x20] sm:$0xff] %v654
    %671 = vst [vmem:[%s6 + $0x28] sm:$0xff] %v655
    %672 = vst [vmem:[%s6 + $0x30] sm:$0xff] %v656
    %673 = vst [vmem:[%s6 + $0x38] sm:$0xff] %v657
    %674 = vst [vmem:[%s6 + $0x40] sm:$0xff] %v658
    %675 = vst [vmem:[%s6 + $0x48] sm:$0xff] %v659
    %676 = vst [vmem:[%s6 + $0x50] sm:$0xff] %v660
    %677 = vst [vmem:[%s6 + $0x58] sm:$0xff] %v661
    %678 = vst [vmem:[%s6 + $0x60] sm:$0xff] %v662
    %679 = vst [vmem:[%s6 + $0x68] sm:$0xff] %v663
    %680 = vst [vmem:[%s6 + $0x70] sm:$0xff] %v664
    %681 = vst [vmem:[%s6 + $0x78] sm:$0xff] %v665
    %682 = vst [vmem:[%s7] sm:$0xff] 0.0
    %683 = vst [vmem:[%s8] sm:$0xff] 0.0
    %v684 = vadd.f32 %v650, %v651
    %v685 = vadd.f32 %v684, %v652
    %v686 = vadd.f32 %v685, %v653
    %v687 = vadd.f32 %v686, %v654
    %v688 = vadd.f32 %v687, %v655
    %v689 = vadd.f32 %v688, %v656
    %v690 = vadd.f32 %v689, %v657
    %v691 = vadd.f32 %v690, %v658
    %v692 = vadd.f32 %v691, %v659
    %v693 = vadd.f32 %v692, %v660
    %v694 = vadd.f32 %v693, %v661
    %v695 = vadd.f32 %v694, %v662
    %v696 = vadd.f32 %v695, %v663
    %v697 = vadd.f32 %v696, %v664
    %v698 = vadd.f32 %v697, %v665
    %v699 = vrot.slane %v698, 4
    %v700 = vadd.f32 %v698, %v699
    %v701 = vrot.slane %v700, 2
    %v702 = vadd.f32 %v700, %v701
    %v703 = vrot.slane %v702, 1
    %v704 = vadd.f32 %v702, %v703
    %705 = vst [vmem:[%s7] sm:$0x1] %v704
    %v706 = vmul.f32 %v650, %v650
    %v707 = vmul.f32 %v651, %v651
    %v708 = vmul.f32 %v652, %v652
    %v709 = vmul.f32 %v653, %v653
    %v710 = vmul.f32 %v654, %v654
    %v711 = vmul.f32 %v655, %v655
    %v712 = vmul.f32 %v656, %v656
    %v713 = vmul.f32 %v657, %v657
    %v714 = vmul.f32 %v658, %v658
    %v715 = vmul.f32 %v659, %v659
    %v716 = vmul.f32 %v660, %v660
    %v717 = vmul.f32 %v661, %v661
    %v718 = vmul.f32 %v662, %v662
    %v719 = vmul.f32 %v663, %v663
    %v720 = vmul.f32 %v664, %v664
    %v721 = vmul.f32 %v665, %v665
    %v722 = vadd.f32 %v706, %v707
    %v723 = vadd.f32 %v722, %v708
    %v724 = vadd.f32 %v723, %v709
    %v725 = vadd.f32 %v724, %v710
    %v726 = vadd.f32 %v725, %v711
    %v727 = vadd.f32 %v726, %v712
    %v728 = vadd.f32 %v727, %v713
    %v729 = vadd.f32 %v728, %v714
    %v730 = vadd.f32 %v729, %v715
    %v731 = vadd.f32 %v730, %v716
    %v732 = vadd.f32 %v731, %v717
    %v733 = vadd.f32 %v732, %v718
    %v734 = vadd.f32 %v733, %v719
    %v735 = vadd.f32 %v734, %v720
    %v736 = vadd.f32 %v735, %v721
    %v737 = vrot.slane %v736, 4
    %v738 = vadd.f32 %v736, %v737
    %v739 = vrot.slane %v738, 2
    %v740 = vadd.f32 %v738, %v739
    %v741 = vrot.slane %v740, 1
    %v742 = vadd.f32 %v740, %v741
    %743 = vst [vmem:[%s8] sm:$0x1] %v742
  $region33: #{gin_forward.9} parent=0 // pred_fallthru
    _
  // Predicated region
  $region34: #{gin_forward.9} parent=0 // pred_check
    _
  $region35: #{gin_forward.9} parent=0 // pred_check_branch
    %745 = sbr.rel (0) target = $region37
  $region36: #{gin_forward.9} parent=0 // pred_region
    _
  $region37: #{gin_forward.9} parent=0 // pred_fallthru
    _
  // Predicated region
  $region38: #{gin_forward.9} parent=0 // pred_check
    _
  $region39: #{gin_forward.9} parent=0 // pred_check_branch
    %747 = sbr.rel (0) target = $region41
  $region40: #{gin_forward.9} parent=0 // pred_region
    _
  $region41: #{gin_forward.9} parent=0 // pred_fallthru
    _
  // Predicated region
  $region42: #{gin_forward.9} parent=0 // pred_check
    _
  $region43: #{gin_forward.9} parent=0 // pred_check_branch
    %749 = sbr.rel (0) target = $region45
  $region44: #{gin_forward.9} parent=0 // pred_region
    _
  $region45: #{gin_forward.9} parent=0 // pred_fallthru
    _
  // Predicated region
  $region46: #{gin_forward.9} parent=0 // pred_check
    _
  $region47: #{gin_forward.9} parent=0 // pred_check_branch
    %751 = sbr.rel (0) target = $region49
  $region48: #{gin_forward.9} parent=0 // pred_region
    _
  $region49: #{gin_forward.9} parent=0 // pred_fallthru
    _
  // Predicated region
  $region50: #{gin_forward.9} parent=0 // pred_check
    _
  $region51: #{gin_forward.9} parent=0 // pred_check_branch
    %753 = sbr.rel (0) target = $region53
  $region52: #{gin_forward.9} parent=0 // pred_region
    _
  $region53: #{gin_forward.9} parent=0 // pred_fallthru
    _
  // Predicated region
  $region54: #{gin_forward.9} parent=0 // pred_check
    _
  $region55: #{gin_forward.9} parent=0 // pred_check_branch
    %755 = sbr.rel (0) target = $region57
  $region56: #{gin_forward.9} parent=0 // pred_region
    _
  $region57: #{gin_forward.9} parent=0 // pred_fallthru
    _

// kernel: gin_forward.14
$region0: #{gin_forward.14}
  #allocation0 [shape = 'u32[]', space=smem, size = 0x4, offset = 0x4, fixed_abs, tag = 'smem constant byte address 0x4 - core index']
  #allocation1 [shape = 'u32[144,128]{1,0:T(1,128)}', space=vmem, size = 0x12000, scoped, tag = 'internal scratch']
  %s0 = inlined_call_operand.vmem [shape: f32[128,128], index: 0, kind: input, shape index: {}]
  %s1 = inlined_call_operand.vmem [shape: f32[8,128], index: 1, kind: input, shape index: {}]
  %s2 = inlined_call_operand.vmem [shape: f32[8,128], index: 2, kind: input, shape index: {}]
  %s3 = inlined_call_operand.vmem [shape: f32[1,128], index: 3, kind: input, shape index: {}]
  %s4 = inlined_call_operand.vmem [shape: f32[1,128], index: 4, kind: input, shape index: {}]
  %s5 = inlined_call_operand.vmem [shape: f32[128,128], index: 5, kind: output, shape index: {}]
  %s6 = sld [smem:[#allocation0]]
  $region30: #{gin_forward.14} parent=0
    _
  %s8 = ssub.s32 1, %s6
  %s9 = scalar_select 0, %s8, %s6
  // Predicated region
  $region2: #{gin_forward.14} parent=0 // pred_check
    _
  $region3: #{gin_forward.14} parent=0 // pred_check_branch
    %11 = sbr.rel (0) target = $region5
  $region4: #{gin_forward.14} parent=0 // pred_region
    _
  $region5: #{gin_forward.14} parent=0 // pred_fallthru
    _
  // Predicated region
  $region6: #{gin_forward.14} parent=0 // pred_check
    _
  $region7: #{gin_forward.14} parent=0 // pred_check_branch
    %13 = sbr.rel (0) target = $region9
  $region8: #{gin_forward.14} parent=0 // pred_region
    _
  $region9: #{gin_forward.14} parent=0 // pred_fallthru
    _
  // Predicated region
  $region10: #{gin_forward.14} parent=0 // pred_check
    _
  $region11: #{gin_forward.14} parent=0 // pred_check_branch
    %15 = sbr.rel (0) target = $region13
  $region12: #{gin_forward.14} parent=0 // pred_region
    _
  $region13: #{gin_forward.14} parent=0 // pred_fallthru
    _
  // Predicated region
  $region14: #{gin_forward.14} parent=0 // pred_check
    _
  $region15: #{gin_forward.14} parent=0 // pred_check_branch
    %17 = sbr.rel (0) target = $region17
  $region16: #{gin_forward.14} parent=0 // pred_region
    _
  $region17: #{gin_forward.14} parent=0 // pred_fallthru
    _
  // Predicated region
  $region18: #{gin_forward.14} parent=0 // pred_check
    _
  $region19: #{gin_forward.14} parent=0 // pred_check_branch
    %19 = sbr.rel (0) target = $region21
  $region20: #{gin_forward.14} parent=0 // pred_region
    _
  $region21: #{gin_forward.14} parent=0 // pred_fallthru
    _
  %v20 = vld [vmem:[%s1] sm:$0xff]
  %v21 = vrot.slane %v20, 4
  %v22 = vadd.f32 %v20, %v21
  %v23 = vrot.slane %v22, 2
  %v24 = vadd.f32 %v22, %v23
  %v25 = vrot.slane %v24, 1
  %v26 = vadd.f32 %v24, %v25
  %v27 = vmul.f32 %v26, 0.0625
  %v28 = vld [vmem:[%s2] sm:$0xff]
  %v29 = vrot.slane %v28, 4
  %v30 = vadd.f32 %v28, %v29
  %v31 = vrot.slane %v30, 2
  %v32 = vadd.f32 %v30, %v31
  %v33 = vrot.slane %v32, 1
  %v34 = vadd.f32 %v32, %v33
  %v35 = vmul.f32 %v34, 0.0625
  %v36 = vmul.f32 %v27, %v27
  %v37 = vsub.f32 %v35, %v36
  %v38 = vadd.f32 %v37, 1e-05
  %v39 = vrsqrt.pop %v38
  %v40 = vld [vmem:[%s3] sm:$0x1]
  %v41 = vmul.f32 %v39, %v40
  %v42 = vld [vmem:[%s0] sm:$0xff]
  %v43 = vld [vmem:[%s0 + $0x8] sm:$0xff]
  %v44 = vld [vmem:[%s0 + $0x10] sm:$0xff]
  %v45 = vld [vmem:[%s0 + $0x18] sm:$0xff]
  %v46 = vld [vmem:[%s0 + $0x20] sm:$0xff]
  %v47 = vld [vmem:[%s0 + $0x28] sm:$0xff]
  %v48 = vld [vmem:[%s0 + $0x30] sm:$0xff]
  %v49 = vld [vmem:[%s0 + $0x38] sm:$0xff]
  %v50 = vld [vmem:[%s0 + $0x40] sm:$0xff]
  %v51 = vld [vmem:[%s0 + $0x48] sm:$0xff]
  %v52 = vld [vmem:[%s0 + $0x50] sm:$0xff]
  %v53 = vld [vmem:[%s0 + $0x58] sm:$0xff]
  %v54 = vld [vmem:[%s0 + $0x60] sm:$0xff]
  %v55 = vld [vmem:[%s0 + $0x68] sm:$0xff]
  %v56 = vld [vmem:[%s0 + $0x70] sm:$0xff]
  %v57 = vld [vmem:[%s0 + $0x78] sm:$0xff]
  %v58 = vsub.f32 %v42, %v27
  %v59 = vsub.f32 %v43, %v27
  %v60 = vsub.f32 %v44, %v27
  %v61 = vsub.f32 %v45, %v27
  %v62 = vsub.f32 %v46, %v27
  %v63 = vsub.f32 %v47, %v27
  %v64 = vsub.f32 %v48, %v27
  %v65 = vsub.f32 %v49, %v27
  %v66 = vsub.f32 %v50, %v27
  %v67 = vsub.f32 %v51, %v27
  %v68 = vsub.f32 %v52, %v27
  %v69 = vsub.f32 %v53, %v27
  %v70 = vsub.f32 %v54, %v27
  %v71 = vsub.f32 %v55, %v27
  %v72 = vsub.f32 %v56, %v27
  %v73 = vsub.f32 %v57, %v27
  %v74 = vlaneseq
  %v75 = vshrl.u32 %v74, 7
  %v76 = vsub.s32 0, %v75
  %v77 = vrot.slane %v41, %v76
  %v78 = vmul.f32 %v58, %v77
  %v79 = vmul.f32 %v59, %v77
  %v80 = vmul.f32 %v60, %v77
  %v81 = vmul.f32 %v61, %v77
  %v82 = vmul.f32 %v62, %v77
  %v83 = vmul.f32 %v63, %v77
  %v84 = vmul.f32 %v64, %v77
  %v85 = vmul.f32 %v65, %v77
  %v86 = vmul.f32 %v66, %v77
  %v87 = vmul.f32 %v67, %v77
  %v88 = vmul.f32 %v68, %v77
  %v89 = vmul.f32 %v69, %v77
  %v90 = vmul.f32 %v70, %v77
  %v91 = vmul.f32 %v71, %v77
  %v92 = vmul.f32 %v72, %v77
  %v93 = vmul.f32 %v73, %v77
  %v94 = vld [vmem:[%s4] sm:$0x1]
  %v96 = vlaneseq
  %v97 = vshrl.u32 %v96, 7
  %v98 = vsub.s32 0, %v97
  %v99 = vrot.slane %v94, %v98
  %v101 = vadd.f32 %v78, %v99
  %v102 = vadd.f32 %v79, %v99
  %v103 = vadd.f32 %v80, %v99
  %v104 = vadd.f32 %v81, %v99
  %v105 = vadd.f32 %v82, %v99
  %v106 = vadd.f32 %v83, %v99
  %v107 = vadd.f32 %v84, %v99
  %v108 = vadd.f32 %v85, %v99
  %v109 = vadd.f32 %v86, %v99
  %v110 = vadd.f32 %v87, %v99
  %v111 = vadd.f32 %v88, %v99
  %v112 = vadd.f32 %v89, %v99
  %v113 = vadd.f32 %v90, %v99
  %v114 = vadd.f32 %v91, %v99
  %v115 = vadd.f32 %v92, %v99
  %v116 = vadd.f32 %v93, %v99
  %117 = vst [vmem:[%s5] sm:$0xff] %v101
  %118 = vst [vmem:[%s5 + $0x8] sm:$0xff] %v102
  %119 = vst [vmem:[%s5 + $0x10] sm:$0xff] %v103
  %120 = vst [vmem:[%s5 + $0x18] sm:$0xff] %v104
  %121 = vst [vmem:[%s5 + $0x20] sm:$0xff] %v105
  %122 = vst [vmem:[%s5 + $0x28] sm:$0xff] %v106
  %123 = vst [vmem:[%s5 + $0x30] sm:$0xff] %v107
  %124 = vst [vmem:[%s5 + $0x38] sm:$0xff] %v108
  %125 = vst [vmem:[%s5 + $0x40] sm:$0xff] %v109
  %126 = vst [vmem:[%s5 + $0x48] sm:$0xff] %v110
  %127 = vst [vmem:[%s5 + $0x50] sm:$0xff] %v111
  %128 = vst [vmem:[%s5 + $0x58] sm:$0xff] %v112
  %129 = vst [vmem:[%s5 + $0x60] sm:$0xff] %v113
  %130 = vst [vmem:[%s5 + $0x68] sm:$0xff] %v114
  %131 = vst [vmem:[%s5 + $0x70] sm:$0xff] %v115
  %132 = vst [vmem:[%s5 + $0x78] sm:$0xff] %v116
  // Predicated region
  $region22: #{gin_forward.14} parent=0 // pred_check
    _
  $region23: #{gin_forward.14} parent=0 // pred_check_branch
    %134 = sbr.rel (0) target = $region25
  $region24: #{gin_forward.14} parent=0 // pred_region
    _
  $region25: #{gin_forward.14} parent=0 // pred_fallthru
    _
  // Predicated region
  $region26: #{gin_forward.14} parent=0 // pred_check
    _
  $region27: #{gin_forward.14} parent=0 // pred_check_branch
    %136 = sbr.rel (0) target = $region29
  $region28: #{gin_forward.14} parent=0 // pred_region
    _
  $region29: #{gin_forward.14} parent=0 // pred_fallthru
    _

// kernel: gin_forward.15
$region0: #{gin_forward.15}
  #allocation0 [shape = 'u32[]', space=smem, size = 0x4, offset = 0x4, fixed_abs, tag = 'smem constant byte address 0x4 - core index']
  #allocation1 [shape = 'u32[144,128]{1,0:T(1,128)}', space=vmem, size = 0x12000, scoped, tag = 'internal scratch']
  #allocation2 [shape = 'f32[8,384]{1,0:T(8,128)}', space=vmem, size = 0x3000, scoped, tag = 'scratch operand']
  %s0 = inlined_call_operand.vmem [shape: f32[8,128], index: 0, kind: input, shape index: {}]
  %s1 = inlined_call_operand.vmem [shape: f32[128,128], index: 1, kind: input, shape index: {}]
  %s2 = inlined_call_operand.vmem [shape: f32[128,128], index: 2, kind: input, shape index: {}]
  %s3 = inlined_call_operand.vmem [shape: f32[128,128], index: 3, kind: input, shape index: {}]
  %s4 = inlined_call_operand.vmem [shape: f32[384,128], index: 4, kind: input, shape index: {}]
  %s5 = inlined_call_operand.vmem [shape: f32[1,128], index: 5, kind: input, shape index: {}]
  %s6 = inlined_call_operand.vmem [shape: f32[128,128], index: 6, kind: input, shape index: {}]
  %s7 = inlined_call_operand.vmem [shape: f32[1,128], index: 7, kind: input, shape index: {}]
  %s8 = inlined_call_operand.vmem [shape: f32[8,128], index: 8, kind: output, shape index: {}]
  %s9 = sld [smem:[#allocation0]]
  $region50: #{gin_forward.15} parent=0
    _
  %s11 = ssub.s32 1, %s9
  %s12 = scalar_select 0, %s11, %s9
  // Predicated region
  $region2: #{gin_forward.15} parent=0 // pred_check
    _
  $region3: #{gin_forward.15} parent=0 // pred_check_branch
    %14 = sbr.rel (0) target = $region5
  $region4: #{gin_forward.15} parent=0 // pred_region
    _
  $region5: #{gin_forward.15} parent=0 // pred_fallthru
    _
  // Predicated region
  $region6: #{gin_forward.15} parent=0 // pred_check
    _
  $region7: #{gin_forward.15} parent=0 // pred_check_branch
    %16 = sbr.rel (0) target = $region9
  $region8: #{gin_forward.15} parent=0 // pred_region
    _
  $region9: #{gin_forward.15} parent=0 // pred_fallthru
    _
  // Predicated region
  $region10: #{gin_forward.15} parent=0 // pred_check
    _
  $region11: #{gin_forward.15} parent=0 // pred_check_branch
    %18 = sbr.rel (0) target = $region13
  $region12: #{gin_forward.15} parent=0 // pred_region
    _
  $region13: #{gin_forward.15} parent=0 // pred_fallthru
    _
  // Predicated region
  $region14: #{gin_forward.15} parent=0 // pred_check
    _
  $region15: #{gin_forward.15} parent=0 // pred_check_branch
    %20 = sbr.rel (0) target = $region17
  $region16: #{gin_forward.15} parent=0 // pred_region
    _
  $region17: #{gin_forward.15} parent=0 // pred_fallthru
    _
  // Predicated region
  $region18: #{gin_forward.15} parent=0 // pred_check
    _
  $region19: #{gin_forward.15} parent=0 // pred_check_branch
    %22 = sbr.rel (0) target = $region21
  $region20: #{gin_forward.15} parent=0 // pred_region
    _
  $region21: #{gin_forward.15} parent=0 // pred_fallthru
    _
  // Predicated region
  $region22: #{gin_forward.15} parent=0 // pred_check
    _
  $region23: #{gin_forward.15} parent=0 // pred_check_branch
    %24 = sbr.rel (0) target = $region25
  $region24: #{gin_forward.15} parent=0 // pred_region
    _
  $region25: #{gin_forward.15} parent=0 // pred_fallthru
    _
  // Predicated region
  $region26: #{gin_forward.15} parent=0 // pred_check
    _
  $region27: #{gin_forward.15} parent=0 // pred_check_branch
    %26 = sbr.rel (0) target = $region29
  $region28: #{gin_forward.15} parent=0 // pred_region
    _
  $region29: #{gin_forward.15} parent=0 // pred_fallthru
    _
  // Predicated region
  $region30: #{gin_forward.15} parent=0 // pred_check
    _
  $region31: #{gin_forward.15} parent=0 // pred_check_branch
    %28 = sbr.rel (0) target = $region33
  $region32: #{gin_forward.15} parent=0 // pred_region
    _
  $region33: #{gin_forward.15} parent=0 // pred_fallthru
    _
  %p29 = scmp.eq.s32.totalorder 0, 0
  // Predicated region
  $region34: #{gin_forward.15} parent=0 // pred_check
    %p30 = pneg %p29
  $region35: #{gin_forward.15} parent=0 // pred_check_branch
    %32 = sbr.rel (%p30) target = $region37
  $region36: #{gin_forward.15} parent=0 // pred_region
    %33 = vst [vmem:[#allocation2] sm:$0xff] 0.0
    %34 = vst [vmem:[#allocation2 + $0x8] sm:$0xff] 0.0
    %35 = vst [vmem:[#allocation2 + $0x10] sm:$0xff] 0.0
  $region37: #{gin_forward.15} parent=0 // pred_fallthru
    _
  %v36 = vld [vmem:[%s0] sm:$0xff]
  %v37 = vld [vmem:[#allocation2] sm:$0xff]
  %v38 = vld [vmem:[%s1] sm:$0xff]
  %v39 = vld [vmem:[%s1 + $0x8] sm:$0xff]
  %v40 = vld [vmem:[%s1 + $0x10] sm:$0xff]
  %v41 = vld [vmem:[%s1 + $0x18] sm:$0xff]
  %v42 = vld [vmem:[%s1 + $0x20] sm:$0xff]
  %v43 = vld [vmem:[%s1 + $0x28] sm:$0xff]
  %v44 = vld [vmem:[%s1 + $0x30] sm:$0xff]
  %v45 = vld [vmem:[%s1 + $0x38] sm:$0xff]
  %v46 = vld [vmem:[%s1 + $0x40] sm:$0xff]
  %v47 = vld [vmem:[%s1 + $0x48] sm:$0xff]
  %v48 = vld [vmem:[%s1 + $0x50] sm:$0xff]
  %v49 = vld [vmem:[%s1 + $0x58] sm:$0xff]
  %v50 = vld [vmem:[%s1 + $0x60] sm:$0xff]
  %v51 = vld [vmem:[%s1 + $0x68] sm:$0xff]
  %v52 = vld [vmem:[%s1 + $0x70] sm:$0xff]
  %v53 = vld [vmem:[%s1 + $0x78] sm:$0xff]
  %54 = vmatprep.subr.mxu0 0.0
  %55 = vmatpush1.msra.mxu0 %v38
  %56 = vmatprep.subr.mxu0 0.0
  %57 = vmatpush1.msra.mxu0 %v39
  %58 = vmatprep.subr.mxu0 0.0
  %59 = vmatpush1.msra.mxu0 %v40
  %60 = vmatprep.subr.mxu0 0.0
  %61 = vmatpush1.msra.mxu0 %v41
  %62 = vmatprep.subr.mxu0 0.0
  %63 = vmatpush1.msra.mxu0 %v42
  %64 = vmatprep.subr.mxu0 0.0
  %65 = vmatpush1.msra.mxu0 %v43
  %66 = vmatprep.subr.mxu0 0.0
  %67 = vmatpush1.msra.mxu0 %v44
  %68 = vmatprep.subr.mxu0 0.0
  %69 = vmatpush1.msra.mxu0 %v45
  %70 = vmatprep.subr.mxu0 0.0
  %71 = vmatpush1.msra.mxu0 %v46
  %72 = vmatprep.subr.mxu0 0.0
  %73 = vmatpush1.msra.mxu0 %v47
  %74 = vmatprep.subr.mxu0 0.0
  %75 = vmatpush1.msra.mxu0 %v48
  %76 = vmatprep.subr.mxu0 0.0
  %77 = vmatpush1.msra.mxu0 %v49
  %78 = vmatprep.subr.mxu0 0.0
  %79 = vmatpush1.msra.mxu0 %v50
  %80 = vmatprep.subr.mxu0 0.0
  %81 = vmatpush1.msra.mxu0 %v51
  %82 = vmatprep.subr.mxu0 0.0
  %83 = vmatpush1.msra.mxu0 %v52
  %84 = vmatprep.subr.mxu0 0.0
  %85 = vmatpush1.msra.mxu0 %v53
  %86 = vmatprep.subr.mxu0 0.0
  %87 = vmatpush1.msra.mxu0 0.0
  %88 = vmatprep.subr.mxu0 0.0
  %89 = vmatpush1.msra.mxu0 0.0
  %90 = vmatprep.subr.mxu0 0.0
  %91 = vmatpush1.msra.mxu0 0.0
  %92 = vmatprep.subr.mxu0 0.0
  %93 = vmatpush1.msra.mxu0 0.0
  %94 = vmatprep.subr.mxu0 0.0
  %95 = vmatpush1.msra.mxu0 0.0
  %96 = vmatprep.subr.mxu0 0.0
  %97 = vmatpush1.msra.mxu0 0.0
  %98 = vmatprep.subr.mxu0 0.0
  %99 = vmatpush1.msra.mxu0 0.0
  %100 = vmatprep.subr.mxu0 0.0
  %101 = vmatpush1.msra.mxu0 0.0
  %102 = vmatprep.subr.mxu0 0.0
  %103 = vmatpush1.msra.mxu0 0.0
  %104 = vmatprep.subr.mxu0 0.0
  %105 = vmatpush1.msra.mxu0 0.0
  %106 = vmatprep.subr.mxu0 0.0
  %107 = vmatpush1.msra.mxu0 0.0
  %108 = vmatprep.subr.mxu0 0.0
  %109 = vmatpush1.msra.mxu0 0.0
  %110 = vmatprep.subr.mxu0 0.0
  %111 = vmatpush1.msra.mxu0 0.0
  %112 = vmatprep.subr.mxu0 0.0
  %113 = vmatpush1.msra.mxu0 0.0
  %114 = vmatprep.subr.mxu0 0.0
  %115 = vmatpush1.msra.mxu0 0.0
  %116 = vmatprep.subr.mxu0 0.0
  %117 = vmatpush1.msra.mxu0 0.0
  %118 = vmatprep.mubr.f32.mxu0 0.0
  %119 = vmatmul.mubr.f32.gmra.mrb[0].mxu0 %v36
  %v120 = vpop.f32.mrb[0].mxu0
  %v121 = vadd.f32 0.0, %v120
  %v122 = vpop.f32.mrb[0].mxu0
  %123 = vdwg.mxu0
  %v124 = vadd.f32 %v37, %v121
  %125 = vst [vmem:[#allocation2] sm:$0xff] %v124
  %v126 = vld [vmem:[#allocation2 + $0x8] sm:$0xff]
  %v127 = vld [vmem:[%s2] sm:$0xff]
  %v128 = vld [vmem:[%s2 + $0x8] sm:$0xff]
  %v129 = vld [vmem:[%s2 + $0x10] sm:$0xff]
  %v130 = vld [vmem:[%s2 + $0x18] sm:$0xff]
  %v131 = vld [vmem:[%s2 + $0x20] sm:$0xff]
  %v132 = vld [vmem:[%s2 + $0x28] sm:$0xff]
  %v133 = vld [vmem:[%s2 + $0x30] sm:$0xff]
  %v134 = vld [vmem:[%s2 + $0x38] sm:$0xff]
  %v135 = vld [vmem:[%s2 + $0x40] sm:$0xff]
  %v136 = vld [vmem:[%s2 + $0x48] sm:$0xff]
  %v137 = vld [vmem:[%s2 + $0x50] sm:$0xff]
  %v138 = vld [vmem:[%s2 + $0x58] sm:$0xff]
  %v139 = vld [vmem:[%s2 + $0x60] sm:$0xff]
  %v140 = vld [vmem:[%s2 + $0x68] sm:$0xff]
  %v141 = vld [vmem:[%s2 + $0x70] sm:$0xff]
  %v142 = vld [vmem:[%s2 + $0x78] sm:$0xff]
  %143 = vmatprep.subr.mxu0 0.0
  %144 = vmatpush1.msra.mxu0 %v127
  %145 = vmatprep.subr.mxu0 0.0
  %146 = vmatpush1.msra.mxu0 %v128
  %147 = vmatprep.subr.mxu0 0.0
  %148 = vmatpush1.msra.mxu0 %v129
  %149 = vmatprep.subr.mxu0 0.0
  %150 = vmatpush1.msra.mxu0 %v130
  %151 = vmatprep.subr.mxu0 0.0
  %152 = vmatpush1.msra.mxu0 %v131
  %153 = vmatprep.subr.mxu0 0.0
  %154 = vmatpush1.msra.mxu0 %v132
  %155 = vmatprep.subr.mxu0 0.0
  %156 = vmatpush1.msra.mxu0 %v133
  %157 = vmatprep.subr.mxu0 0.0
  %158 = vmatpush1.msra.mxu0 %v134
  %159 = vmatprep.subr.mxu0 0.0
  %160 = vmatpush1.msra.mxu0 %v135
  %161 = vmatprep.subr.mxu0 0.0
  %162 = vmatpush1.msra.mxu0 %v136
  %163 = vmatprep.subr.mxu0 0.0
  %164 = vmatpush1.msra.mxu0 %v137
  %165 = vmatprep.subr.mxu0 0.0
  %166 = vmatpush1.msra.mxu0 %v138
  %167 = vmatprep.subr.mxu0 0.0
  %168 = vmatpush1.msra.mxu0 %v139
  %169 = vmatprep.subr.mxu0 0.0
  %170 = vmatpush1.msra.mxu0 %v140
  %171 = vmatprep.subr.mxu0 0.0
  %172 = vmatpush1.msra.mxu0 %v141
  %173 = vmatprep.subr.mxu0 0.0
  %174 = vmatpush1.msra.mxu0 %v142
  %175 = vmatprep.subr.mxu0 0.0
  %176 = vmatpush1.msra.mxu0 0.0
  %177 = vmatprep.subr.mxu0 0.0
  %178 = vmatpush1.msra.mxu0 0.0
  %179 = vmatprep.subr.mxu0 0.0
  %180 = vmatpush1.msra.mxu0 0.0
  %181 = vmatprep.subr.mxu0 0.0
  %182 = vmatpush1.msra.mxu0 0.0
  %183 = vmatprep.subr.mxu0 0.0
  %184 = vmatpush1.msra.mxu0 0.0
  %185 = vmatprep.subr.mxu0 0.0
  %186 = vmatpush1.msra.mxu0 0.0
  %187 = vmatprep.subr.mxu0 0.0
  %188 = vmatpush1.msra.mxu0 0.0
  %189 = vmatprep.subr.mxu0 0.0
  %190 = vmatpush1.msra.mxu0 0.0
  %191 = vmatprep.subr.mxu0 0.0
  %192 = vmatpush1.msra.mxu0 0.0
  %193 = vmatprep.subr.mxu0 0.0
  %194 = vmatpush1.msra.mxu0 0.0
  %195 = vmatprep.subr.mxu0 0.0
  %196 = vmatpush1.msra.mxu0 0.0
  %197 = vmatprep.subr.mxu0 0.0
  %198 = vmatpush1.msra.mxu0 0.0
  %199 = vmatprep.subr.mxu0 0.0
  %200 = vmatpush1.msra.mxu0 0.0
  %201 = vmatprep.subr.mxu0 0.0
  %202 = vmatpush1.msra.mxu0 0.0
  %203 = vmatprep.subr.mxu0 0.0
  %204 = vmatpush1.msra.mxu0 0.0
  %205 = vmatprep.subr.mxu0 0.0
  %206 = vmatpush1.msra.mxu0 0.0
  %207 = vmatprep.mubr.f32.mxu0 0.0
  %208 = vmatmul.mubr.f32.gmra.mrb[0].mxu0 %v36
  %v209 = vpop.f32.mrb[0].mxu0
  %v210 = vadd.f32 0.0, %v209
  %v211 = vpop.f32.mrb[0].mxu0
  %212 = vdwg.mxu0
  %v213 = vadd.f32 %v126, %v210
  %214 = vst [vmem:[#allocation2 + $0x8] sm:$0xff] %v213
  %v215 = vld [vmem:[#allocation2 + $0x10] sm:$0xff]
  %v216 = vld [vmem:[%s3] sm:$0xff]
  %v217 = vld [vmem:[%s3 + $0x8] sm:$0xff]
  %v218 = vld [vmem:[%s3 + $0x10] sm:$0xff]
  %v219 = vld [vmem:[%s3 + $0x18] sm:$0xff]
  %v220 = vld [vmem:[%s3 + $0x20] sm:$0xff]
  %v221 = vld [vmem:[%s3 + $0x28] sm:$0xff]
  %v222 = vld [vmem:[%s3 + $0x30] sm:$0xff]
  %v223 = vld [vmem:[%s3 + $0x38] sm:$0xff]
  %v224 = vld [vmem:[%s3 + $0x40] sm:$0xff]
  %v225 = vld [vmem:[%s3 + $0x48] sm:$0xff]
  %v226 = vld [vmem:[%s3 + $0x50] sm:$0xff]
  %v227 = vld [vmem:[%s3 + $0x58] sm:$0xff]
  %v228 = vld [vmem:[%s3 + $0x60] sm:$0xff]
  %v229 = vld [vmem:[%s3 + $0x68] sm:$0xff]
  %v230 = vld [vmem:[%s3 + $0x70] sm:$0xff]
  %v231 = vld [vmem:[%s3 + $0x78] sm:$0xff]
  %232 = vmatprep.subr.mxu0 0.0
  %233 = vmatpush1.msra.mxu0 %v216
  %234 = vmatprep.subr.mxu0 0.0
  %235 = vmatpush1.msra.mxu0 %v217
  %236 = vmatprep.subr.mxu0 0.0
  %237 = vmatpush1.msra.mxu0 %v218
  %238 = vmatprep.subr.mxu0 0.0
  %239 = vmatpush1.msra.mxu0 %v219
  %240 = vmatprep.subr.mxu0 0.0
  %241 = vmatpush1.msra.mxu0 %v220
  %242 = vmatprep.subr.mxu0 0.0
  %243 = vmatpush1.msra.mxu0 %v221
  %244 = vmatprep.subr.mxu0 0.0
  %245 = vmatpush1.msra.mxu0 %v222
  %246 = vmatprep.subr.mxu0 0.0
  %247 = vmatpush1.msra.mxu0 %v223
  %248 = vmatprep.subr.mxu0 0.0
  %249 = vmatpush1.msra.mxu0 %v224
  %250 = vmatprep.subr.mxu0 0.0
  %251 = vmatpush1.msra.mxu0 %v225
  %252 = vmatprep.subr.mxu0 0.0
  %253 = vmatpush1.msra.mxu0 %v226
  %254 = vmatprep.subr.mxu0 0.0
  %255 = vmatpush1.msra.mxu0 %v227
  %256 = vmatprep.subr.mxu0 0.0
  %257 = vmatpush1.msra.mxu0 %v228
  %258 = vmatprep.subr.mxu0 0.0
  %259 = vmatpush1.msra.mxu0 %v229
  %260 = vmatprep.subr.mxu0 0.0
  %261 = vmatpush1.msra.mxu0 %v230
  %262 = vmatprep.subr.mxu0 0.0
  %263 = vmatpush1.msra.mxu0 %v231
  %264 = vmatprep.subr.mxu0 0.0
  %265 = vmatpush1.msra.mxu0 0.0
  %266 = vmatprep.subr.mxu0 0.0
  %267 = vmatpush1.msra.mxu0 0.0
  %268 = vmatprep.subr.mxu0 0.0
  %269 = vmatpush1.msra.mxu0 0.0
  %270 = vmatprep.subr.mxu0 0.0
  %271 = vmatpush1.msra.mxu0 0.0
  %272 = vmatprep.subr.mxu0 0.0
  %273 = vmatpush1.msra.mxu0 0.0
  %274 = vmatprep.subr.mxu0 0.0
  %275 = vmatpush1.msra.mxu0 0.0
  %276 = vmatprep.subr.mxu0 0.0
  %277 = vmatpush1.msra.mxu0 0.0
  %278 = vmatprep.subr.mxu0 0.0
  %279 = vmatpush1.msra.mxu0 0.0
  %280 = vmatprep.subr.mxu0 0.0
  %281 = vmatpush1.msra.mxu0 0.0
  %282 = vmatprep.subr.mxu0 0.0
  %283 = vmatpush1.msra.mxu0 0.0
  %284 = vmatprep.subr.mxu0 0.0
  %285 = vmatpush1.msra.mxu0 0.0
  %286 = vmatprep.subr.mxu0 0.0
  %287 = vmatpush1.msra.mxu0 0.0
  %288 = vmatprep.subr.mxu0 0.0
  %289 = vmatpush1.msra.mxu0 0.0
  %290 = vmatprep.subr.mxu0 0.0
  %291 = vmatpush1.msra.mxu0 0.0
  %292 = vmatprep.subr.mxu0 0.0
  %293 = vmatpush1.msra.mxu0 0.0
  %294 = vmatprep.subr.mxu0 0.0
  %295 = vmatpush1.msra.mxu0 0.0
  %296 = vmatprep.mubr.f32.mxu0 0.0
  %297 = vmatmul.mubr.f32.gmra.mrb[0].mxu0 %v36
  %v298 = vpop.f32.mrb[0].mxu0
  %v299 = vadd.f32 0.0, %v298
  %v300 = vpop.f32.mrb[0].mxu0
  %301 = vdwg.mxu0
  %v302 = vadd.f32 %v215, %v299
  %303 = vst [vmem:[#allocation2 + $0x10] sm:$0xff] %v302
  // Predicated region
  $region38: #{gin_forward.15} parent=0 // pred_check
    %p304 = pneg %p29
  $region39: #{gin_forward.15} parent=0 // pred_check_branch
    %306 = sbr.rel (%p304) target = $region41
  $region40: #{gin_forward.15} parent=0 // pred_region
    %v307 = vld [vmem:[#allocation2] sm:$0xff]
    %v308 = vld [vmem:[#allocation2 + $0x8] sm:$0xff]
    %v309 = vld [vmem:[#allocation2 + $0x10] sm:$0xff]
    %v310 = vld [vmem:[%s4] sm:$0xff]
    %v311 = vld [vmem:[%s4 + $0x8] sm:$0xff]
    %v312 = vld [vmem:[%s4 + $0x10] sm:$0xff]
    %v313 = vld [vmem:[%s4 + $0x18] sm:$0xff]
    %v314 = vld [vmem:[%s4 + $0x20] sm:$0xff]
    %v315 = vld [vmem:[%s4 + $0x28] sm:$0xff]
    %v316 = vld [vmem:[%s4 + $0x30] sm:$0xff]
    %v317 = vld [vmem:[%s4 + $0x38] sm:$0xff]
    %v318 = vld [vmem:[%s4 + $0x40] sm:$0xff]
    %v319 = vld [vmem:[%s4 + $0x48] sm:$0xff]
    %v320 = vld [vmem:[%s4 + $0x50] sm:$0xff]
    %v321 = vld [vmem:[%s4 + $0x58] sm:$0xff]
    %v322 = vld [vmem:[%s4 + $0x60] sm:$0xff]
    %v323 = vld [vmem:[%s4 + $0x68] sm:$0xff]
    %v324 = vld [vmem:[%s4 + $0x70] sm:$0xff]
    %v325 = vld [vmem:[%s4 + $0x78] sm:$0xff]
    %v326 = vld [vmem:[%s4 + $0x80] sm:$0xff]
    %v327 = vld [vmem:[%s4 + $0x88] sm:$0xff]
    %v328 = vld [vmem:[%s4 + $0x90] sm:$0xff]
    %v329 = vld [vmem:[%s4 + $0x98] sm:$0xff]
    %v330 = vld [vmem:[%s4 + $0xa0] sm:$0xff]
    %v331 = vld [vmem:[%s4 + $0xa8] sm:$0xff]
    %v332 = vld [vmem:[%s4 + $0xb0] sm:$0xff]
    %v333 = vld [vmem:[%s4 + $0xb8] sm:$0xff]
    %v334 = vld [vmem:[%s4 + $0xc0] sm:$0xff]
    %v335 = vld [vmem:[%s4 + $0xc8] sm:$0xff]
    %v336 = vld [vmem:[%s4 + $0xd0] sm:$0xff]
    %v337 = vld [vmem:[%s4 + $0xd8] sm:$0xff]
    %v338 = vld [vmem:[%s4 + $0xe0] sm:$0xff]
    %v339 = vld [vmem:[%s4 + $0xe8] sm:$0xff]
    %v340 = vld [vmem:[%s4 + $0xf0] sm:$0xff]
    %v341 = vld [vmem:[%s4 + $0xf8] sm:$0xff]
    %v342 = vld [vmem:[%s4 + $0x100] sm:$0xff]
    %v343 = vld [vmem:[%s4 + $0x108] sm:$0xff]
    %v344 = vld [vmem:[%s4 + $0x110] sm:$0xff]
    %v345 = vld [vmem:[%s4 + $0x118] sm:$0xff]
    %v346 = vld [vmem:[%s4 + $0x120] sm:$0xff]
    %v347 = vld [vmem:[%s4 + $0x128] sm:$0xff]
    %v348 = vld [vmem:[%s4 + $0x130] sm:$0xff]
    %v349 = vld [vmem:[%s4 + $0x138] sm:$0xff]
    %v350 = vld [vmem:[%s4 + $0x140] sm:$0xff]
    %v351 = vld [vmem:[%s4 + $0x148] sm:$0xff]
    %v352 = vld [vmem:[%s4 + $0x150] sm:$0xff]
    %v353 = vld [vmem:[%s4 + $0x158] sm:$0xff]
    %v354 = vld [vmem:[%s4 + $0x160] sm:$0xff]
    %v355 = vld [vmem:[%s4 + $0x168] sm:$0xff]
    %v356 = vld [vmem:[%s4 + $0x170] sm:$0xff]
    %v357 = vld [vmem:[%s4 + $0x178] sm:$0xff]
    %v358 = vld [vmem:[%s5] sm:$0x1]
    %v360 = vlaneseq
    %v361 = vshrl.u32 %v360, 7
    %v362 = vsub.s32 0, %v361
    %v363 = vrot.slane %v358, %v362
    %365 = vmatprep.subr.mxu0 0.0
    %366 = vmatpush1.msra.mxu0 %v310
    %367 = vmatprep.subr.mxu0 0.0
    %368 = vmatpush1.msra.mxu0 %v311
    %369 = vmatprep.subr.mxu0 0.0
    %370 = vmatpush1.msra.mxu0 %v312
    %371 = vmatprep.subr.mxu0 0.0
    %372 = vmatpush1.msra.mxu0 %v313
    %373 = vmatprep.subr.mxu0 0.0
    %374 = vmatpush1.msra.mxu0 %v314
    %375 = vmatprep.subr.mxu0 0.0
    %376 = vmatpush1.msra.mxu0 %v315
    %377 = vmatprep.subr.mxu0 0.0
    %378 = vmatpush1.msra.mxu0 %v316
    %379 = vmatprep.subr.mxu0 0.0
    %380 = vmatpush1.msra.mxu0 %v317
    %381 = vmatprep.subr.mxu0 0.0
    %382 = vmatpush1.msra.mxu0 %v318
    %383 = vmatprep.subr.mxu0 0.0
    %384 = vmatpush1.msra.mxu0 %v319
    %385 = vmatprep.subr.mxu0 0.0
    %386 = vmatpush1.msra.mxu0 %v320
    %387 = vmatprep.subr.mxu0 0.0
    %388 = vmatpush1.msra.mxu0 %v321
    %389 = vmatprep.subr.mxu0 0.0
    %390 = vmatpush1.msra.mxu0 %v322
    %391 = vmatprep.subr.mxu0 0.0
    %392 = vmatpush1.msra.mxu0 %v323
    %393 = vmatprep.subr.mxu0 0.0
    %394 = vmatpush1.msra.mxu0 %v324
    %395 = vmatprep.subr.mxu0 0.0
    %396 = vmatpush1.msra.mxu0 %v325
    %397 = vmatprep.subr.mxu0 0.0
    %398 = vmatpush1.msra.mxu0 %v326
    %399 = vmatprep.subr.mxu0 0.0
    %400 = vmatpush1.msra.mxu0 %v327
    %401 = vmatprep.subr.mxu0 0.0
    %402 = vmatpush1.msra.mxu0 %v328
    %403 = vmatprep.subr.mxu0 0.0
    %404 = vmatpush1.msra.mxu0 %v329
    %405 = vmatprep.subr.mxu0 0.0
    %406 = vmatpush1.msra.mxu0 %v330
    %407 = vmatprep.subr.mxu0 0.0
    %408 = vmatpush1.msra.mxu0 %v331
    %409 = vmatprep.subr.mxu0 0.0
    %410 = vmatpush1.msra.mxu0 %v332
    %411 = vmatprep.subr.mxu0 0.0
    %412 = vmatpush1.msra.mxu0 %v333
    %413 = vmatprep.subr.mxu0 0.0
    %414 = vmatpush1.msra.mxu0 %v334
    %415 = vmatprep.subr.mxu0 0.0
    %416 = vmatpush1.msra.mxu0 %v335
    %417 = vmatprep.subr.mxu0 0.0
    %418 = vmatpush1.msra.mxu0 %v336
    %419 = vmatprep.subr.mxu0 0.0
    %420 = vmatpush1.msra.mxu0 %v337
    %421 = vmatprep.subr.mxu0 0.0
    %422 = vmatpush1.msra.mxu0 %v338
    %423 = vmatprep.subr.mxu0 0.0
    %424 = vmatpush1.msra.mxu0 %v339
    %425 = vmatprep.subr.mxu0 0.0
    %426 = vmatpush1.msra.mxu0 %v340
    %427 = vmatprep.subr.mxu0 0.0
    %428 = vmatpush1.msra.mxu0 %v341
    %429 = vmatprep.mubr.f32.mxu0 %v308
    %430 = vmatmul.mubr.f32.gmra.mrb[0].mxu0 %v307
    %v431 = vpop.f32.mrb[0].mxu0
    %v432 = vadd.f32 %v363, %v431
    %v433 = vpop.f32.mrb[0].mxu0
    %434 = vdwg.mxu0
    %435 = vmatprep.subr.mxu0 0.0
    %436 = vmatpush1.msra.mxu0 %v342
    %437 = vmatprep.subr.mxu0 0.0
    %438 = vmatpush1.msra.mxu0 %v343
    %439 = vmatprep.subr.mxu0 0.0
    %440 = vmatpush1.msra.mxu0 %v344
    %441 = vmatprep.subr.mxu0 0.0
    %442 = vmatpush1.msra.mxu0 %v345
    %443 = vmatprep.subr.mxu0 0.0
    %444 = vmatpush1.msra.mxu0 %v346
    %445 = vmatprep.subr.mxu0 0.0
    %446 = vmatpush1.msra.mxu0 %v347
    %447 = vmatprep.subr.mxu0 0.0
    %448 = vmatpush1.msra.mxu0 %v348
    %449 = vmatprep.subr.mxu0 0.0
    %450 = vmatpush1.msra.mxu0 %v349
    %451 = vmatprep.subr.mxu0 0.0
    %452 = vmatpush1.msra.mxu0 %v350
    %453 = vmatprep.subr.mxu0 0.0
    %454 = vmatpush1.msra.mxu0 %v351
    %455 = vmatprep.subr.mxu0 0.0
    %456 = vmatpush1.msra.mxu0 %v352
    %457 = vmatprep.subr.mxu0 0.0
    %458 = vmatpush1.msra.mxu0 %v353
    %459 = vmatprep.subr.mxu0 0.0
    %460 = vmatpush1.msra.mxu0 %v354
    %461 = vmatprep.subr.mxu0 0.0
    %462 = vmatpush1.msra.mxu0 %v355
    %463 = vmatprep.subr.mxu0 0.0
    %464 = vmatpush1.msra.mxu0 %v356
    %465 = vmatprep.subr.mxu0 0.0
    %466 = vmatpush1.msra.mxu0 %v357
    %467 = vmatprep.subr.mxu0 0.0
    %468 = vmatpush1.msra.mxu0 0.0
    %469 = vmatprep.subr.mxu0 0.0
    %470 = vmatpush1.msra.mxu0 0.0
    %471 = vmatprep.subr.mxu0 0.0
    %472 = vmatpush1.msra.mxu0 0.0
    %473 = vmatprep.subr.mxu0 0.0
    %474 = vmatpush1.msra.mxu0 0.0
    %475 = vmatprep.subr.mxu0 0.0
    %476 = vmatpush1.msra.mxu0 0.0
    %477 = vmatprep.subr.mxu0 0.0
    %478 = vmatpush1.msra.mxu0 0.0
    %479 = vmatprep.subr.mxu0 0.0
    %480 = vmatpush1.msra.mxu0 0.0
    %481 = vmatprep.subr.mxu0 0.0
    %482 = vmatpush1.msra.mxu0 0.0
    %483 = vmatprep.subr.mxu0 0.0
    %484 = vmatpush1.msra.mxu0 0.0
    %485 = vmatprep.subr.mxu0 0.0
    %486 = vmatpush1.msra.mxu0 0.0
    %487 = vmatprep.subr.mxu0 0.0
    %488 = vmatpush1.msra.mxu0 0.0
    %489 = vmatprep.subr.mxu0 0.0
    %490 = vmatpush1.msra.mxu0 0.0
    %491 = vmatprep.subr.mxu0 0.0
    %492 = vmatpush1.msra.mxu0 0.0
    %493 = vmatprep.subr.mxu0 0.0
    %494 = vmatpush1.msra.mxu0 0.0
    %495 = vmatprep.subr.mxu0 0.0
    %496 = vmatpush1.msra.mxu0 0.0
    %497 = vmatprep.subr.mxu0 0.0
    %498 = vmatpush1.msra.mxu0 0.0
    %499 = vmatprep.mubr.f32.mxu0 0.0
    %500 = vmatmul.mubr.f32.gmra.mrb[0].mxu0 %v309
    %v501 = vpop.f32.mrb[0].mxu0
    %v502 = vadd.f32 %v432, %v501
    %v503 = vpop.f32.mrb[0].mxu0
    %504 = vdwg.mxu0
    %v505 = vmax.f32 %v502, 0.0
    %v506 = vld [vmem:[%s6] sm:$0xff]
    %v507 = vld [vmem:[%s6 + $0x8] sm:$0xff]
    %v508 = vld [vmem:[%s6 + $0x10] sm:$0xff]
    %v509 = vld [vmem:[%s6 + $0x18] sm:$0xff]
    %v510 = vld [vmem:[%s6 + $0x20] sm:$0xff]
    %v511 = vld [vmem:[%s6 + $0x28] sm:$0xff]
    %v512 = vld [vmem:[%s6 + $0x30] sm:$0xff]
    %v513 = vld [vmem:[%s6 + $0x38] sm:$0xff]
    %v514 = vld [vmem:[%s6 + $0x40] sm:$0xff]
    %v515 = vld [vmem:[%s6 + $0x48] sm:$0xff]
    %v516 = vld [vmem:[%s6 + $0x50] sm:$0xff]
    %v517 = vld [vmem:[%s6 + $0x58] sm:$0xff]
    %v518 = vld [vmem:[%s6 + $0x60] sm:$0xff]
    %v519 = vld [vmem:[%s6 + $0x68] sm:$0xff]
    %v520 = vld [vmem:[%s6 + $0x70] sm:$0xff]
    %v521 = vld [vmem:[%s6 + $0x78] sm:$0xff]
    %v522 = vld [vmem:[%s7] sm:$0x1]
    %v524 = vlaneseq
    %v525 = vshrl.u32 %v524, 7
    %v526 = vsub.s32 0, %v525
    %v527 = vrot.slane %v522, %v526
    %529 = vmatprep.subr.mxu0 0.0
    %530 = vmatpush1.msra.mxu0 %v506
    %531 = vmatprep.subr.mxu0 0.0
    %532 = vmatpush1.msra.mxu0 %v507
    %533 = vmatprep.subr.mxu0 0.0
    %534 = vmatpush1.msra.mxu0 %v508
    %535 = vmatprep.subr.mxu0 0.0
    %536 = vmatpush1.msra.mxu0 %v509
    %537 = vmatprep.subr.mxu0 0.0
    %538 = vmatpush1.msra.mxu0 %v510
    %539 = vmatprep.subr.mxu0 0.0
    %540 = vmatpush1.msra.mxu0 %v511
    %541 = vmatprep.subr.mxu0 0.0
    %542 = vmatpush1.msra.mxu0 %v512
    %543 = vmatprep.subr.mxu0 0.0
    %544 = vmatpush1.msra.mxu0 %v513
    %545 = vmatprep.subr.mxu0 0.0
    %546 = vmatpush1.msra.mxu0 %v514
    %547 = vmatprep.subr.mxu0 0.0
    %548 = vmatpush1.msra.mxu0 %v515
    %549 = vmatprep.subr.mxu0 0.0
    %550 = vmatpush1.msra.mxu0 %v516
    %551 = vmatprep.subr.mxu0 0.0
    %552 = vmatpush1.msra.mxu0 %v517
    %553 = vmatprep.subr.mxu0 0.0
    %554 = vmatpush1.msra.mxu0 %v518
    %555 = vmatprep.subr.mxu0 0.0
    %556 = vmatpush1.msra.mxu0 %v519
    %557 = vmatprep.subr.mxu0 0.0
    %558 = vmatpush1.msra.mxu0 %v520
    %559 = vmatprep.subr.mxu0 0.0
    %560 = vmatpush1.msra.mxu0 %v521
    %561 = vmatprep.subr.mxu0 0.0
    %562 = vmatpush1.msra.mxu0 0.0
    %563 = vmatprep.subr.mxu0 0.0
    %564 = vmatpush1.msra.mxu0 0.0
    %565 = vmatprep.subr.mxu0 0.0
    %566 = vmatpush1.msra.mxu0 0.0
    %567 = vmatprep.subr.mxu0 0.0
    %568 = vmatpush1.msra.mxu0 0.0
    %569 = vmatprep.subr.mxu0 0.0
    %570 = vmatpush1.msra.mxu0 0.0
    %571 = vmatprep.subr.mxu0 0.0
    %572 = vmatpush1.msra.mxu0 0.0
    %573 = vmatprep.subr.mxu0 0.0
    %574 = vmatpush1.msra.mxu0 0.0
    %575 = vmatprep.subr.mxu0 0.0
    %576 = vmatpush1.msra.mxu0 0.0
    %577 = vmatprep.subr.mxu0 0.0
    %578 = vmatpush1.msra.mxu0 0.0
    %579 = vmatprep.subr.mxu0 0.0
    %580 = vmatpush1.msra.mxu0 0.0
    %581 = vmatprep.subr.mxu0 0.0
    %582 = vmatpush1.msra.mxu0 0.0
    %583 = vmatprep.subr.mxu0 0.0
    %584 = vmatpush1.msra.mxu0 0.0
    %585 = vmatprep.subr.mxu0 0.0
    %586 = vmatpush1.msra.mxu0 0.0
    %587 = vmatprep.subr.mxu0 0.0
    %588 = vmatpush1.msra.mxu0 0.0
    %589 = vmatprep.subr.mxu0 0.0
    %590 = vmatpush1.msra.mxu0 0.0
    %591 = vmatprep.subr.mxu0 0.0
    %592 = vmatpush1.msra.mxu0 0.0
    %593 = vmatprep.mubr.f32.mxu0 0.0
    %594 = vmatmul.mubr.f32.gmra.mrb[0].mxu0 %v505
    %v595 = vpop.f32.mrb[0].mxu0
    %v596 = vadd.f32 %v527, %v595
    %v597 = vpop.f32.mrb[0].mxu0
    %598 = vdwg.mxu0
    %v599 = vlaneseq
    %v600 = vand.u32 %v599, 127
    %vm601 = vcmp.lt.s32.totalorder %v600, 4
    %v602 = vsel %vm601, %v596, -1e+30
    %603 = vmax.xlane.f32.xlu0 %v602
    %v604 = vpop.xlane.xlu0 %603
    %v605 = vsub.f32 %v602, %v604
    %v606 = vmul.f32 %v605, 1.442695
    %v607 = vpow.pop %v606
    %608 = vadd.xlane.f32.xlu0 %v607
    %v609 = vpop.xlane.xlu0 %608
    %v610 = vlog2.pop %v609
    %v611 = vmul.f32 %v610, 0.6931472
    %v612 = vsub.f32 %v605, %v611
    %613 = vst [vmem:[%s8] sm:$0xff] %v612
  $region41: #{gin_forward.15} parent=0 // pred_fallthru
    _
  // Predicated region
  $region42: #{gin_forward.15} parent=0 // pred_check
    _
  $region43: #{gin_forward.15} parent=0 // pred_check_branch
    %615 = sbr.rel (0) target = $region45
  $region44: #{gin_forward.15} parent=0 // pred_region
    _
  $region45: #{gin_forward.15} parent=0 // pred_fallthru
    _
  // Predicated region
  $region46: #{gin_forward.15} parent=0 // pred_check
    _
  $region47: #{gin_forward.15} parent=0 // pred_check_branch
    %617 = sbr.rel (0) target = $region49
  $region48: #{gin_forward.15} parent=0 // pred_region
    _
  $region49: #{gin_forward.15} parent=0 // pred_fallthru
    _

</llo_original>
